<compile_context>
chip_gen: v6e
topology: v6e:2x2x1
jax: 0.10.0
libtpu: 0.0.40
codegen_flags: <defaults>
</compile_context>

<pallas_src>
import jax
import jax.numpy as jnp
import numpy as np
from jax.experimental import pallas as pl
from jax.experimental.pallas import tpu as pltpu


# ----------------------- static geometry (input_size = 3000) -----------------
FS = 100
L_IN = 3000
KT1, ST1 = FS // 2, FS // 16              # conv_time: kernel 50, stride 6
KF1, SF1, PF1 = 4 * FS, FS // 2, 2        # conv_fre : kernel 400, stride 50, pad 2

L_T1 = (L_IN - KT1) // ST1 + 1            # 492  conv_time output length
L_T1P = L_T1 // 8                         # 61   after MaxPool1d(8)
L_T2 = L_T1P - 8 + 1                      # 54   conv_time_1 valid length
L_T3 = L_T2 - 8 + 1                       # 47   conv_time_2 valid length
L_T4 = L_T3 - 8 + 1                       # 40   conv_time_3 valid length
N_TOUT = L_T4 // 4                        # 10   after MaxPool1d(4)

L_F1 = (L_IN + 2 * PF1 - KF1) // SF1 + 1  # 53   conv_fre output length
L_F1P = L_F1 // 4                         # 13   after MaxPool1d(4)
L_F2 = L_F1P + 2 * 2 - 6 + 1              # 12   conv_fre_1 valid length (pad 2)
L_F3 = L_F2 + 2 * 2 - 6 + 1               # 11   conv_fre_2 valid length
L_F4 = L_F3 + 2 * 2 - 6 + 1               # 10   conv_fre_3 valid length
N_FOUT = L_F4 // 2                        # 5    after MaxPool1d(2)

MT = (56, 48, 40)                         # rows computed per time conv (8-aligned)
NV_F = (L_F1P, L_F2, L_F3)                # valid input rows fed to each freq conv

# Static asserts tying the padded row budgets to the derived valid lengths
# (review correctness concern #1): padded "garbage" rows never reach a valid
# pooled output, and every in-kernel slice stays inside its buffer.
assert L_T1P <= 64                                   # pooled time act fits 64 rows
assert MT[0] + 7 <= 64 and MT[1] + 7 <= MT[0] and MT[2] + 7 <= MT[1]
assert MT[0] >= L_T2 and MT[1] >= L_T3 and MT[2] >= L_T4
assert 4 * N_TOUT <= MT[2] and 4 * N_TOUT <= L_T4    # final time pool only valid rows
assert L_F1P <= 16 and 2 * N_FOUT <= L_F4 <= 16      # freq chain fits 16 rows
assert 2 + max(NV_F) <= 24 and 5 + 16 <= 24          # freq padded buffer bounds
assert N_TOUT + N_FOUT <= 16                         # output tile has room


# ------------------------------ fused kernel ---------------------------------

def encoder_kernel(pt_ref, pf_ref, w1t_ref, w1f_ref, wst_ref, wsf_ref,
                   sb_ref, out_ref):
    """Both branches for ONE batch element (grid axis = batch).

    pt_ref : (512, 128)     time layer-1 im2col, phase-major (row r*64 + w)
    pf_ref : (64, 512)      freq layer-1 im2col, phase-major (row r*16 + w)
    w1t_ref: (128, 128)     conv_time weight (taps x Cout, zero-padded)
    w1f_ref: (512, 128)     conv_fre  weight (taps x Cout, zero-padded)
    wst_ref: (3, 1024, 128) conv_time_{1,2,3} weights, rows = tap*128 + Cin
    wsf_ref: (3, 768, 128)  conv_fre_{1,2,3}  weights, rows = tap*128 + Cin
    sb_ref : (16, 128)      rows 0..7 fused BN scales, rows 8..15 biases
                            (order: time0..3, fre0..3)
    out_ref: (16, 128)      rows 0..9 time pooled, rows 10..14 freq, row 15 zero
    """
    f32 = jnp.float32
    sb = sb_ref[...]                     # scale/bias table, loaded once per step

    def bn_relu(y, idx):
        return jnp.maximum(y * sb[idx:idx + 1, :] + sb[8 + idx:9 + idx, :], 0.0)

    def conv_im2col(x, w_flat, k, m_out):
        # stride-1 valid conv: fold the k taps into the contraction (K = k*128)
        # -> one MXU dot per layer instead of k accumulated K=128 dots.
        lhs = jnp.concatenate([x[t:t + m_out, :] for t in range(k)], axis=1)
        return jnp.dot(lhs, w_flat, preferred_element_type=f32)

    # ------------------------------ time branch -----------------------------
    # conv_time + BN + ReLU over all 8 pool phases in ONE (512x128)x(128x128)
    # matmul, then MaxPool1d(8) as an elementwise max of the 8 phase slabs
    # (each slab is a 64-row, tile-aligned slice -> no relayout).
    h = bn_relu(jnp.dot(pt_ref[...], w1t_ref[...], preferred_element_type=f32), 0)
    p1 = h[0:64, :]
    for r in range(1, 8):
        p1 = jnp.maximum(p1, h[64 * r:64 * (r + 1), :])           # (64, 128)

    y = bn_relu(conv_im2col(p1, wst_ref[0], 8, MT[0]), 1)          # valid rows < 54
    y = bn_relu(conv_im2col(y, wst_ref[1], 8, MT[1]), 2)           # valid rows < 47
    y = bn_relu(conv_im2col(y, wst_ref[2], 8, MT[2]), 3)           # valid rows < 40
    t_rows = [jnp.max(y[4 * w:4 * w + 4, :], axis=0, keepdims=True)
              for w in range(N_TOUT)]                              # MaxPool1d(4)

    # ---------------------------- frequency branch --------------------------
    h = bn_relu(jnp.dot(pf_ref[...], w1f_ref[...], preferred_element_type=f32), 4)
    p2 = h[0:16, :]
    for r in range(1, 4):
        p2 = jnp.maximum(p2, h[16 * r:16 * (r + 1), :])            # (16, 128)

    def padded_conv(x, layer, n_valid):
        # conv (K=6, padding=2): zero the stale rows >= n_valid, surround with
        # zero padding in registers, then one (16 x 768) x (768 x 128) dot.
        row = jax.lax.broadcasted_iota(jnp.int32, (16, 128), 0)
        xm = jnp.where(row < n_valid, x, 0.0)
        xz = jnp.concatenate([jnp.zeros((2, 128), f32), xm,
                              jnp.zeros((6, 128), f32)], axis=0)   # (24, 128)
        lhs = jnp.concatenate([xz[t:t + 16, :] for t in range(6)], axis=1)
        return jnp.dot(lhs, wsf_ref[layer], preferred_element_type=f32)

    y = bn_relu(padded_conv(p2, 0, NV_F[0]), 5)                    # valid rows < 12
    y = bn_relu(padded_conv(y, 1, NV_F[1]), 6)                     # valid rows < 11
    y = bn_relu(padded_conv(y, 2, NV_F[2]), 7)                     # valid rows < 10
    f_rows = [jnp.max(y[2 * w:2 * w + 2, :], axis=0, keepdims=True)
              for w in range(N_FOUT)]                              # MaxPool1d(2)

    # One lane-dense, unmasked (16, 128) store per grid step.
    out_ref[...] = jnp.concatenate(
        t_rows + f_rows + [jnp.zeros((1, 128), f32)], axis=0)


# ------------------------------ wrapper --------------------------------------

def _build_time_patches(x):
    # x: (B, 3000) -> (B, 512, 128) phase-major im2col for conv_time
    # (kernel 50, stride 6) fused with MaxPool1d(8).  Row r*64 + w holds the
    # window starting at sample 6*(8w + r); taps zero-padded 54 -> 128.
    B = x.shape[0]
    xt = jnp.pad(x, ((0, 0), (0, 120)))                           # (B, 3120) = 520*6
    xr = xt.reshape(B, 520, 6)
    cols = jnp.concatenate([xr[:, j:j + 512, :] for j in range(9)], axis=-1)
    cols = jnp.pad(cols, ((0, 0), (0, 0), (0, 128 - 54)))         # (B, 512, 128)
    return cols.reshape(B, 64, 8, 128).transpose(0, 2, 1, 3).reshape(B, 512, 128)


def _build_freq_patches(x):
    # x: (B, 3000) -> (B, 64, 512) phase-major im2col for conv_fre
    # (kernel 400, stride 50, padding 2) fused with MaxPool1d(4).  Row r*16 + w
    # holds the window for conv position 4w + r; taps zero-padded 400 -> 512.
    B = x.shape[0]
    xp = jnp.pad(x, ((0, 0), (2, 548)))                           # (B, 3550) = 71*50
    xr = xp.reshape(B, 71, 50)
    cols = jnp.concatenate([xr[:, j:j + 64, :] for j in range(8)], axis=-1)
    cols = jnp.pad(cols, ((0, 0), (0, 0), (0, 512 - 400)))        # (B, 64, 512)
    return cols.reshape(B, 16, 4, 512).transpose(0, 2, 1, 3).reshape(B, 64, 512)


def pack_params(params, eps=1e-5):
    # Static inference-time packing (call ONCE, outside jit): fold conv bias +
    # BatchNorm(eval) into per-channel scale/bias; put conv weights into
    # (tap*Cin, Cout) matmul layout; zero-pad 64-channel layers to 128.
    def fold(conv_name, bn_name, pad_out):
        _, b_conv = params[conv_name]
        g, be, m, v = params[bn_name]
        s = g / jnp.sqrt(v + eps)
        b = (b_conv - m) * s + be
        if pad_out:                       # padded channels stay exactly 0
            s = jnp.pad(s, (0, 64))
            b = jnp.pad(b, (0, 64))
        return s, b

    w_t, _ = params['conv_time']                          # (64, 1, 50)
    w1t = jnp.pad(w_t[:, 0, :].T, ((0, 78), (0, 64)))     # (128, 128)
    w_f, _ = params['conv_fre']                           # (64, 1, 400)
    w1f = jnp.pad(w_f[:, 0, :].T, ((0, 112), (0, 64)))    # (512, 128)

    def stride1(name, pad_in, k):
        w, _ = params[name]                               # (128, Cin, k)
        w = jnp.transpose(w, (2, 1, 0))                   # (k, Cin, 128)
        if pad_in:
            w = jnp.pad(w, ((0, 0), (0, 64), (0, 0)))
        return w.reshape(k * 128, 128)                    # rows = tap*128 + Cin

    wst = jnp.stack([stride1('conv_time_1', True, 8),
                     stride1('conv_time_2', False, 8),
                     stride1('conv_time_3', False, 8)])   # (3, 1024, 128)
    wsf = jnp.stack([stride1('conv_fre_1', True, 6),
                     stride1('conv_fre_2', False, 6),
                     stride1('conv_fre_3', False, 6)])    # (3, 768, 128)

    pairs = [fold('conv_time', 'bn_time', True),
             fold('conv_time_1', 'bn_time_1', False),
             fold('conv_time_2', 'bn_time_2', False),
             fold('conv_time_3', 'bn_time_3', False),
             fold('conv_fre', 'bn_fre', True),
             fold('conv_fre_1', 'bn_fre_1', False),
             fold('conv_fre_2', 'bn_fre_2', False),
             fold('conv_fre_3', 'bn_fre_3', False)]
    sb = jnp.concatenate([jnp.stack([p[0] for p in pairs]),
                          jnp.stack([p[1] for p in pairs])], axis=0)  # (16, 128)
    return dict(w1t=w1t, w1f=w1f, wst=wst, wsf=wsf, sb=sb)


def encoder_forward(packed, inputs):
    # inputs: (B, 1, 3000) NCL, same as the PyTorch module.
    assert inputs.shape[1] == 1 and inputs.shape[2] == L_IN, inputs.shape
    B = inputs.shape[0]
    x = inputs[:, 0, :].astype(jnp.float32)
    pt = _build_time_patches(x)                           # (B, 512, 128)
    pf = _build_freq_patches(x)                           # (B,  64, 512)

    out = pl.pallas_call(
        encoder_kernel,
        out_shape=jax.ShapeDtypeStruct((B, 16, 128), jnp.float32),
        grid=(B,),                                        # batch-parallel grid
        in_specs=[
            pl.BlockSpec((None, 512, 128), lambda b: (b, 0, 0)),
            pl.BlockSpec((None, 64, 512), lambda b: (b, 0, 0)),
            pl.BlockSpec((128, 128), lambda b: (0, 0)),
            pl.BlockSpec((512, 128), lambda b: (0, 0)),
            pl.BlockSpec((3, 1024, 128), lambda b: (0, 0, 0)),
            pl.BlockSpec((3, 768, 128), lambda b: (0, 0, 0)),
            pl.BlockSpec((16, 128), lambda b: (0, 0)),
        ],
        out_specs=pl.BlockSpec((None, 16, 128), lambda b: (b, 0, 0)),
        compiler_params=pltpu.CompilerParams(
            dimension_semantics=("parallel",),            # v7x: batch across cores
            vmem_limit_bytes=16 * 1024 * 1024),           # real footprint ~7 MiB
    )(pt, pf, packed['w1t'], packed['w1f'], packed['wst'], packed['wsf'],
      packed['sb'])

    xcat = out[:, :N_TOUT + N_FOUT, :]                    # (B, 15, 128)
    # dropout_time / dropout_fre / dp: identity (eval mode).
    # Keep the module's (B, 128, 15) output layout (lane-sparse, but required
    # to match torch.cat((x1, x2), dim=-1) semantics).
    return jnp.transpose(xcat, (0, 2, 1))


# ------------------------------ parameters ----------------------------------

def init_params(key):
    def conv(k, c_out, c_in, ksz):
        kw, kb = jax.random.split(k)
        w = jax.random.normal(kw, (c_out, c_in, ksz), jnp.float32) * 0.05
        b = jax.random.normal(kb, (c_out,), jnp.float32) * 0.05
        return w, b

    def bn(k, c):
        k1, k2, k3, k4 = jax.random.split(k, 4)
        gamma = 1.0 + 0.1 * jax.random.normal(k1, (c,), jnp.float32)
        beta = 0.1 * jax.random.normal(k2, (c,), jnp.float32)
        mean = 0.1 * jax.random.normal(k3, (c,), jnp.float32)
        var = 1.0 + 0.1 * jax.random.uniform(k4, (c,), jnp.float32)
        return gamma, beta, mean, var

    ks = jax.random.split(key, 16)
    p = {}
    p['conv_time'] = conv(ks[0], 64, 1, 50)      # kernel=fs/2=50, stride=fs/16=6
    p['bn_time'] = bn(ks[1], 64)
    p['conv_time_1'] = conv(ks[2], 128, 64, 8)
    p['bn_time_1'] = bn(ks[3], 128)
    p['conv_time_2'] = conv(ks[4], 128, 128, 8)
    p['bn_time_2'] = bn(ks[5], 128)
    p['conv_time_3'] = conv(ks[6], 128, 128, 8)
    p['bn_time_3'] = bn(ks[7], 128)
    p['conv_fre'] = conv(ks[8], 64, 1, 400)      # kernel=fs*4=400, stride=fs/2=50
    p['bn_fre'] = bn(ks[9], 64)
    p['conv_fre_1'] = conv(ks[10], 128, 64, 6)
    p['bn_fre_1'] = bn(ks[11], 128)
    p['conv_fre_2'] = conv(ks[12], 128, 128, 6)
    p['bn_fre_2'] = bn(ks[13], 128)
    p['conv_fre_3'] = conv(ks[14], 128, 128, 6)
    p['bn_fre_3'] = bn(ks[15], 128)
    return p


# ---------------------- pure-JAX reference (for checking) --------------------

def ref_forward(params, inputs):
    eps = 1e-5

    def conv(x, name, stride=1, padding=0):
        w, b = params[name]
        y = jax.lax.conv_general_dilated(
            x, w, (stride,), [(padding, padding)],
            dimension_numbers=('NCH', 'OIH', 'NCH'))
        return y + b[None, :, None]

    def bnrelu(x, name):
        g, be, m, v = params[name]
        y = (x - m[None, :, None]) / jnp.sqrt(v + eps)[None, :, None]
        y = y * g[None, :, None] + be[None, :, None]
        return jnp.maximum(y, 0.0)

    def pool(x, k):
        B, C, L = x.shape
        n = L // k
        return x[:, :, :n * k].reshape(B, C, n, k).max(axis=-1)

    x1 = pool(bnrelu(conv(inputs, 'conv_time', stride=6), 'bn_time'), 8)
    x1 = bnrelu(conv(x1, 'conv_time_1'), 'bn_time_1')
    x1 = bnrelu(conv(x1, 'conv_time_2'), 'bn_time_2')
    x1 = bnrelu(conv(x1, 'conv_time_3'), 'bn_time_3')
    x1 = pool(x1, 4)
    x2 = pool(bnrelu(conv(inputs, 'conv_fre', stride=50, padding=2), 'bn_fre'), 4)
    x2 = bnrelu(conv(x2, 'conv_fre_1', padding=2), 'bn_fre_1')
    x2 = bnrelu(conv(x2, 'conv_fre_2', padding=2), 'bn_fre_2')
    x2 = bnrelu(conv(x2, 'conv_fre_3', padding=2), 'bn_fre_3')
    x2 = pool(x2, 2)
    return jnp.concatenate([x1, x2], axis=-1)              # (B, 128, 15)


if __name__ == "__main__":
    key = jax.random.PRNGKey(0)
    kp, kx = jax.random.split(key)
    params = init_params(kp)
    # input_size=3000 is baked into the conv geometry (kernel 400, stride 50),
    # so the "small" shape is batch=2, channels=1, seq=3000.
    inputs = jax.random.normal(kx, (2, 1, 3000), jnp.float32)

    packed = pack_params(params)          # static weight packing, once, un-jitted
    fwd = jax.jit(encoder_forward)
    out = jax.block_until_ready(fwd(packed, inputs))
    assert out.shape == (2, 128, 15), out.shape

    ref = ref_forward(params, inputs)
    np.testing.assert_allclose(np.asarray(out), np.asarray(ref),
                               rtol=1e-3, atol=1e-3)
    print("KERNEL_OK")
</pallas_src>

<mosaic_0001>
module attributes {stable_mosaic.version = 11 : i64} {
  func.func @encoder_kernel(%arg0: i32, %arg1: memref<1x512x128xf32, #tpu.memory_space<vmem>>, %arg2: memref<1x64x512xf32, #tpu.memory_space<vmem>>, %arg3: memref<128x128xf32, #tpu.memory_space<vmem>>, %arg4: memref<512x128xf32, #tpu.memory_space<vmem>>, %arg5: memref<3x1024x128xf32, #tpu.memory_space<vmem>>, %arg6: memref<3x768x128xf32, #tpu.memory_space<vmem>>, %arg7: memref<16x128xf32, #tpu.memory_space<vmem>>, %arg8: memref<1x16x128xf32, #tpu.memory_space<vmem>>) attributes {dimension_semantics = [#tpu.dimension_semantics<parallel>], iteration_bounds = array<i64: 2>, scalar_prefetch = 0 : i64, scratch_operands = 0 : i64, tpu.core_type = #tpu.core_type<tc>, window_params = [{transform_indices = @transform_0, window_bounds = array<i64: 1, 512, 128>}, {transform_indices = @transform_1, window_bounds = array<i64: 1, 64, 512>}, {pipeline_mode = #tpu.pipeline_mode<synchronous>, transform_indices = @transform_2, window_bounds = array<i64: 128, 128>}, {pipeline_mode = #tpu.pipeline_mode<synchronous>, transform_indices = @transform_3, window_bounds = array<i64: 512, 128>}, {pipeline_mode = #tpu.pipeline_mode<synchronous>, transform_indices = @transform_4, window_bounds = array<i64: 3, 1024, 128>}, {pipeline_mode = #tpu.pipeline_mode<synchronous>, transform_indices = @transform_5, window_bounds = array<i64: 3, 768, 128>}, {pipeline_mode = #tpu.pipeline_mode<synchronous>, transform_indices = @transform_6, window_bounds = array<i64: 16, 128>}, {transform_indices = @transform_7, window_bounds = array<i64: 1, 16, 128>}]} {
    %c0 = arith.constant 0 : index
    %c0_0 = arith.constant 0 : index
    %0 = vector.load %arg7[%c0, %c0_0] : memref<16x128xf32, #tpu.memory_space<vmem>>, vector<16x128xf32>
    %c0_1 = arith.constant 0 : index
    %c0_2 = arith.constant 0 : index
    %c0_3 = arith.constant 0 : index
    %1 = vector.load %arg1[%c0_1, %c0_2, %c0_3] : memref<1x512x128xf32, #tpu.memory_space<vmem>>, vector<1x512x128xf32>
    %2 = vector.shape_cast %1 : vector<1x512x128xf32> to vector<512x128xf32>
    %c0_4 = arith.constant 0 : index
    %c0_5 = arith.constant 0 : index
    %3 = vector.load %arg3[%c0_4, %c0_5] : memref<128x128xf32, #tpu.memory_space<vmem>>, vector<128x128xf32>
    %cst = arith.constant dense<0.000000e+00> : vector<512x128xf32>
    %4 = tpu.matmul %2, %3, %cst {dimension_numbers = #tpu.dot_dimension_numbers<[1], [0], [0], [1], [0, 0, 1, 1], [], []>} : vector<512x128xf32>, vector<128x128xf32>, vector<512x128xf32> -> vector<512x128xf32>
    %5 = vector.extract_strided_slice %0 {offsets = [0, 0], sizes = [1, 128], strides = [1, 1]} : vector<16x128xf32> to vector<1x128xf32>
    %6 = vector.broadcast %5 : vector<1x128xf32> to vector<512x128xf32>
    %7 = arith.mulf %4, %6 : vector<512x128xf32>
    %8 = vector.extract_strided_slice %0 {offsets = [8, 0], sizes = [1, 128], strides = [1, 1]} : vector<16x128xf32> to vector<1x128xf32>
    %9 = vector.broadcast %8 : vector<1x128xf32> to vector<512x128xf32>
    %10 = arith.addf %7, %9 : vector<512x128xf32>
    %cst_6 = arith.constant 0.000000e+00 : f32
    %11 = vector.broadcast %cst_6 : f32 to vector<512x128xf32>
    %12 = arith.maximumf %10, %11 : vector<512x128xf32>
    %13 = vector.extract_strided_slice %12 {offsets = [0, 0], sizes = [64, 128], strides = [1, 1]} : vector<512x128xf32> to vector<64x128xf32>
    %14 = vector.extract_strided_slice %12 {offsets = [64, 0], sizes = [64, 128], strides = [1, 1]} : vector<512x128xf32> to vector<64x128xf32>
    %15 = arith.maximumf %13, %14 : vector<64x128xf32>
    %16 = vector.extract_strided_slice %12 {offsets = [128, 0], sizes = [64, 128], strides = [1, 1]} : vector<512x128xf32> to vector<64x128xf32>
    %17 = arith.maximumf %15, %16 : vector<64x128xf32>
    %18 = vector.extract_strided_slice %12 {offsets = [192, 0], sizes = [64, 128], strides = [1, 1]} : vector<512x128xf32> to vector<64x128xf32>
    %19 = arith.maximumf %17, %18 : vector<64x128xf32>
    %20 = vector.extract_strided_slice %12 {offsets = [256, 0], sizes = [64, 128], strides = [1, 1]} : vector<512x128xf32> to vector<64x128xf32>
    %21 = arith.maximumf %19, %20 : vector<64x128xf32>
    %22 = vector.extract_strided_slice %12 {offsets = [320, 0], sizes = [64, 128], strides = [1, 1]} : vector<512x128xf32> to vector<64x128xf32>
    %23 = arith.maximumf %21, %22 : vector<64x128xf32>
    %24 = vector.extract_strided_slice %12 {offsets = [384, 0], sizes = [64, 128], strides = [1, 1]} : vector<512x128xf32> to vector<64x128xf32>
    %25 = arith.maximumf %23, %24 : vector<64x128xf32>
    %26 = vector.extract_strided_slice %12 {offsets = [448, 0], sizes = [64, 128], strides = [1, 1]} : vector<512x128xf32> to vector<64x128xf32>
    %27 = arith.maximumf %25, %26 : vector<64x128xf32>
    %c0_7 = arith.constant 0 : index
    %c0_8 = arith.constant 0 : index
    %c0_9 = arith.constant 0 : index
    %28 = vector.load %arg5[%c0_7, %c0_8, %c0_9] : memref<3x1024x128xf32, #tpu.memory_space<vmem>>, vector<1x1024x128xf32>
    %29 = vector.shape_cast %28 : vector<1x1024x128xf32> to vector<1024x128xf32>
    %30 = vector.extract_strided_slice %27 {offsets = [0, 0], sizes = [56, 128], strides = [1, 1]} : vector<64x128xf32> to vector<56x128xf32>
    %31 = vector.extract_strided_slice %27 {offsets = [1, 0], sizes = [56, 128], strides = [1, 1]} : vector<64x128xf32> to vector<56x128xf32>
    %32 = vector.extract_strided_slice %27 {offsets = [2, 0], sizes = [56, 128], strides = [1, 1]} : vector<64x128xf32> to vector<56x128xf32>
    %33 = vector.extract_strided_slice %27 {offsets = [3, 0], sizes = [56, 128], strides = [1, 1]} : vector<64x128xf32> to vector<56x128xf32>
    %34 = vector.extract_strided_slice %27 {offsets = [4, 0], sizes = [56, 128], strides = [1, 1]} : vector<64x128xf32> to vector<56x128xf32>
    %35 = vector.extract_strided_slice %27 {offsets = [5, 0], sizes = [56, 128], strides = [1, 1]} : vector<64x128xf32> to vector<56x128xf32>
    %36 = vector.extract_strided_slice %27 {offsets = [6, 0], sizes = [56, 128], strides = [1, 1]} : vector<64x128xf32> to vector<56x128xf32>
    %37 = vector.extract_strided_slice %27 {offsets = [7, 0], sizes = [56, 128], strides = [1, 1]} : vector<64x128xf32> to vector<56x128xf32>
    %38 = tpu.concatenate %30, %31, %32, %33, %34, %35, %36, %37 in 1 : vector<56x128xf32>, vector<56x128xf32>, vector<56x128xf32>, vector<56x128xf32>, vector<56x128xf32>, vector<56x128xf32>, vector<56x128xf32>, vector<56x128xf32> -> vector<56x1024xf32>
    %cst_10 = arith.constant dense<0.000000e+00> : vector<56x128xf32>
    %39 = tpu.matmul %38, %29, %cst_10 {dimension_numbers = #tpu.dot_dimension_numbers<[1], [0], [0], [1], [0, 0, 1, 1], [], []>} : vector<56x1024xf32>, vector<1024x128xf32>, vector<56x128xf32> -> vector<56x128xf32>
    %40 = vector.extract_strided_slice %0 {offsets = [1, 0], sizes = [1, 128], strides = [1, 1]} : vector<16x128xf32> to vector<1x128xf32>
    %41 = vector.broadcast %40 : vector<1x128xf32> to vector<56x128xf32>
    %42 = arith.mulf %39, %41 : vector<56x128xf32>
    %43 = vector.extract_strided_slice %0 {offsets = [9, 0], sizes = [1, 128], strides = [1, 1]} : vector<16x128xf32> to vector<1x128xf32>
    %44 = vector.broadcast %43 : vector<1x128xf32> to vector<56x128xf32>
    %45 = arith.addf %42, %44 : vector<56x128xf32>
    %cst_11 = arith.constant 0.000000e+00 : f32
    %46 = vector.broadcast %cst_11 : f32 to vector<56x128xf32>
    %47 = arith.maximumf %45, %46 : vector<56x128xf32>
    %c1 = arith.constant 1 : index
    %c0_12 = arith.constant 0 : index
    %c0_13 = arith.constant 0 : index
    %48 = vector.load %arg5[%c1, %c0_12, %c0_13] : memref<3x1024x128xf32, #tpu.memory_space<vmem>>, vector<1x1024x128xf32>
    %49 = vector.shape_cast %48 : vector<1x1024x128xf32> to vector<1024x128xf32>
    %50 = vector.extract_strided_slice %47 {offsets = [0, 0], sizes = [48, 128], strides = [1, 1]} : vector<56x128xf32> to vector<48x128xf32>
    %51 = vector.extract_strided_slice %47 {offsets = [1, 0], sizes = [48, 128], strides = [1, 1]} : vector<56x128xf32> to vector<48x128xf32>
    %52 = vector.extract_strided_slice %47 {offsets = [2, 0], sizes = [48, 128], strides = [1, 1]} : vector<56x128xf32> to vector<48x128xf32>
    %53 = vector.extract_strided_slice %47 {offsets = [3, 0], sizes = [48, 128], strides = [1, 1]} : vector<56x128xf32> to vector<48x128xf32>
    %54 = vector.extract_strided_slice %47 {offsets = [4, 0], sizes = [48, 128], strides = [1, 1]} : vector<56x128xf32> to vector<48x128xf32>
    %55 = vector.extract_strided_slice %47 {offsets = [5, 0], sizes = [48, 128], strides = [1, 1]} : vector<56x128xf32> to vector<48x128xf32>
    %56 = vector.extract_strided_slice %47 {offsets = [6, 0], sizes = [48, 128], strides = [1, 1]} : vector<56x128xf32> to vector<48x128xf32>
    %57 = vector.extract_strided_slice %47 {offsets = [7, 0], sizes = [48, 128], strides = [1, 1]} : vector<56x128xf32> to vector<48x128xf32>
    %58 = tpu.concatenate %50, %51, %52, %53, %54, %55, %56, %57 in 1 : vector<48x128xf32>, vector<48x128xf32>, vector<48x128xf32>, vector<48x128xf32>, vector<48x128xf32>, vector<48x128xf32>, vector<48x128xf32>, vector<48x128xf32> -> vector<48x1024xf32>
    %cst_14 = arith.constant dense<0.000000e+00> : vector<48x128xf32>
    %59 = tpu.matmul %58, %49, %cst_14 {dimension_numbers = #tpu.dot_dimension_numbers<[1], [0], [0], [1], [0, 0, 1, 1], [], []>} : vector<48x1024xf32>, vector<1024x128xf32>, vector<48x128xf32> -> vector<48x128xf32>
    %60 = vector.extract_strided_slice %0 {offsets = [2, 0], sizes = [1, 128], strides = [1, 1]} : vector<16x128xf32> to vector<1x128xf32>
    %61 = vector.broadcast %60 : vector<1x128xf32> to vector<48x128xf32>
    %62 = arith.mulf %59, %61 : vector<48x128xf32>
    %63 = vector.extract_strided_slice %0 {offsets = [10, 0], sizes = [1, 128], strides = [1, 1]} : vector<16x128xf32> to vector<1x128xf32>
    %64 = vector.broadcast %63 : vector<1x128xf32> to vector<48x128xf32>
    %65 = arith.addf %62, %64 : vector<48x128xf32>
    %cst_15 = arith.constant 0.000000e+00 : f32
    %66 = vector.broadcast %cst_15 : f32 to vector<48x128xf32>
    %67 = arith.maximumf %65, %66 : vector<48x128xf32>
    %c2 = arith.constant 2 : index
    %c0_16 = arith.constant 0 : index
    %c0_17 = arith.constant 0 : index
    %68 = vector.load %arg5[%c2, %c0_16, %c0_17] : memref<3x1024x128xf32, #tpu.memory_space<vmem>>, vector<1x1024x128xf32>
    %69 = vector.shape_cast %68 : vector<1x1024x128xf32> to vector<1024x128xf32>
    %70 = vector.extract_strided_slice %67 {offsets = [0, 0], sizes = [40, 128], strides = [1, 1]} : vector<48x128xf32> to vector<40x128xf32>
    %71 = vector.extract_strided_slice %67 {offsets = [1, 0], sizes = [40, 128], strides = [1, 1]} : vector<48x128xf32> to vector<40x128xf32>
    %72 = vector.extract_strided_slice %67 {offsets = [2, 0], sizes = [40, 128], strides = [1, 1]} : vector<48x128xf32> to vector<40x128xf32>
    %73 = vector.extract_strided_slice %67 {offsets = [3, 0], sizes = [40, 128], strides = [1, 1]} : vector<48x128xf32> to vector<40x128xf32>
    %74 = vector.extract_strided_slice %67 {offsets = [4, 0], sizes = [40, 128], strides = [1, 1]} : vector<48x128xf32> to vector<40x128xf32>
    %75 = vector.extract_strided_slice %67 {offsets = [5, 0], sizes = [40, 128], strides = [1, 1]} : vector<48x128xf32> to vector<40x128xf32>
    %76 = vector.extract_strided_slice %67 {offsets = [6, 0], sizes = [40, 128], strides = [1, 1]} : vector<48x128xf32> to vector<40x128xf32>
    %77 = vector.extract_strided_slice %67 {offsets = [7, 0], sizes = [40, 128], strides = [1, 1]} : vector<48x128xf32> to vector<40x128xf32>
    %78 = tpu.concatenate %70, %71, %72, %73, %74, %75, %76, %77 in 1 : vector<40x128xf32>, vector<40x128xf32>, vector<40x128xf32>, vector<40x128xf32>, vector<40x128xf32>, vector<40x128xf32>, vector<40x128xf32>, vector<40x128xf32> -> vector<40x1024xf32>
    %cst_18 = arith.constant dense<0.000000e+00> : vector<40x128xf32>
    %79 = tpu.matmul %78, %69, %cst_18 {dimension_numbers = #tpu.dot_dimension_numbers<[1], [0], [0], [1], [0, 0, 1, 1], [], []>} : vector<40x1024xf32>, vector<1024x128xf32>, vector<40x128xf32> -> vector<40x128xf32>
    %80 = vector.extract_strided_slice %0 {offsets = [3, 0], sizes = [1, 128], strides = [1, 1]} : vector<16x128xf32> to vector<1x128xf32>
    %81 = vector.broadcast %80 : vector<1x128xf32> to vector<40x128xf32>
    %82 = arith.mulf %79, %81 : vector<40x128xf32>
    %83 = vector.extract_strided_slice %0 {offsets = [11, 0], sizes = [1, 128], strides = [1, 1]} : vector<16x128xf32> to vector<1x128xf32>
    %84 = vector.broadcast %83 : vector<1x128xf32> to vector<40x128xf32>
    %85 = arith.addf %82, %84 : vector<40x128xf32>
    %cst_19 = arith.constant 0.000000e+00 : f32
    %86 = vector.broadcast %cst_19 : f32 to vector<40x128xf32>
    %87 = arith.maximumf %85, %86 : vector<40x128xf32>
    %88 = vector.extract_strided_slice %87 {offsets = [0, 0], sizes = [4, 128], strides = [1, 1]} : vector<40x128xf32> to vector<4x128xf32>
    %cst_20 = arith.constant dense<0xFF800000> : vector<128xf32>
    %89 = vector.multi_reduction <maximumf>, %88, %cst_20 [0] : vector<4x128xf32> to vector<128xf32>
    %90 = vector.shape_cast %89 : vector<128xf32> to vector<1x128xf32>
    %91 = vector.extract_strided_slice %87 {offsets = [4, 0], sizes = [4, 128], strides = [1, 1]} : vector<40x128xf32> to vector<4x128xf32>
    %cst_21 = arith.constant dense<0xFF800000> : vector<128xf32>
    %92 = vector.multi_reduction <maximumf>, %91, %cst_21 [0] : vector<4x128xf32> to vector<128xf32>
    %93 = vector.shape_cast %92 : vector<128xf32> to vector<1x128xf32>
    %94 = vector.extract_strided_slice %87 {offsets = [8, 0], sizes = [4, 128], strides = [1, 1]} : vector<40x128xf32> to vector<4x128xf32>
    %cst_22 = arith.constant dense<0xFF800000> : vector<128xf32>
    %95 = vector.multi_reduction <maximumf>, %94, %cst_22 [0] : vector<4x128xf32> to vector<128xf32>
    %96 = vector.shape_cast %95 : vector<128xf32> to vector<1x128xf32>
    %97 = vector.extract_strided_slice %87 {offsets = [12, 0], sizes = [4, 128], strides = [1, 1]} : vector<40x128xf32> to vector<4x128xf32>
    %cst_23 = arith.constant dense<0xFF800000> : vector<128xf32>
    %98 = vector.multi_reduction <maximumf>, %97, %cst_23 [0] : vector<4x128xf32> to vector<128xf32>
    %99 = vector.shape_cast %98 : vector<128xf32> to vector<1x128xf32>
    %100 = vector.extract_strided_slice %87 {offsets = [16, 0], sizes = [4, 128], strides = [1, 1]} : vector<40x128xf32> to vector<4x128xf32>
    %cst_24 = arith.constant dense<0xFF800000> : vector<128xf32>
    %101 = vector.multi_reduction <maximumf>, %100, %cst_24 [0] : vector<4x128xf32> to vector<128xf32>
    %102 = vector.shape_cast %101 : vector<128xf32> to vector<1x128xf32>
    %103 = vector.extract_strided_slice %87 {offsets = [20, 0], sizes = [4, 128], strides = [1, 1]} : vector<40x128xf32> to vector<4x128xf32>
    %cst_25 = arith.constant dense<0xFF800000> : vector<128xf32>
    %104 = vector.multi_reduction <maximumf>, %103, %cst_25 [0] : vector<4x128xf32> to vector<128xf32>
    %105 = vector.shape_cast %104 : vector<128xf32> to vector<1x128xf32>
    %106 = vector.extract_strided_slice %87 {offsets = [24, 0], sizes = [4, 128], strides = [1, 1]} : vector<40x128xf32> to vector<4x128xf32>
    %cst_26 = arith.constant dense<0xFF800000> : vector<128xf32>
    %107 = vector.multi_reduction <maximumf>, %106, %cst_26 [0] : vector<4x128xf32> to vector<128xf32>
    %108 = vector.shape_cast %107 : vector<128xf32> to vector<1x128xf32>
    %109 = vector.extract_strided_slice %87 {offsets = [28, 0], sizes = [4, 128], strides = [1, 1]} : vector<40x128xf32> to vector<4x128xf32>
    %cst_27 = arith.constant dense<0xFF800000> : vector<128xf32>
    %110 = vector.multi_reduction <maximumf>, %109, %cst_27 [0] : vector<4x128xf32> to vector<128xf32>
    %111 = vector.shape_cast %110 : vector<128xf32> to vector<1x128xf32>
    %112 = vector.extract_strided_slice %87 {offsets = [32, 0], sizes = [4, 128], strides = [1, 1]} : vector<40x128xf32> to vector<4x128xf32>
    %cst_28 = arith.constant dense<0xFF800000> : vector<128xf32>
    %113 = vector.multi_reduction <maximumf>, %112, %cst_28 [0] : vector<4x128xf32> to vector<128xf32>
    %114 = vector.shape_cast %113 : vector<128xf32> to vector<1x128xf32>
    %115 = vector.extract_strided_slice %87 {offsets = [36, 0], sizes = [4, 128], strides = [1, 1]} : vector<40x128xf32> to vector<4x128xf32>
    %cst_29 = arith.constant dense<0xFF800000> : vector<128xf32>
    %116 = vector.multi_reduction <maximumf>, %115, %cst_29 [0] : vector<4x128xf32> to vector<128xf32>
    %117 = vector.shape_cast %116 : vector<128xf32> to vector<1x128xf32>
    %c0_30 = arith.constant 0 : index
    %c0_31 = arith.constant 0 : index
    %c0_32 = arith.constant 0 : index
    %118 = vector.load %arg2[%c0_30, %c0_31, %c0_32] : memref<1x64x512xf32, #tpu.memory_space<vmem>>, vector<1x64x512xf32>
    %119 = vector.shape_cast %118 : vector<1x64x512xf32> to vector<64x512xf32>
    %c0_33 = arith.constant 0 : index
    %c0_34 = arith.constant 0 : index
    %120 = vector.load %arg4[%c0_33, %c0_34] : memref<512x128xf32, #tpu.memory_space<vmem>>, vector<512x128xf32>
    %cst_35 = arith.constant dense<0.000000e+00> : vector<64x128xf32>
    %121 = tpu.matmul %119, %120, %cst_35 {dimension_numbers = #tpu.dot_dimension_numbers<[1], [0], [0], [1], [0, 0, 1, 1], [], []>} : vector<64x512xf32>, vector<512x128xf32>, vector<64x128xf32> -> vector<64x128xf32>
    %122 = vector.extract_strided_slice %0 {offsets = [4, 0], sizes = [1, 128], strides = [1, 1]} : vector<16x128xf32> to vector<1x128xf32>
    %123 = vector.broadcast %122 : vector<1x128xf32> to vector<64x128xf32>
    %124 = arith.mulf %121, %123 : vector<64x128xf32>
    %125 = vector.extract_strided_slice %0 {offsets = [12, 0], sizes = [1, 128], strides = [1, 1]} : vector<16x128xf32> to vector<1x128xf32>
    %126 = vector.broadcast %125 : vector<1x128xf32> to vector<64x128xf32>
    %127 = arith.addf %124, %126 : vector<64x128xf32>
    %cst_36 = arith.constant 0.000000e+00 : f32
    %128 = vector.broadcast %cst_36 : f32 to vector<64x128xf32>
    %129 = arith.maximumf %127, %128 : vector<64x128xf32>
    %130 = vector.extract_strided_slice %129 {offsets = [0, 0], sizes = [16, 128], strides = [1, 1]} : vector<64x128xf32> to vector<16x128xf32>
    %131 = vector.extract_strided_slice %129 {offsets = [16, 0], sizes = [16, 128], strides = [1, 1]} : vector<64x128xf32> to vector<16x128xf32>
    %132 = arith.maximumf %130, %131 : vector<16x128xf32>
    %133 = vector.extract_strided_slice %129 {offsets = [32, 0], sizes = [16, 128], strides = [1, 1]} : vector<64x128xf32> to vector<16x128xf32>
    %134 = arith.maximumf %132, %133 : vector<16x128xf32>
    %135 = vector.extract_strided_slice %129 {offsets = [48, 0], sizes = [16, 128], strides = [1, 1]} : vector<64x128xf32> to vector<16x128xf32>
    %136 = arith.maximumf %134, %135 : vector<16x128xf32>
    %137 = tpu.iota {dimensions = array<i32: 0>} : vector<16x128xi32>
    %c13_i32 = arith.constant 13 : i32
    %138 = vector.broadcast %c13_i32 : i32 to vector<16x128xi32>
    %139 = arith.cmpi slt, %137, %138 : vector<16x128xi32>
    %cst_37 = arith.constant 0.000000e+00 : f32
    %140 = vector.broadcast %cst_37 : f32 to vector<16x128xf32>
    %141 = arith.select %139, %136, %140 : vector<16x128xi1>, vector<16x128xf32>
    %cst_38 = arith.constant 0.000000e+00 : f32
    %142 = vector.broadcast %cst_38 : f32 to vector<2x128xf32>
    %cst_39 = arith.constant 0.000000e+00 : f32
    %143 = vector.broadcast %cst_39 : f32 to vector<6x128xf32>
    %144 = tpu.concatenate %142, %141, %143 in 0 : vector<2x128xf32>, vector<16x128xf32>, vector<6x128xf32> -> vector<24x128xf32>
    %145 = vector.extract_strided_slice %144 {offsets = [0, 0], sizes = [16, 128], strides = [1, 1]} : vector<24x128xf32> to vector<16x128xf32>
    %146 = vector.extract_strided_slice %144 {offsets = [1, 0], sizes = [16, 128], strides = [1, 1]} : vector<24x128xf32> to vector<16x128xf32>
    %147 = vector.extract_strided_slice %144 {offsets = [2, 0], sizes = [16, 128], strides = [1, 1]} : vector<24x128xf32> to vector<16x128xf32>
    %148 = vector.extract_strided_slice %144 {offsets = [3, 0], sizes = [16, 128], strides = [1, 1]} : vector<24x128xf32> to vector<16x128xf32>
    %149 = vector.extract_strided_slice %144 {offsets = [4, 0], sizes = [16, 128], strides = [1, 1]} : vector<24x128xf32> to vector<16x128xf32>
    %150 = vector.extract_strided_slice %144 {offsets = [5, 0], sizes = [16, 128], strides = [1, 1]} : vector<24x128xf32> to vector<16x128xf32>
    %151 = tpu.concatenate %145, %146, %147, %148, %149, %150 in 1 : vector<16x128xf32>, vector<16x128xf32>, vector<16x128xf32>, vector<16x128xf32>, vector<16x128xf32>, vector<16x128xf32> -> vector<16x768xf32>
    %c0_40 = arith.constant 0 : index
    %c0_41 = arith.constant 0 : index
    %c0_42 = arith.constant 0 : index
    %152 = vector.load %arg6[%c0_40, %c0_41, %c0_42] : memref<3x768x128xf32, #tpu.memory_space<vmem>>, vector<1x768x128xf32>
    %153 = vector.shape_cast %152 : vector<1x768x128xf32> to vector<768x128xf32>
    %cst_43 = arith.constant dense<0.000000e+00> : vector<16x128xf32>
    %154 = tpu.matmul %151, %153, %cst_43 {dimension_numbers = #tpu.dot_dimension_numbers<[1], [0], [0], [1], [0, 0, 1, 1], [], []>} : vector<16x768xf32>, vector<768x128xf32>, vector<16x128xf32> -> vector<16x128xf32>
    %155 = vector.extract_strided_slice %0 {offsets = [5, 0], sizes = [1, 128], strides = [1, 1]} : vector<16x128xf32> to vector<1x128xf32>
    %156 = vector.broadcast %155 : vector<1x128xf32> to vector<16x128xf32>
    %157 = arith.mulf %154, %156 : vector<16x128xf32>
    %158 = vector.extract_strided_slice %0 {offsets = [13, 0], sizes = [1, 128], strides = [1, 1]} : vector<16x128xf32> to vector<1x128xf32>
    %159 = vector.broadcast %158 : vector<1x128xf32> to vector<16x128xf32>
    %160 = arith.addf %157, %159 : vector<16x128xf32>
    %cst_44 = arith.constant 0.000000e+00 : f32
    %161 = vector.broadcast %cst_44 : f32 to vector<16x128xf32>
    %162 = arith.maximumf %160, %161 : vector<16x128xf32>
    %163 = tpu.iota {dimensions = array<i32: 0>} : vector<16x128xi32>
    %c12_i32 = arith.constant 12 : i32
    %164 = vector.broadcast %c12_i32 : i32 to vector<16x128xi32>
    %165 = arith.cmpi slt, %163, %164 : vector<16x128xi32>
    %cst_45 = arith.constant 0.000000e+00 : f32
    %166 = vector.broadcast %cst_45 : f32 to vector<16x128xf32>
    %167 = arith.select %165, %162, %166 : vector<16x128xi1>, vector<16x128xf32>
    %cst_46 = arith.constant 0.000000e+00 : f32
    %168 = vector.broadcast %cst_46 : f32 to vector<2x128xf32>
    %cst_47 = arith.constant 0.000000e+00 : f32
    %169 = vector.broadcast %cst_47 : f32 to vector<6x128xf32>
    %170 = tpu.concatenate %168, %167, %169 in 0 : vector<2x128xf32>, vector<16x128xf32>, vector<6x128xf32> -> vector<24x128xf32>
    %171 = vector.extract_strided_slice %170 {offsets = [0, 0], sizes = [16, 128], strides = [1, 1]} : vector<24x128xf32> to vector<16x128xf32>
    %172 = vector.extract_strided_slice %170 {offsets = [1, 0], sizes = [16, 128], strides = [1, 1]} : vector<24x128xf32> to vector<16x128xf32>
    %173 = vector.extract_strided_slice %170 {offsets = [2, 0], sizes = [16, 128], strides = [1, 1]} : vector<24x128xf32> to vector<16x128xf32>
    %174 = vector.extract_strided_slice %170 {offsets = [3, 0], sizes = [16, 128], strides = [1, 1]} : vector<24x128xf32> to vector<16x128xf32>
    %175 = vector.extract_strided_slice %170 {offsets = [4, 0], sizes = [16, 128], strides = [1, 1]} : vector<24x128xf32> to vector<16x128xf32>
    %176 = vector.extract_strided_slice %170 {offsets = [5, 0], sizes = [16, 128], strides = [1, 1]} : vector<24x128xf32> to vector<16x128xf32>
    %177 = tpu.concatenate %171, %172, %173, %174, %175, %176 in 1 : vector<16x128xf32>, vector<16x128xf32>, vector<16x128xf32>, vector<16x128xf32>, vector<16x128xf32>, vector<16x128xf32> -> vector<16x768xf32>
    %c1_48 = arith.constant 1 : index
    %c0_49 = arith.constant 0 : index
    %c0_50 = arith.constant 0 : index
    %178 = vector.load %arg6[%c1_48, %c0_49, %c0_50] : memref<3x768x128xf32, #tpu.memory_space<vmem>>, vector<1x768x128xf32>
    %179 = vector.shape_cast %178 : vector<1x768x128xf32> to vector<768x128xf32>
    %cst_51 = arith.constant dense<0.000000e+00> : vector<16x128xf32>
    %180 = tpu.matmul %177, %179, %cst_51 {dimension_numbers = #tpu.dot_dimension_numbers<[1], [0], [0], [1], [0, 0, 1, 1], [], []>} : vector<16x768xf32>, vector<768x128xf32>, vector<16x128xf32> -> vector<16x128xf32>
    %181 = vector.extract_strided_slice %0 {offsets = [6, 0], sizes = [1, 128], strides = [1, 1]} : vector<16x128xf32> to vector<1x128xf32>
    %182 = vector.broadcast %181 : vector<1x128xf32> to vector<16x128xf32>
    %183 = arith.mulf %180, %182 : vector<16x128xf32>
    %184 = vector.extract_strided_slice %0 {offsets = [14, 0], sizes = [1, 128], strides = [1, 1]} : vector<16x128xf32> to vector<1x128xf32>
    %185 = vector.broadcast %184 : vector<1x128xf32> to vector<16x128xf32>
    %186 = arith.addf %183, %185 : vector<16x128xf32>
    %cst_52 = arith.constant 0.000000e+00 : f32
    %187 = vector.broadcast %cst_52 : f32 to vector<16x128xf32>
    %188 = arith.maximumf %186, %187 : vector<16x128xf32>
    %189 = tpu.iota {dimensions = array<i32: 0>} : vector<16x128xi32>
    %c11_i32 = arith.constant 11 : i32
    %190 = vector.broadcast %c11_i32 : i32 to vector<16x128xi32>
    %191 = arith.cmpi slt, %189, %190 : vector<16x128xi32>
    %cst_53 = arith.constant 0.000000e+00 : f32
    %192 = vector.broadcast %cst_53 : f32 to vector<16x128xf32>
    %193 = arith.select %191, %188, %192 : vector<16x128xi1>, vector<16x128xf32>
    %cst_54 = arith.constant 0.000000e+00 : f32
    %194 = vector.broadcast %cst_54 : f32 to vector<2x128xf32>
    %cst_55 = arith.constant 0.000000e+00 : f32
    %195 = vector.broadcast %cst_55 : f32 to vector<6x128xf32>
    %196 = tpu.concatenate %194, %193, %195 in 0 : vector<2x128xf32>, vector<16x128xf32>, vector<6x128xf32> -> vector<24x128xf32>
    %197 = vector.extract_strided_slice %196 {offsets = [0, 0], sizes = [16, 128], strides = [1, 1]} : vector<24x128xf32> to vector<16x128xf32>
    %198 = vector.extract_strided_slice %196 {offsets = [1, 0], sizes = [16, 128], strides = [1, 1]} : vector<24x128xf32> to vector<16x128xf32>
    %199 = vector.extract_strided_slice %196 {offsets = [2, 0], sizes = [16, 128], strides = [1, 1]} : vector<24x128xf32> to vector<16x128xf32>
    %200 = vector.extract_strided_slice %196 {offsets = [3, 0], sizes = [16, 128], strides = [1, 1]} : vector<24x128xf32> to vector<16x128xf32>
    %201 = vector.extract_strided_slice %196 {offsets = [4, 0], sizes = [16, 128], strides = [1, 1]} : vector<24x128xf32> to vector<16x128xf32>
    %202 = vector.extract_strided_slice %196 {offsets = [5, 0], sizes = [16, 128], strides = [1, 1]} : vector<24x128xf32> to vector<16x128xf32>
    %203 = tpu.concatenate %197, %198, %199, %200, %201, %202 in 1 : vector<16x128xf32>, vector<16x128xf32>, vector<16x128xf32>, vector<16x128xf32>, vector<16x128xf32>, vector<16x128xf32> -> vector<16x768xf32>
    %c2_56 = arith.constant 2 : index
    %c0_57 = arith.constant 0 : index
    %c0_58 = arith.constant 0 : index
    %204 = vector.load %arg6[%c2_56, %c0_57, %c0_58] : memref<3x768x128xf32, #tpu.memory_space<vmem>>, vector<1x768x128xf32>
    %205 = vector.shape_cast %204 : vector<1x768x128xf32> to vector<768x128xf32>
    %cst_59 = arith.constant dense<0.000000e+00> : vector<16x128xf32>
    %206 = tpu.matmul %203, %205, %cst_59 {dimension_numbers = #tpu.dot_dimension_numbers<[1], [0], [0], [1], [0, 0, 1, 1], [], []>} : vector<16x768xf32>, vector<768x128xf32>, vector<16x128xf32> -> vector<16x128xf32>
    %207 = vector.extract_strided_slice %0 {offsets = [7, 0], sizes = [1, 128], strides = [1, 1]} : vector<16x128xf32> to vector<1x128xf32>
    %208 = vector.broadcast %207 : vector<1x128xf32> to vector<16x128xf32>
    %209 = arith.mulf %206, %208 : vector<16x128xf32>
    %210 = vector.extract_strided_slice %0 {offsets = [15, 0], sizes = [1, 128], strides = [1, 1]} : vector<16x128xf32> to vector<1x128xf32>
    %211 = vector.broadcast %210 : vector<1x128xf32> to vector<16x128xf32>
    %212 = arith.addf %209, %211 : vector<16x128xf32>
    %cst_60 = arith.constant 0.000000e+00 : f32
    %213 = vector.broadcast %cst_60 : f32 to vector<16x128xf32>
    %214 = arith.maximumf %212, %213 : vector<16x128xf32>
    %215 = vector.extract_strided_slice %214 {offsets = [0, 0], sizes = [2, 128], strides = [1, 1]} : vector<16x128xf32> to vector<2x128xf32>
    %cst_61 = arith.constant dense<0xFF800000> : vector<128xf32>
    %216 = vector.multi_reduction <maximumf>, %215, %cst_61 [0] : vector<2x128xf32> to vector<128xf32>
    %217 = vector.shape_cast %216 : vector<128xf32> to vector<1x128xf32>
    %218 = vector.extract_strided_slice %214 {offsets = [2, 0], sizes = [2, 128], strides = [1, 1]} : vector<16x128xf32> to vector<2x128xf32>
    %cst_62 = arith.constant dense<0xFF800000> : vector<128xf32>
    %219 = vector.multi_reduction <maximumf>, %218, %cst_62 [0] : vector<2x128xf32> to vector<128xf32>
    %220 = vector.shape_cast %219 : vector<128xf32> to vector<1x128xf32>
    %221 = vector.extract_strided_slice %214 {offsets = [4, 0], sizes = [2, 128], strides = [1, 1]} : vector<16x128xf32> to vector<2x128xf32>
    %cst_63 = arith.constant dense<0xFF800000> : vector<128xf32>
    %222 = vector.multi_reduction <maximumf>, %221, %cst_63 [0] : vector<2x128xf32> to vector<128xf32>
    %223 = vector.shape_cast %222 : vector<128xf32> to vector<1x128xf32>
    %224 = vector.extract_strided_slice %214 {offsets = [6, 0], sizes = [2, 128], strides = [1, 1]} : vector<16x128xf32> to vector<2x128xf32>
    %cst_64 = arith.constant dense<0xFF800000> : vector<128xf32>
    %225 = vector.multi_reduction <maximumf>, %224, %cst_64 [0] : vector<2x128xf32> to vector<128xf32>
    %226 = vector.shape_cast %225 : vector<128xf32> to vector<1x128xf32>
    %227 = vector.extract_strided_slice %214 {offsets = [8, 0], sizes = [2, 128], strides = [1, 1]} : vector<16x128xf32> to vector<2x128xf32>
    %cst_65 = arith.constant dense<0xFF800000> : vector<128xf32>
    %228 = vector.multi_reduction <maximumf>, %227, %cst_65 [0] : vector<2x128xf32> to vector<128xf32>
    %229 = vector.shape_cast %228 : vector<128xf32> to vector<1x128xf32>
    %cst_66 = arith.constant 0.000000e+00 : f32
    %230 = vector.broadcast %cst_66 : f32 to vector<1x128xf32>
    %231 = tpu.concatenate %90, %93, %96, %99, %102, %105, %108, %111, %114, %117, %217, %220, %223, %226, %229, %230 in 0 : vector<1x128xf32>, vector<1x128xf32>, vector<1x128xf32>, vector<1x128xf32>, vector<1x128xf32>, vector<1x128xf32>, vector<1x128xf32>, vector<1x128xf32>, vector<1x128xf32>, vector<1x128xf32>, vector<1x128xf32>, vector<1x128xf32>, vector<1x128xf32>, vector<1x128xf32>, vector<1x128xf32>, vector<1x128xf32> -> vector<16x128xf32>
    %c0_67 = arith.constant 0 : index
    %c0_68 = arith.constant 0 : index
    %c0_69 = arith.constant 0 : index
    %232 = vector.load %arg8[%c0_67, %c0_68, %c0_69] : memref<1x16x128xf32, #tpu.memory_space<vmem>>, vector<1x16x128xf32>
    %233 = vector.shape_cast %232 : vector<1x16x128xf32> to vector<16x128xf32>
    %234 = vector.shape_cast %231 : vector<16x128xf32> to vector<1x16x128xf32>
    tpu.vector_store %arg8[%c0_67, %c0_68, %c0_69], %234 {strides = array<i32>} : memref<1x16x128xf32, #tpu.memory_space<vmem>>, vector<1x16x128xf32>,
    return
  }
  func.func @transform_0(%arg0: i32) -> (i32, i32, i32) {
    %c0_i32 = arith.constant 0 : i32
    %c0_i32_0 = arith.constant 0 : i32
    %c0_i32_1 = arith.constant 0 : i32
    return %arg0, %c0_i32, %c0_i32_0 : i32, i32, i32
  }
  func.func @transform_1(%arg0: i32) -> (i32, i32, i32) {
    %c0_i32 = arith.constant 0 : i32
    %c0_i32_0 = arith.constant 0 : i32
    %c0_i32_1 = arith.constant 0 : i32
    return %arg0, %c0_i32, %c0_i32_0 : i32, i32, i32
  }
  func.func @transform_2(%arg0: i32) -> (i32, i32) {
    %c0_i32 = arith.constant 0 : i32
    %c0_i32_0 = arith.constant 0 : i32
    %c0_i32_1 = arith.constant 0 : i32
    return %c0_i32, %c0_i32_0 : i32, i32
  }
  func.func @transform_3(%arg0: i32) -> (i32, i32) {
    %c0_i32 = arith.constant 0 : i32
    %c0_i32_0 = arith.constant 0 : i32
    %c0_i32_1 = arith.constant 0 : i32
    return %c0_i32, %c0_i32_0 : i32, i32
  }
  func.func @transform_4(%arg0: i32) -> (i32, i32, i32) {
    %c0_i32 = arith.constant 0 : i32
    %c0_i32_0 = arith.constant 0 : i32
    %c0_i32_1 = arith.constant 0 : i32
    %c0_i32_2 = arith.constant 0 : i32
    return %c0_i32, %c0_i32_0, %c0_i32_1 : i32, i32, i32
  }
  func.func @transform_5(%arg0: i32) -> (i32, i32, i32) {
    %c0_i32 = arith.constant 0 : i32
    %c0_i32_0 = arith.constant 0 : i32
    %c0_i32_1 = arith.constant 0 : i32
    %c0_i32_2 = arith.constant 0 : i32
    return %c0_i32, %c0_i32_0, %c0_i32_1 : i32, i32, i32
  }
  func.func @transform_6(%arg0: i32) -> (i32, i32) {
    %c0_i32 = arith.constant 0 : i32
    %c0_i32_0 = arith.constant 0 : i32
    %c0_i32_1 = arith.constant 0 : i32
    return %c0_i32, %c0_i32_0 : i32, i32
  }
  func.func @transform_7(%arg0: i32) -> (i32, i32, i32) {
    %c0_i32 = arith.constant 0 : i32
    %c0_i32_0 = arith.constant 0 : i32
    %c0_i32_1 = arith.constant 0 : i32
    return %arg0, %c0_i32, %c0_i32_0 : i32, i32, i32
  }
}

</mosaic_0001>

<llo_original>
// kernel: encoder_forward.1
$region0: #{encoder_forward.1}
  #allocation0 [shape = 'u32[]', space=smem, size = 0x4, offset = 0x4, fixed_abs, tag = 'smem constant byte address 0x4 - core index']
  #allocation1 [shape = 'u32[144,128]{1,0:T(1,128)}', space=vmem, size = 0x12000, scoped, tag = 'internal scratch']
  %s0 = inlined_call_operand.vmem [shape: f32[2,512,128], index: 0, kind: input, shape index: {}]
  %s1 = inlined_call_operand.vmem [shape: f32[2,64,512], index: 1, kind: input, shape index: {}]
  %s2 = inlined_call_operand.vmem [shape: f32[128,128], index: 2, kind: input, shape index: {}]
  %s3 = inlined_call_operand.vmem [shape: f32[512,128], index: 3, kind: input, shape index: {}]
  %s4 = inlined_call_operand.vmem [shape: f32[3,1024,128], index: 4, kind: input, shape index: {}]
  %s5 = inlined_call_operand.vmem [shape: f32[3,768,128], index: 5, kind: input, shape index: {}]
  %s6 = inlined_call_operand.vmem [shape: f32[16,128], index: 6, kind: input, shape index: {}]
  %s7 = inlined_call_operand.vmem [shape: f32[2,16,128], index: 7, kind: output, shape index: {}]
  %s8 = sld [smem:[#allocation0]]
  $region61: #{encoder_forward.1} parent=0
    _
  %s10 = ssub.s32 1, %s8
  %s11 = scalar_select 0, %s10, %s8
  loop: start=0, step=1, limit=4
  $region2: #{encoder_forward.1} parent=0 // loop_pre_header
    _
  $region3: #{encoder_forward.1} parent=0 // loop_header
    %s13 = sphi 0, %s17
    %p14 = scmp.ge.s32.totalorder %s13, 4
    %s23 = sphi 0, %s25
    %s26 = sphi 0, %s23
    %s27 = sphi 0, %s26
    %s43 = sphi 0, %s27
    %s49 = sphi 0, %s51
    %s52 = sphi 0, %s49
    %s53 = sphi 0, %s52
    %s69 = sphi 0, %s53
    %s73 = sphi 0, %s73
    %s75 = sphi 0, %s73
    %s76 = sphi 0, %s75
    %s90 = sphi 0, %s76
    %s94 = sphi 0, %s94
    %s96 = sphi 0, %s94
    %s97 = sphi 0, %s96
    %s111 = sphi 0, %s97
    %s115 = sphi 0, %s115
    %s117 = sphi 0, %s115
    %s118 = sphi 0, %s117
    %s132 = sphi 0, %s118
    %s136 = sphi 0, %s136
    %s138 = sphi 0, %s136
    %s139 = sphi 0, %s138
    %s153 = sphi 0, %s139
    %s157 = sphi 0, %s157
    %s159 = sphi 0, %s157
    %s160 = sphi 0, %s159
    %s174 = sphi 0, %s160
    %s180 = sphi 0, %s182
    %s183 = sphi 0, %s180
    %s184 = sphi 0, %s183
    %s200 = sphi 0, %s184
  $region4: #{encoder_forward.1} parent=0 // loop_header_branch
    %16 = sbr.rel (%p14) target = $region8
  $region5: #{encoder_forward.1} parent=0 // loop_body
    %s18 = ssub.s32 %s13, 1
    %s19 = ssub.s32 %s13, 2
    %s20 = sadd.s32 %s13, 1
    %s21 = ssub.s32 %s13, %s20
    %p22 = scmp.eq.s32.totalorder %s21, 0
    %s24 = sadd.s32 %s23, 1
    %s25 = scalar_select %p22, %s23, %s24
    %p28 = pneg %p22
    %p29 = scmp.eq.s32.totalorder %s13, 1
    %p30 = por %p28, %p29
    %p31 = scmp.ne.s32.totalorder %s23, %s26
    %p32 = scmp.eq.s32.totalorder %s13, 0
    %p33 = por %p31, %p32
    %p34 = scmp.ne.s32.totalorder %s23, %s26
    %p35 = scmp.eq.s32.totalorder %s18, 1
    %p36 = por %p34, %p35
    %p37 = scmp.ne.s32.totalorder %s26, %s27
    %p38 = scmp.eq.s32.totalorder %s18, 0
    %p39 = por %p37, %p38
    %p40 = scmp.ne.s32.totalorder %s26, %s27
    %p41 = scmp.eq.s32.totalorder %s19, 1
    %p42 = por %p40, %p41
    %p44 = scmp.ne.s32.totalorder %s27, %s43
    %p45 = scmp.eq.s32.totalorder %s19, 0
    %p46 = por %p44, %p45
    %s47 = ssub.s32 %s13, %s20
    %p48 = scmp.eq.s32.totalorder %s47, 0
    %s50 = sadd.s32 %s49, 1
    %s51 = scalar_select %p48, %s49, %s50
    %p54 = pneg %p48
    %p55 = scmp.eq.s32.totalorder %s13, 1
    %p56 = por %p54, %p55
    %p57 = scmp.ne.s32.totalorder %s49, %s52
    %p58 = scmp.eq.s32.totalorder %s13, 0
    %p59 = por %p57, %p58
    %p60 = scmp.ne.s32.totalorder %s49, %s52
    %p61 = scmp.eq.s32.totalorder %s18, 1
    %p62 = por %p60, %p61
    %p63 = scmp.ne.s32.totalorder %s52, %s53
    %p64 = scmp.eq.s32.totalorder %s18, 0
    %p65 = por %p63, %p64
    %p66 = scmp.ne.s32.totalorder %s52, %s53
    %p67 = scmp.eq.s32.totalorder %s19, 1
    %p68 = por %p66, %p67
    %p70 = scmp.ne.s32.totalorder %s53, %s69
    %p71 = scmp.eq.s32.totalorder %s19, 0
    %p72 = por %p70, %p71
    %s74 = sadd.s32 %s73, 1
    %p77 = scmp.eq.s32.totalorder %s13, 1
    %p78 = scmp.ne.s32.totalorder %s73, %s75
    %p79 = scmp.eq.s32.totalorder %s13, 0
    %p80 = por %p78, %p79
    %p81 = scmp.ne.s32.totalorder %s73, %s75
    %p82 = scmp.eq.s32.totalorder %s18, 1
    %p83 = por %p81, %p82
    %p84 = scmp.ne.s32.totalorder %s75, %s76
    %p85 = scmp.eq.s32.totalorder %s18, 0
    %p86 = por %p84, %p85
    %p87 = scmp.ne.s32.totalorder %s75, %s76
    %p88 = scmp.eq.s32.totalorder %s19, 1
    %p89 = por %p87, %p88
    %p91 = scmp.ne.s32.totalorder %s76, %s90
    %p92 = scmp.eq.s32.totalorder %s19, 0
    %p93 = por %p91, %p92
    %s95 = sadd.s32 %s94, 1
    %p98 = scmp.eq.s32.totalorder %s13, 1
    %p99 = scmp.ne.s32.totalorder %s94, %s96
    %p100 = scmp.eq.s32.totalorder %s13, 0
    %p101 = por %p99, %p100
    %p102 = scmp.ne.s32.totalorder %s94, %s96
    %p103 = scmp.eq.s32.totalorder %s18, 1
    %p104 = por %p102, %p103
    %p105 = scmp.ne.s32.totalorder %s96, %s97
    %p106 = scmp.eq.s32.totalorder %s18, 0
    %p107 = por %p105, %p106
    %p108 = scmp.ne.s32.totalorder %s96, %s97
    %p109 = scmp.eq.s32.totalorder %s19, 1
    %p110 = por %p108, %p109
    %p112 = scmp.ne.s32.totalorder %s97, %s111
    %p113 = scmp.eq.s32.totalorder %s19, 0
    %p114 = por %p112, %p113
    %s116 = sadd.s32 %s115, 1
    %p119 = scmp.eq.s32.totalorder %s13, 1
    %p120 = scmp.ne.s32.totalorder %s115, %s117
    %p121 = scmp.eq.s32.totalorder %s13, 0
    %p122 = por %p120, %p121
    %p123 = scmp.ne.s32.totalorder %s115, %s117
    %p124 = scmp.eq.s32.totalorder %s18, 1
    %p125 = por %p123, %p124
    %p126 = scmp.ne.s32.totalorder %s117, %s118
    %p127 = scmp.eq.s32.totalorder %s18, 0
    %p128 = por %p126, %p127
    %p129 = scmp.ne.s32.totalorder %s117, %s118
    %p130 = scmp.eq.s32.totalorder %s19, 1
    %p131 = por %p129, %p130
    %p133 = scmp.ne.s32.totalorder %s118, %s132
    %p134 = scmp.eq.s32.totalorder %s19, 0
    %p135 = por %p133, %p134
    %s137 = sadd.s32 %s136, 1
    %p140 = scmp.eq.s32.totalorder %s13, 1
    %p141 = scmp.ne.s32.totalorder %s136, %s138
    %p142 = scmp.eq.s32.totalorder %s13, 0
    %p143 = por %p141, %p142
    %p144 = scmp.ne.s32.totalorder %s136, %s138
    %p145 = scmp.eq.s32.totalorder %s18, 1
    %p146 = por %p144, %p145
    %p147 = scmp.ne.s32.totalorder %s138, %s139
    %p148 = scmp.eq.s32.totalorder %s18, 0
    %p149 = por %p147, %p148
    %p150 = scmp.ne.s32.totalorder %s138, %s139
    %p151 = scmp.eq.s32.totalorder %s19, 1
    %p152 = por %p150, %p151
    %p154 = scmp.ne.s32.totalorder %s139, %s153
    %p155 = scmp.eq.s32.totalorder %s19, 0
    %p156 = por %p154, %p155
    %s158 = sadd.s32 %s157, 1
    %p161 = scmp.eq.s32.totalorder %s13, 1
    %p162 = scmp.ne.s32.totalorder %s157, %s159
    %p163 = scmp.eq.s32.totalorder %s13, 0
    %p164 = por %p162, %p163
    %p165 = scmp.ne.s32.totalorder %s157, %s159
    %p166 = scmp.eq.s32.totalorder %s18, 1
    %p167 = por %p165, %p166
    %p168 = scmp.ne.s32.totalorder %s159, %s160
    %p169 = scmp.eq.s32.totalorder %s18, 0
    %p170 = por %p168, %p169
    %p171 = scmp.ne.s32.totalorder %s159, %s160
    %p172 = scmp.eq.s32.totalorder %s19, 1
    %p173 = por %p171, %p172
    %p175 = scmp.ne.s32.totalorder %s160, %s174
    %p176 = scmp.eq.s32.totalorder %s19, 0
    %p177 = por %p175, %p176
    %s178 = ssub.s32 %s13, %s20
    %p179 = scmp.eq.s32.totalorder %s178, 0
    %s181 = sadd.s32 %s180, 1
    %s182 = scalar_select %p179, %s180, %s181
    %p185 = pneg %p179
    %p186 = scmp.eq.s32.totalorder %s13, 1
    %p187 = por %p185, %p186
    %p188 = scmp.ne.s32.totalorder %s180, %s183
    %p189 = scmp.eq.s32.totalorder %s13, 0
    %p190 = por %p188, %p189
    %p191 = scmp.ne.s32.totalorder %s180, %s183
    %p192 = scmp.eq.s32.totalorder %s18, 1
    %p193 = por %p191, %p192
    %p194 = scmp.ne.s32.totalorder %s183, %s184
    %p195 = scmp.eq.s32.totalorder %s18, 0
    %p196 = por %p194, %p195
    %p197 = scmp.ne.s32.totalorder %s183, %s184
    %p198 = scmp.eq.s32.totalorder %s19, 1
    %p199 = por %p197, %p198
    %p201 = scmp.ne.s32.totalorder %s184, %s200
    %p202 = scmp.eq.s32.totalorder %s19, 0
    %p203 = por %p201, %p202
    %p204 = scmp.le.s32.totalorder 1, %s13
    %p205 = scmp.lt.s32.totalorder %s13, 3
    %p206 = pnand %p204, %p205
    %p207 = pneg %p206
    // Predicated region
    $region9: #{encoder_forward.1} parent=5 // pred_check
      _
    $region10: #{encoder_forward.1} parent=5 // pred_check_branch
      %209 = sbr.rel (%p206) target = $region12
    $region11: #{encoder_forward.1} parent=5 // pred_region
      %s210 = ssub.s32 %s13, 1
      // Predicated region
      $region13: #{encoder_forward.1} parent=11 // pred_check
        %p211 = pneg %p86
      $region14: #{encoder_forward.1} parent=11 // pred_check_branch
        %213 = sbr.rel (%p211) target = $region16
      $region15: #{encoder_forward.1} parent=11 // pred_region
        _
      $region16: #{encoder_forward.1} parent=11 // pred_fallthru
        _
      // Predicated region
      $region17: #{encoder_forward.1} parent=11 // pred_check
        %p214 = pneg %p107
      $region18: #{encoder_forward.1} parent=11 // pred_check_branch
        %216 = sbr.rel (%p214) target = $region20
      $region19: #{encoder_forward.1} parent=11 // pred_region
        _
      $region20: #{encoder_forward.1} parent=11 // pred_fallthru
        _
      // Predicated region
      $region21: #{encoder_forward.1} parent=11 // pred_check
        %p217 = pneg %p128
      $region22: #{encoder_forward.1} parent=11 // pred_check_branch
        %219 = sbr.rel (%p217) target = $region24
      $region23: #{encoder_forward.1} parent=11 // pred_region
        _
      $region24: #{encoder_forward.1} parent=11 // pred_fallthru
        _
      // Predicated region
      $region25: #{encoder_forward.1} parent=11 // pred_check
        %p220 = pneg %p149
      $region26: #{encoder_forward.1} parent=11 // pred_check_branch
        %222 = sbr.rel (%p220) target = $region28
      $region27: #{encoder_forward.1} parent=11 // pred_region
        _
      $region28: #{encoder_forward.1} parent=11 // pred_fallthru
        _
      // Predicated region
      $region29: #{encoder_forward.1} parent=11 // pred_check
        %p223 = pneg %p170
      $region30: #{encoder_forward.1} parent=11 // pred_check_branch
        %225 = sbr.rel (%p223) target = $region32
      $region31: #{encoder_forward.1} parent=11 // pred_region
        _
      $region32: #{encoder_forward.1} parent=11 // pred_fallthru
        _
    $region12: #{encoder_forward.1} parent=5 // pred_fallthru
      _
    %p226 = scmp.lt.s32.totalorder %s13, 2
    // Predicated region
    $region33: #{encoder_forward.1} parent=5 // pred_check
      %p227 = pneg %p226
    $region34: #{encoder_forward.1} parent=5 // pred_check_branch
      %229 = sbr.rel (%p227) target = $region36
    $region35: #{encoder_forward.1} parent=5 // pred_region
      // Predicated region
      $region37: #{encoder_forward.1} parent=35 // pred_check
        %p230 = pneg %p33
      $region38: #{encoder_forward.1} parent=35 // pred_check_branch
        %232 = sbr.rel (%p230) target = $region40
      $region39: #{encoder_forward.1} parent=35 // pred_region
        %p233 = scmp.lt.s32.totalorder %s13, 1
        %s234 = scalar_select %p233, %s13, 1
        %s235 = smul.addr %s234, 64
        %s236 = smul.addr %s235, 8
        %s237 = scalar_lea.vmem %s0, %s236
      $region40: #{encoder_forward.1} parent=35 // pred_fallthru
        _
      // Predicated region
      $region41: #{encoder_forward.1} parent=35 // pred_check
        %p238 = pneg %p59
      $region42: #{encoder_forward.1} parent=35 // pred_check_branch
        %240 = sbr.rel (%p238) target = $region44
      $region43: #{encoder_forward.1} parent=35 // pred_region
        %p241 = scmp.lt.s32.totalorder %s13, 1
        %s242 = scalar_select %p241, %s13, 1
        %s243 = smul.addr %s242, 32
        %s244 = smul.addr %s243, 8
        %s245 = scalar_lea.vmem %s1, %s244
      $region44: #{encoder_forward.1} parent=35 // pred_fallthru
        _
    $region36: #{encoder_forward.1} parent=5 // pred_fallthru
      _
    %p246 = scmp.le.s32.totalorder 1, %s13
    %p247 = scmp.lt.s32.totalorder %s13, 3
    %p248 = pnand %p246, %p247
    %p249 = pneg %p248
    // Predicated region
    $region45: #{encoder_forward.1} parent=5 // pred_check
      _
    $region46: #{encoder_forward.1} parent=5 // pred_check_branch
      %251 = sbr.rel (%p248) target = $region48
    $region47: #{encoder_forward.1} parent=5 // pred_region
      %s252 = ssub.s32 %s13, 1
      %p253 = scmp.lt.s32.totalorder %s18, 1
      %s254 = scalar_select %p253, %s18, 1
      %s255 = smul.addr %s254, 64
      %s256 = smul.addr %s255, 8
      %s257 = scalar_lea.vmem %s0, %s256
      %p258 = pneg %p39
      %p259 = pneg %p36
      %p260 = scmp.lt.s32.totalorder %s18, 1
      %s261 = scalar_select %p260, %s18, 1
      %s262 = smul.addr %s261, 32
      %s263 = smul.addr %s262, 8
      %s264 = scalar_lea.vmem %s1, %s263
      %p265 = pneg %p65
      %p266 = pneg %p62
      %p267 = pneg %p86
      %p268 = pneg %p83
      %p269 = pneg %p107
      %p270 = pneg %p104
      %p271 = pneg %p128
      %p272 = pneg %p125
      %p273 = pneg %p149
      %p274 = pneg %p146
      %p275 = pneg %p170
      %p276 = pneg %p167
      %p277 = pneg %p196
      %p278 = pneg %p193
      %p279 = scmp.lt.s32.totalorder %s18, 1
      %s280 = scalar_select %p279, %s18, 1
      %s281 = smul.addr %s280, 2
      %s282 = smul.addr %s281, 8
      %s283 = scalar_lea.vmem %s7, %s282
      %p284 = scmp.lt.s32.totalorder %s18, 1
      %s285 = scalar_select %p284, %s18, 1
      %s286 = smul.addr %s285, 64
      %s287 = smul.addr %s286, 8
      %s288 = scalar_lea.vmem %s0, %s287
      %p289 = scmp.lt.s32.totalorder %s18, 1
      %s290 = scalar_select %p289, %s18, 1
      %s291 = smul.addr %s290, 32
      %s292 = smul.addr %s291, 8
      %s293 = scalar_lea.vmem %s1, %s292
      %p294 = scmp.lt.s32.totalorder %s18, 1
      %s295 = scalar_select %p294, %s18, 1
      %s296 = smul.addr %s295, 2
      %s297 = smul.addr %s296, 8
      %s298 = scalar_lea.vmem %s7, %s297
      %v299 = vld [vmem:[%s6] sm:$0xff]
      %v300 = vld [vmem:[%s6 + $0x8] sm:$0xff]
      %v301 = vld [vmem:[%s288] sm:$0xff]
      %v302 = vld [vmem:[%s288 + $0x8] sm:$0xff]
      %v303 = vld [vmem:[%s288 + $0x10] sm:$0xff]
      %v304 = vld [vmem:[%s288 + $0x18] sm:$0xff]
      %v305 = vld [vmem:[%s288 + $0x20] sm:$0xff]
      %v306 = vld [vmem:[%s288 + $0x28] sm:$0xff]
      %v307 = vld [vmem:[%s288 + $0x30] sm:$0xff]
      %v308 = vld [vmem:[%s288 + $0x38] sm:$0xff]
      %v309 = vld [vmem:[%s288 + $0x40] sm:$0xff]
      %v310 = vld [vmem:[%s288 + $0x48] sm:$0xff]
      %v311 = vld [vmem:[%s288 + $0x50] sm:$0xff]
      %v312 = vld [vmem:[%s288 + $0x58] sm:$0xff]
      %v313 = vld [vmem:[%s288 + $0x60] sm:$0xff]
      %v314 = vld [vmem:[%s288 + $0x68] sm:$0xff]
      %v315 = vld [vmem:[%s288 + $0x70] sm:$0xff]
      %v316 = vld [vmem:[%s288 + $0x78] sm:$0xff]
      %v317 = vld [vmem:[%s288 + $0x80] sm:$0xff]
      %v318 = vld [vmem:[%s288 + $0x88] sm:$0xff]
      %v319 = vld [vmem:[%s288 + $0x90] sm:$0xff]
      %v320 = vld [vmem:[%s288 + $0x98] sm:$0xff]
      %v321 = vld [vmem:[%s288 + $0xa0] sm:$0xff]
      %v322 = vld [vmem:[%s288 + $0xa8] sm:$0xff]
      %v323 = vld [vmem:[%s288 + $0xb0] sm:$0xff]
      %v324 = vld [vmem:[%s288 + $0xb8] sm:$0xff]
      %v325 = vld [vmem:[%s288 + $0xc0] sm:$0xff]
      %v326 = vld [vmem:[%s288 + $0xc8] sm:$0xff]
      %v327 = vld [vmem:[%s288 + $0xd0] sm:$0xff]
      %v328 = vld [vmem:[%s288 + $0xd8] sm:$0xff]
      %v329 = vld [vmem:[%s288 + $0xe0] sm:$0xff]
      %v330 = vld [vmem:[%s288 + $0xe8] sm:$0xff]
      %v331 = vld [vmem:[%s288 + $0xf0] sm:$0xff]
      %v332 = vld [vmem:[%s288 + $0xf8] sm:$0xff]
      %v333 = vld [vmem:[%s288 + $0x100] sm:$0xff]
      %v334 = vld [vmem:[%s288 + $0x108] sm:$0xff]
      %v335 = vld [vmem:[%s288 + $0x110] sm:$0xff]
      %v336 = vld [vmem:[%s288 + $0x118] sm:$0xff]
      %v337 = vld [vmem:[%s288 + $0x120] sm:$0xff]
      %v338 = vld [vmem:[%s288 + $0x128] sm:$0xff]
      %v339 = vld [vmem:[%s288 + $0x130] sm:$0xff]
      %v340 = vld [vmem:[%s288 + $0x138] sm:$0xff]
      %v341 = vld [vmem:[%s288 + $0x140] sm:$0xff]
      %v342 = vld [vmem:[%s288 + $0x148] sm:$0xff]
      %v343 = vld [vmem:[%s288 + $0x150] sm:$0xff]
      %v344 = vld [vmem:[%s288 + $0x158] sm:$0xff]
      %v345 = vld [vmem:[%s288 + $0x160] sm:$0xff]
      %v346 = vld [vmem:[%s288 + $0x168] sm:$0xff]
      %v347 = vld [vmem:[%s288 + $0x170] sm:$0xff]
      %v348 = vld [vmem:[%s288 + $0x178] sm:$0xff]
      %v349 = vld [vmem:[%s288 + $0x180] sm:$0xff]
      %v350 = vld [vmem:[%s288 + $0x188] sm:$0xff]
      %v351 = vld [vmem:[%s288 + $0x190] sm:$0xff]
      %v352 = vld [vmem:[%s288 + $0x198] sm:$0xff]
      %v353 = vld [vmem:[%s288 + $0x1a0] sm:$0xff]
      %v354 = vld [vmem:[%s288 + $0x1a8] sm:$0xff]
      %v355 = vld [vmem:[%s288 + $0x1b0] sm:$0xff]
      %v356 = vld [vmem:[%s288 + $0x1b8] sm:$0xff]
      %v357 = vld [vmem:[%s288 + $0x1c0] sm:$0xff]
      %v358 = vld [vmem:[%s288 + $0x1c8] sm:$0xff]
      %v359 = vld [vmem:[%s288 + $0x1d0] sm:$0xff]
      %v360 = vld [vmem:[%s288 + $0x1d8] sm:$0xff]
      %v361 = vld [vmem:[%s288 + $0x1e0] sm:$0xff]
      %v362 = vld [vmem:[%s288 + $0x1e8] sm:$0xff]
      %v363 = vld [vmem:[%s288 + $0x1f0] sm:$0xff]
      %v364 = vld [vmem:[%s288 + $0x1f8] sm:$0xff]
      %v365 = vld [vmem:[%s2] sm:$0xff]
      %v366 = vld [vmem:[%s2 + $0x8] sm:$0xff]
      %v367 = vld [vmem:[%s2 + $0x10] sm:$0xff]
      %v368 = vld [vmem:[%s2 + $0x18] sm:$0xff]
      %v369 = vld [vmem:[%s2 + $0x20] sm:$0xff]
      %v370 = vld [vmem:[%s2 + $0x28] sm:$0xff]
      %v371 = vld [vmem:[%s2 + $0x30] sm:$0xff]
      %v372 = vld [vmem:[%s2 + $0x38] sm:$0xff]
      %v373 = vld [vmem:[%s2 + $0x40] sm:$0xff]
      %v374 = vld [vmem:[%s2 + $0x48] sm:$0xff]
      %v375 = vld [vmem:[%s2 + $0x50] sm:$0xff]
      %v376 = vld [vmem:[%s2 + $0x58] sm:$0xff]
      %v377 = vld [vmem:[%s2 + $0x60] sm:$0xff]
      %v378 = vld [vmem:[%s2 + $0x68] sm:$0xff]
      %v379 = vld [vmem:[%s2 + $0x70] sm:$0xff]
      %v380 = vld [vmem:[%s2 + $0x78] sm:$0xff]
      %381 = vmatprep.subr.mxu0 0.0
      %382 = vmatpush1.msra.mxu0 %v380
      %383 = vmatprep.subr.mxu0 0.0
      %384 = vmatpush1.msra.mxu0 %v379
      %385 = vmatprep.subr.mxu0 0.0
      %386 = vmatpush1.msra.mxu0 %v378
      %387 = vmatprep.subr.mxu0 0.0
      %388 = vmatpush1.msra.mxu0 %v377
      %389 = vmatprep.subr.mxu0 0.0
      %390 = vmatpush1.msra.mxu0 %v376
      %391 = vmatprep.subr.mxu0 0.0
      %392 = vmatpush1.msra.mxu0 %v375
      %393 = vmatprep.subr.mxu0 0.0
      %394 = vmatpush1.msra.mxu0 %v374
      %395 = vmatprep.subr.mxu0 0.0
      %396 = vmatpush1.msra.mxu0 %v373
      %397 = vmatprep.subr.mxu0 0.0
      %398 = vmatpush1.msra.mxu0 %v372
      %399 = vmatprep.subr.mxu0 0.0
      %400 = vmatpush1.msra.mxu0 %v371
      %401 = vmatprep.subr.mxu0 0.0
      %402 = vmatpush1.msra.mxu0 %v370
      %403 = vmatprep.subr.mxu0 0.0
      %404 = vmatpush1.msra.mxu0 %v369
      %405 = vmatprep.subr.mxu0 0.0
      %406 = vmatpush1.msra.mxu0 %v368
      %407 = vmatprep.subr.mxu0 0.0
      %408 = vmatpush1.msra.mxu0 %v367
      %409 = vmatprep.subr.mxu0 0.0
      %410 = vmatpush1.msra.mxu0 %v366
      %411 = vmatprep.subr.mxu0 0.0
      %412 = vmatpush1.msra.mxu0 %v365
      %413 = vmatprep.subr.mxu0 0.0
      %414 = vmatpush2.msra.mxu0 0.0
      %415 = vmatprep.subr.mxu0 0.0
      %416 = vmatpush2.msra.mxu0 0.0
      %417 = vmatprep.subr.mxu0 0.0
      %418 = vmatpush2.msra.mxu0 0.0
      %419 = vmatprep.subr.mxu0 0.0
      %420 = vmatpush2.msra.mxu0 0.0
      %421 = vmatprep.subr.mxu0 0.0
      %422 = vmatpush2.msra.mxu0 0.0
      %423 = vmatprep.subr.mxu0 0.0
      %424 = vmatpush2.msra.mxu0 0.0
      %425 = vmatprep.subr.mxu0 0.0
      %426 = vmatpush2.msra.mxu0 0.0
      %427 = vmatprep.subr.mxu0 0.0
      %428 = vmatpush2.msra.mxu0 0.0
      %429 = vmatprep.subr.mxu0 0.0
      %430 = vmatpush2.msra.mxu0 0.0
      %431 = vmatprep.subr.mxu0 0.0
      %432 = vmatpush2.msra.mxu0 0.0
      %433 = vmatprep.subr.mxu0 0.0
      %434 = vmatpush2.msra.mxu0 0.0
      %435 = vmatprep.subr.mxu0 0.0
      %436 = vmatpush2.msra.mxu0 0.0
      %437 = vmatprep.subr.mxu0 0.0
      %438 = vmatpush2.msra.mxu0 0.0
      %439 = vmatprep.subr.mxu0 0.0
      %440 = vmatpush2.msra.mxu0 0.0
      %441 = vmatprep.subr.mxu0 0.0
      %442 = vmatpush2.msra.mxu0 0.0
      %443 = vmatprep.subr.mxu0 0.0
      %444 = vmatpush2.msra.mxu0 0.0
      %445 = vmatprep.mubr.f32.mxu0 0.0
      %446 = vmatmul.mubr.f32.gmra.mxu0 %v301
      %v447 = vpop.f32.mrf.mxu0
      %v448 = vadd.f32 0.0, %v447
      %v449 = vpop.f32.mrf.mxu0
      %450 = vmatprep.mubr.f32.mxu0 0.0
      %451 = vmatmul.mubr.f32.gmra.mxu0 %v302
      %v452 = vpop.f32.mrf.mxu0
      %v453 = vadd.f32 0.0, %v452
      %v454 = vpop.f32.mrf.mxu0
      %455 = vmatprep.mubr.f32.mxu0 0.0
      %456 = vmatmul.mubr.f32.gmra.mxu0 %v303
      %v457 = vpop.f32.mrf.mxu0
      %v458 = vadd.f32 0.0, %v457
      %v459 = vpop.f32.mrf.mxu0
      %460 = vmatprep.mubr.f32.mxu0 0.0
      %461 = vmatmul.mubr.f32.gmra.mxu0 %v304
      %v462 = vpop.f32.mrf.mxu0
      %v463 = vadd.f32 0.0, %v462
      %v464 = vpop.f32.mrf.mxu0
      %465 = vmatprep.mubr.f32.mxu0 0.0
      %466 = vmatmul.mubr.f32.gmra.mxu0 %v305
      %v467 = vpop.f32.mrf.mxu0
      %v468 = vadd.f32 0.0, %v467
      %v469 = vpop.f32.mrf.mxu0
      %470 = vmatprep.mubr.f32.mxu0 0.0
      %471 = vmatmul.mubr.f32.gmra.mxu0 %v306
      %v472 = vpop.f32.mrf.mxu0
      %v473 = vadd.f32 0.0, %v472
      %v474 = vpop.f32.mrf.mxu0
      %475 = vmatprep.mubr.f32.mxu0 0.0
      %476 = vmatmul.mubr.f32.gmra.mxu0 %v307
      %v477 = vpop.f32.mrf.mxu0
      %v478 = vadd.f32 0.0, %v477
      %v479 = vpop.f32.mrf.mxu0
      %480 = vmatprep.mubr.f32.mxu0 0.0
      %481 = vmatmul.mubr.f32.gmra.mxu0 %v308
      %v482 = vpop.f32.mrf.mxu0
      %v483 = vadd.f32 0.0, %v482
      %v484 = vpop.f32.mrf.mxu0
      %485 = vmatprep.mubr.f32.mxu0 0.0
      %486 = vmatmul.mubr.f32.gmra.mxu0 %v309
      %v487 = vpop.f32.mrf.mxu0
      %v488 = vadd.f32 0.0, %v487
      %v489 = vpop.f32.mrf.mxu0
      %490 = vmatprep.mubr.f32.mxu0 0.0
      %491 = vmatmul.mubr.f32.gmra.mxu0 %v310
      %v492 = vpop.f32.mrf.mxu0
      %v493 = vadd.f32 0.0, %v492
      %v494 = vpop.f32.mrf.mxu0
      %495 = vmatprep.mubr.f32.mxu0 0.0
      %496 = vmatmul.mubr.f32.gmra.mxu0 %v311
      %v497 = vpop.f32.mrf.mxu0
      %v498 = vadd.f32 0.0, %v497
      %v499 = vpop.f32.mrf.mxu0
      %500 = vmatprep.mubr.f32.mxu0 0.0
      %501 = vmatmul.mubr.f32.gmra.mxu0 %v312
      %v502 = vpop.f32.mrf.mxu0
      %v503 = vadd.f32 0.0, %v502
      %v504 = vpop.f32.mrf.mxu0
      %505 = vmatprep.mubr.f32.mxu0 0.0
      %506 = vmatmul.mubr.f32.gmra.mxu0 %v313
      %v507 = vpop.f32.mrf.mxu0
      %v508 = vadd.f32 0.0, %v507
      %v509 = vpop.f32.mrf.mxu0
      %510 = vmatprep.mubr.f32.mxu0 0.0
      %511 = vmatmul.mubr.f32.gmra.mxu0 %v314
      %v512 = vpop.f32.mrf.mxu0
      %v513 = vadd.f32 0.0, %v512
      %v514 = vpop.f32.mrf.mxu0
      %515 = vmatprep.mubr.f32.mxu0 0.0
      %516 = vmatmul.mubr.f32.gmra.mxu0 %v315
      %v517 = vpop.f32.mrf.mxu0
      %v518 = vadd.f32 0.0, %v517
      %v519 = vpop.f32.mrf.mxu0
      %520 = vmatprep.mubr.f32.mxu0 0.0
      %521 = vmatmul.mubr.f32.gmra.mxu0 %v316
      %v522 = vpop.f32.mrf.mxu0
      %v523 = vadd.f32 0.0, %v522
      %v524 = vpop.f32.mrf.mxu0
      %525 = vmatprep.mubr.f32.mxu0 0.0
      %526 = vmatmul.mubr.f32.gmra.mxu0 %v317
      %v527 = vpop.f32.mrf.mxu0
      %v528 = vadd.f32 0.0, %v527
      %v529 = vpop.f32.mrf.mxu0
      %530 = vmatprep.mubr.f32.mxu0 0.0
      %531 = vmatmul.mubr.f32.gmra.mxu0 %v318
      %v532 = vpop.f32.mrf.mxu0
      %v533 = vadd.f32 0.0, %v532
      %v534 = vpop.f32.mrf.mxu0
      %535 = vmatprep.mubr.f32.mxu0 0.0
      %536 = vmatmul.mubr.f32.gmra.mxu0 %v319
      %v537 = vpop.f32.mrf.mxu0
      %v538 = vadd.f32 0.0, %v537
      %v539 = vpop.f32.mrf.mxu0
      %540 = vmatprep.mubr.f32.mxu0 0.0
      %541 = vmatmul.mubr.f32.gmra.mxu0 %v320
      %v542 = vpop.f32.mrf.mxu0
      %v543 = vadd.f32 0.0, %v542
      %v544 = vpop.f32.mrf.mxu0
      %545 = vmatprep.mubr.f32.mxu0 0.0
      %546 = vmatmul.mubr.f32.gmra.mxu0 %v321
      %v547 = vpop.f32.mrf.mxu0
      %v548 = vadd.f32 0.0, %v547
      %v549 = vpop.f32.mrf.mxu0
      %550 = vmatprep.mubr.f32.mxu0 0.0
      %551 = vmatmul.mubr.f32.gmra.mxu0 %v322
      %v552 = vpop.f32.mrf.mxu0
      %v553 = vadd.f32 0.0, %v552
      %v554 = vpop.f32.mrf.mxu0
      %555 = vmatprep.mubr.f32.mxu0 0.0
      %556 = vmatmul.mubr.f32.gmra.mxu0 %v323
      %v557 = vpop.f32.mrf.mxu0
      %v558 = vadd.f32 0.0, %v557
      %v559 = vpop.f32.mrf.mxu0
      %560 = vmatprep.mubr.f32.mxu0 0.0
      %561 = vmatmul.mubr.f32.gmra.mxu0 %v324
      %v562 = vpop.f32.mrf.mxu0
      %v563 = vadd.f32 0.0, %v562
      %v564 = vpop.f32.mrf.mxu0
      %565 = vmatprep.mubr.f32.mxu0 0.0
      %566 = vmatmul.mubr.f32.gmra.mxu0 %v325
      %v567 = vpop.f32.mrf.mxu0
      %v568 = vadd.f32 0.0, %v567
      %v569 = vpop.f32.mrf.mxu0
      %570 = vmatprep.mubr.f32.mxu0 0.0
      %571 = vmatmul.mubr.f32.gmra.mxu0 %v326
      %v572 = vpop.f32.mrf.mxu0
      %v573 = vadd.f32 0.0, %v572
      %v574 = vpop.f32.mrf.mxu0
      %575 = vmatprep.mubr.f32.mxu0 0.0
      %576 = vmatmul.mubr.f32.gmra.mxu0 %v327
      %v577 = vpop.f32.mrf.mxu0
      %v578 = vadd.f32 0.0, %v577
      %v579 = vpop.f32.mrf.mxu0
      %580 = vmatprep.mubr.f32.mxu0 0.0
      %581 = vmatmul.mubr.f32.gmra.mxu0 %v328
      %v582 = vpop.f32.mrf.mxu0
      %v583 = vadd.f32 0.0, %v582
      %v584 = vpop.f32.mrf.mxu0
      %585 = vmatprep.mubr.f32.mxu0 0.0
      %586 = vmatmul.mubr.f32.gmra.mxu0 %v329
      %v587 = vpop.f32.mrf.mxu0
      %v588 = vadd.f32 0.0, %v587
      %v589 = vpop.f32.mrf.mxu0
      %590 = vmatprep.mubr.f32.mxu0 0.0
      %591 = vmatmul.mubr.f32.gmra.mxu0 %v330
      %v592 = vpop.f32.mrf.mxu0
      %v593 = vadd.f32 0.0, %v592
      %v594 = vpop.f32.mrf.mxu0
      %595 = vmatprep.mubr.f32.mxu0 0.0
      %596 = vmatmul.mubr.f32.gmra.mxu0 %v331
      %v597 = vpop.f32.mrf.mxu0
      %v598 = vadd.f32 0.0, %v597
      %v599 = vpop.f32.mrf.mxu0
      %600 = vmatprep.mubr.f32.mxu0 0.0
      %601 = vmatmul.mubr.f32.gmra.mxu0 %v332
      %v602 = vpop.f32.mrf.mxu0
      %v603 = vadd.f32 0.0, %v602
      %v604 = vpop.f32.mrf.mxu0
      %605 = vmatprep.mubr.f32.mxu0 0.0
      %606 = vmatmul.mubr.f32.gmra.mxu0 %v333
      %v607 = vpop.f32.mrf.mxu0
      %v608 = vadd.f32 0.0, %v607
      %v609 = vpop.f32.mrf.mxu0
      %610 = vmatprep.mubr.f32.mxu0 0.0
      %611 = vmatmul.mubr.f32.gmra.mxu0 %v334
      %v612 = vpop.f32.mrf.mxu0
      %v613 = vadd.f32 0.0, %v612
      %v614 = vpop.f32.mrf.mxu0
      %615 = vmatprep.mubr.f32.mxu0 0.0
      %616 = vmatmul.mubr.f32.gmra.mxu0 %v335
      %v617 = vpop.f32.mrf.mxu0
      %v618 = vadd.f32 0.0, %v617
      %v619 = vpop.f32.mrf.mxu0
      %620 = vmatprep.mubr.f32.mxu0 0.0
      %621 = vmatmul.mubr.f32.gmra.mxu0 %v336
      %v622 = vpop.f32.mrf.mxu0
      %v623 = vadd.f32 0.0, %v622
      %v624 = vpop.f32.mrf.mxu0
      %625 = vmatprep.mubr.f32.mxu0 0.0
      %626 = vmatmul.mubr.f32.gmra.mxu0 %v337
      %v627 = vpop.f32.mrf.mxu0
      %v628 = vadd.f32 0.0, %v627
      %v629 = vpop.f32.mrf.mxu0
      %630 = vmatprep.mubr.f32.mxu0 0.0
      %631 = vmatmul.mubr.f32.gmra.mxu0 %v338
      %v632 = vpop.f32.mrf.mxu0
      %v633 = vadd.f32 0.0, %v632
      %v634 = vpop.f32.mrf.mxu0
      %635 = vmatprep.mubr.f32.mxu0 0.0
      %636 = vmatmul.mubr.f32.gmra.mxu0 %v339
      %v637 = vpop.f32.mrf.mxu0
      %v638 = vadd.f32 0.0, %v637
      %v639 = vpop.f32.mrf.mxu0
      %640 = vmatprep.mubr.f32.mxu0 0.0
      %641 = vmatmul.mubr.f32.gmra.mxu0 %v340
      %v642 = vpop.f32.mrf.mxu0
      %v643 = vadd.f32 0.0, %v642
      %v644 = vpop.f32.mrf.mxu0
      %645 = vmatprep.mubr.f32.mxu0 0.0
      %646 = vmatmul.mubr.f32.gmra.mxu0 %v341
      %v647 = vpop.f32.mrf.mxu0
      %v648 = vadd.f32 0.0, %v647
      %v649 = vpop.f32.mrf.mxu0
      %650 = vmatprep.mubr.f32.mxu0 0.0
      %651 = vmatmul.mubr.f32.gmra.mxu0 %v342
      %v652 = vpop.f32.mrf.mxu0
      %v653 = vadd.f32 0.0, %v652
      %v654 = vpop.f32.mrf.mxu0
      %655 = vmatprep.mubr.f32.mxu0 0.0
      %656 = vmatmul.mubr.f32.gmra.mxu0 %v343
      %v657 = vpop.f32.mrf.mxu0
      %v658 = vadd.f32 0.0, %v657
      %v659 = vpop.f32.mrf.mxu0
      %660 = vmatprep.mubr.f32.mxu0 0.0
      %661 = vmatmul.mubr.f32.gmra.mxu0 %v344
      %v662 = vpop.f32.mrf.mxu0
      %v663 = vadd.f32 0.0, %v662
      %v664 = vpop.f32.mrf.mxu0
      %665 = vmatprep.mubr.f32.mxu0 0.0
      %666 = vmatmul.mubr.f32.gmra.mxu0 %v345
      %v667 = vpop.f32.mrf.mxu0
      %v668 = vadd.f32 0.0, %v667
      %v669 = vpop.f32.mrf.mxu0
      %670 = vmatprep.mubr.f32.mxu0 0.0
      %671 = vmatmul.mubr.f32.gmra.mxu0 %v346
      %v672 = vpop.f32.mrf.mxu0
      %v673 = vadd.f32 0.0, %v672
      %v674 = vpop.f32.mrf.mxu0
      %675 = vmatprep.mubr.f32.mxu0 0.0
      %676 = vmatmul.mubr.f32.gmra.mxu0 %v347
      %v677 = vpop.f32.mrf.mxu0
      %v678 = vadd.f32 0.0, %v677
      %v679 = vpop.f32.mrf.mxu0
      %680 = vmatprep.mubr.f32.mxu0 0.0
      %681 = vmatmul.mubr.f32.gmra.mxu0 %v348
      %v682 = vpop.f32.mrf.mxu0
      %v683 = vadd.f32 0.0, %v682
      %v684 = vpop.f32.mrf.mxu0
      %685 = vmatprep.mubr.f32.mxu0 0.0
      %686 = vmatmul.mubr.f32.gmra.mxu0 %v349
      %v687 = vpop.f32.mrf.mxu0
      %v688 = vadd.f32 0.0, %v687
      %v689 = vpop.f32.mrf.mxu0
      %690 = vmatprep.mubr.f32.mxu0 0.0
      %691 = vmatmul.mubr.f32.gmra.mxu0 %v350
      %v692 = vpop.f32.mrf.mxu0
      %v693 = vadd.f32 0.0, %v692
      %v694 = vpop.f32.mrf.mxu0
      %695 = vmatprep.mubr.f32.mxu0 0.0
      %696 = vmatmul.mubr.f32.gmra.mxu0 %v351
      %v697 = vpop.f32.mrf.mxu0
      %v698 = vadd.f32 0.0, %v697
      %v699 = vpop.f32.mrf.mxu0
      %700 = vmatprep.mubr.f32.mxu0 0.0
      %701 = vmatmul.mubr.f32.gmra.mxu0 %v352
      %v702 = vpop.f32.mrf.mxu0
      %v703 = vadd.f32 0.0, %v702
      %v704 = vpop.f32.mrf.mxu0
      %705 = vmatprep.mubr.f32.mxu0 0.0
      %706 = vmatmul.mubr.f32.gmra.mxu0 %v353
      %v707 = vpop.f32.mrf.mxu0
      %v708 = vadd.f32 0.0, %v707
      %v709 = vpop.f32.mrf.mxu0
      %710 = vmatprep.mubr.f32.mxu0 0.0
      %711 = vmatmul.mubr.f32.gmra.mxu0 %v354
      %v712 = vpop.f32.mrf.mxu0
      %v713 = vadd.f32 0.0, %v712
      %v714 = vpop.f32.mrf.mxu0
      %715 = vmatprep.mubr.f32.mxu0 0.0
      %716 = vmatmul.mubr.f32.gmra.mxu0 %v355
      %v717 = vpop.f32.mrf.mxu0
      %v718 = vadd.f32 0.0, %v717
      %v719 = vpop.f32.mrf.mxu0
      %720 = vmatprep.mubr.f32.mxu0 0.0
      %721 = vmatmul.mubr.f32.gmra.mxu0 %v356
      %v722 = vpop.f32.mrf.mxu0
      %v723 = vadd.f32 0.0, %v722
      %v724 = vpop.f32.mrf.mxu0
      %725 = vmatprep.mubr.f32.mxu0 0.0
      %726 = vmatmul.mubr.f32.gmra.mxu0 %v357
      %v727 = vpop.f32.mrf.mxu0
      %v728 = vadd.f32 0.0, %v727
      %v729 = vpop.f32.mrf.mxu0
      %730 = vmatprep.mubr.f32.mxu0 0.0
      %731 = vmatmul.mubr.f32.gmra.mxu0 %v358
      %v732 = vpop.f32.mrf.mxu0
      %v733 = vadd.f32 0.0, %v732
      %v734 = vpop.f32.mrf.mxu0
      %735 = vmatprep.mubr.f32.mxu0 0.0
      %736 = vmatmul.mubr.f32.gmra.mxu0 %v359
      %v737 = vpop.f32.mrf.mxu0
      %v738 = vadd.f32 0.0, %v737
      %v739 = vpop.f32.mrf.mxu0
      %740 = vmatprep.mubr.f32.mxu0 0.0
      %741 = vmatmul.mubr.f32.gmra.mxu0 %v360
      %v742 = vpop.f32.mrf.mxu0
      %v743 = vadd.f32 0.0, %v742
      %v744 = vpop.f32.mrf.mxu0
      %745 = vmatprep.mubr.f32.mxu0 0.0
      %746 = vmatmul.mubr.f32.gmra.mxu0 %v361
      %v747 = vpop.f32.mrf.mxu0
      %v748 = vadd.f32 0.0, %v747
      %v749 = vpop.f32.mrf.mxu0
      %750 = vmatprep.mubr.f32.mxu0 0.0
      %751 = vmatmul.mubr.f32.gmra.mxu0 %v362
      %v752 = vpop.f32.mrf.mxu0
      %v753 = vadd.f32 0.0, %v752
      %v754 = vpop.f32.mrf.mxu0
      %755 = vmatprep.mubr.f32.mxu0 0.0
      %756 = vmatmul.mubr.f32.gmra.mxu0 %v363
      %v757 = vpop.f32.mrf.mxu0
      %v758 = vadd.f32 0.0, %v757
      %v759 = vpop.f32.mrf.mxu0
      %760 = vmatprep.mubr.f32.mxu0 0.0
      %761 = vmatmul.mubr.f32.gmra.mxu0 %v364
      %v762 = vpop.f32.mrf.mxu0
      %v763 = vadd.f32 0.0, %v762
      %v764 = vpop.f32.mrf.mxu0
      %765 = vdwg.mxu0
      %v766 = vlaneseq
      %v767 = vshrl.u32 %v766, 7
      %v768 = vsub.s32 0, %v767
      %v769 = vrot.slane %v299, %v768
      %v770 = vmul.f32 %v448, %v769
      %v771 = vmul.f32 %v453, %v769
      %v772 = vmul.f32 %v458, %v769
      %v773 = vmul.f32 %v463, %v769
      %v774 = vmul.f32 %v468, %v769
      %v775 = vmul.f32 %v473, %v769
      %v776 = vmul.f32 %v478, %v769
      %v777 = vmul.f32 %v483, %v769
      %v778 = vmul.f32 %v488, %v769
      %v779 = vmul.f32 %v493, %v769
      %v780 = vmul.f32 %v498, %v769
      %v781 = vmul.f32 %v503, %v769
      %v782 = vmul.f32 %v508, %v769
      %v783 = vmul.f32 %v513, %v769
      %v784 = vmul.f32 %v518, %v769
      %v785 = vmul.f32 %v523, %v769
      %v786 = vmul.f32 %v528, %v769
      %v787 = vmul.f32 %v533, %v769
      %v788 = vmul.f32 %v538, %v769
      %v789 = vmul.f32 %v543, %v769
      %v790 = vmul.f32 %v548, %v769
      %v791 = vmul.f32 %v553, %v769
      %v792 = vmul.f32 %v558, %v769
      %v793 = vmul.f32 %v563, %v769
      %v794 = vmul.f32 %v568, %v769
      %v795 = vmul.f32 %v573, %v769
      %v796 = vmul.f32 %v578, %v769
      %v797 = vmul.f32 %v583, %v769
      %v798 = vmul.f32 %v588, %v769
      %v799 = vmul.f32 %v593, %v769
      %v800 = vmul.f32 %v598, %v769
      %v801 = vmul.f32 %v603, %v769
      %v802 = vmul.f32 %v608, %v769
      %v803 = vmul.f32 %v613, %v769
      %v804 = vmul.f32 %v618, %v769
      %v805 = vmul.f32 %v623, %v769
      %v806 = vmul.f32 %v628, %v769
      %v807 = vmul.f32 %v633, %v769
      %v808 = vmul.f32 %v638, %v769
      %v809 = vmul.f32 %v643, %v769
      %v810 = vmul.f32 %v648, %v769
      %v811 = vmul.f32 %v653, %v769
      %v812 = vmul.f32 %v658, %v769
      %v813 = vmul.f32 %v663, %v769
      %v814 = vmul.f32 %v668, %v769
      %v815 = vmul.f32 %v673, %v769
      %v816 = vmul.f32 %v678, %v769
      %v817 = vmul.f32 %v683, %v769
      %v818 = vmul.f32 %v688, %v769
      %v819 = vmul.f32 %v693, %v769
      %v820 = vmul.f32 %v698, %v769
      %v821 = vmul.f32 %v703, %v769
      %v822 = vmul.f32 %v708, %v769
      %v823 = vmul.f32 %v713, %v769
      %v824 = vmul.f32 %v718, %v769
      %v825 = vmul.f32 %v723, %v769
      %v826 = vmul.f32 %v728, %v769
      %v827 = vmul.f32 %v733, %v769
      %v828 = vmul.f32 %v738, %v769
      %v829 = vmul.f32 %v743, %v769
      %v830 = vmul.f32 %v748, %v769
      %v831 = vmul.f32 %v753, %v769
      %v832 = vmul.f32 %v758, %v769
      %v833 = vmul.f32 %v763, %v769
      %v834 = vlaneseq
      %v835 = vshrl.u32 %v834, 7
      %v836 = vsub.s32 0, %v835
      %v837 = vrot.slane %v300, %v836
      %v838 = vadd.f32 %v770, %v837
      %v839 = vadd.f32 %v771, %v837
      %v840 = vadd.f32 %v772, %v837
      %v841 = vadd.f32 %v773, %v837
      %v842 = vadd.f32 %v774, %v837
      %v843 = vadd.f32 %v775, %v837
      %v844 = vadd.f32 %v776, %v837
      %v845 = vadd.f32 %v777, %v837
      %v846 = vadd.f32 %v778, %v837
      %v847 = vadd.f32 %v779, %v837
      %v848 = vadd.f32 %v780, %v837
      %v849 = vadd.f32 %v781, %v837
      %v850 = vadd.f32 %v782, %v837
      %v851 = vadd.f32 %v783, %v837
      %v852 = vadd.f32 %v784, %v837
      %v853 = vadd.f32 %v785, %v837
      %v854 = vadd.f32 %v786, %v837
      %v855 = vadd.f32 %v787, %v837
      %v856 = vadd.f32 %v788, %v837
      %v857 = vadd.f32 %v789, %v837
      %v858 = vadd.f32 %v790, %v837
      %v859 = vadd.f32 %v791, %v837
      %v860 = vadd.f32 %v792, %v837
      %v861 = vadd.f32 %v793, %v837
      %v862 = vadd.f32 %v794, %v837
      %v863 = vadd.f32 %v795, %v837
      %v864 = vadd.f32 %v796, %v837
      %v865 = vadd.f32 %v797, %v837
      %v866 = vadd.f32 %v798, %v837
      %v867 = vadd.f32 %v799, %v837
      %v868 = vadd.f32 %v800, %v837
      %v869 = vadd.f32 %v801, %v837
      %v870 = vadd.f32 %v802, %v837
      %v871 = vadd.f32 %v803, %v837
      %v872 = vadd.f32 %v804, %v837
      %v873 = vadd.f32 %v805, %v837
      %v874 = vadd.f32 %v806, %v837
      %v875 = vadd.f32 %v807, %v837
      %v876 = vadd.f32 %v808, %v837
      %v877 = vadd.f32 %v809, %v837
      %v878 = vadd.f32 %v810, %v837
      %v879 = vadd.f32 %v811, %v837
      %v880 = vadd.f32 %v812, %v837
      %v881 = vadd.f32 %v813, %v837
      %v882 = vadd.f32 %v814, %v837
      %v883 = vadd.f32 %v815, %v837
      %v884 = vadd.f32 %v816, %v837
      %v885 = vadd.f32 %v817, %v837
      %v886 = vadd.f32 %v818, %v837
      %v887 = vadd.f32 %v819, %v837
      %v888 = vadd.f32 %v820, %v837
      %v889 = vadd.f32 %v821, %v837
      %v890 = vadd.f32 %v822, %v837
      %v891 = vadd.f32 %v823, %v837
      %v892 = vadd.f32 %v824, %v837
      %v893 = vadd.f32 %v825, %v837
      %v894 = vadd.f32 %v826, %v837
      %v895 = vadd.f32 %v827, %v837
      %v896 = vadd.f32 %v828, %v837
      %v897 = vadd.f32 %v829, %v837
      %v898 = vadd.f32 %v830, %v837
      %v899 = vadd.f32 %v831, %v837
      %v900 = vadd.f32 %v832, %v837
      %v901 = vadd.f32 %v833, %v837
      %v902 = vmax.f32 %v838, 0.0
      %v903 = vmax.f32 %v839, 0.0
      %v904 = vmax.f32 %v840, 0.0
      %v905 = vmax.f32 %v841, 0.0
      %v906 = vmax.f32 %v842, 0.0
      %v907 = vmax.f32 %v843, 0.0
      %v908 = vmax.f32 %v844, 0.0
      %v909 = vmax.f32 %v845, 0.0
      %v910 = vmax.f32 %v846, 0.0
      %v911 = vmax.f32 %v847, 0.0
      %v912 = vmax.f32 %v848, 0.0
      %v913 = vmax.f32 %v849, 0.0
      %v914 = vmax.f32 %v850, 0.0
      %v915 = vmax.f32 %v851, 0.0
      %v916 = vmax.f32 %v852, 0.0
      %v917 = vmax.f32 %v853, 0.0
      %v918 = vmax.f32 %v854, 0.0
      %v919 = vmax.f32 %v855, 0.0
      %v920 = vmax.f32 %v856, 0.0
      %v921 = vmax.f32 %v857, 0.0
      %v922 = vmax.f32 %v858, 0.0
      %v923 = vmax.f32 %v859, 0.0
      %v924 = vmax.f32 %v860, 0.0
      %v925 = vmax.f32 %v861, 0.0
      %v926 = vmax.f32 %v862, 0.0
      %v927 = vmax.f32 %v863, 0.0
      %v928 = vmax.f32 %v864, 0.0
      %v929 = vmax.f32 %v865, 0.0
      %v930 = vmax.f32 %v866, 0.0
      %v931 = vmax.f32 %v867, 0.0
      %v932 = vmax.f32 %v868, 0.0
      %v933 = vmax.f32 %v869, 0.0
      %v934 = vmax.f32 %v870, 0.0
      %v935 = vmax.f32 %v871, 0.0
      %v936 = vmax.f32 %v872, 0.0
      %v937 = vmax.f32 %v873, 0.0
      %v938 = vmax.f32 %v874, 0.0
      %v939 = vmax.f32 %v875, 0.0
      %v940 = vmax.f32 %v876, 0.0
      %v941 = vmax.f32 %v877, 0.0
      %v942 = vmax.f32 %v878, 0.0
      %v943 = vmax.f32 %v879, 0.0
      %v944 = vmax.f32 %v880, 0.0
      %v945 = vmax.f32 %v881, 0.0
      %v946 = vmax.f32 %v882, 0.0
      %v947 = vmax.f32 %v883, 0.0
      %v948 = vmax.f32 %v884, 0.0
      %v949 = vmax.f32 %v885, 0.0
      %v950 = vmax.f32 %v886, 0.0
      %v951 = vmax.f32 %v887, 0.0
      %v952 = vmax.f32 %v888, 0.0
      %v953 = vmax.f32 %v889, 0.0
      %v954 = vmax.f32 %v890, 0.0
      %v955 = vmax.f32 %v891, 0.0
      %v956 = vmax.f32 %v892, 0.0
      %v957 = vmax.f32 %v893, 0.0
      %v958 = vmax.f32 %v894, 0.0
      %v959 = vmax.f32 %v895, 0.0
      %v960 = vmax.f32 %v896, 0.0
      %v961 = vmax.f32 %v897, 0.0
      %v962 = vmax.f32 %v898, 0.0
      %v963 = vmax.f32 %v899, 0.0
      %v964 = vmax.f32 %v900, 0.0
      %v965 = vmax.f32 %v901, 0.0
      %v966 = vmax.f32 %v902, %v910
      %v967 = vmax.f32 %v903, %v911
      %v968 = vmax.f32 %v904, %v912
      %v969 = vmax.f32 %v905, %v913
      %v970 = vmax.f32 %v906, %v914
      %v971 = vmax.f32 %v907, %v915
      %v972 = vmax.f32 %v908, %v916
      %v973 = vmax.f32 %v909, %v917
      %v974 = vmax.f32 %v966, %v918
      %v975 = vmax.f32 %v967, %v919
      %v976 = vmax.f32 %v968, %v920
      %v977 = vmax.f32 %v969, %v921
      %v978 = vmax.f32 %v970, %v922
      %v979 = vmax.f32 %v971, %v923
      %v980 = vmax.f32 %v972, %v924
      %v981 = vmax.f32 %v973, %v925
      %v982 = vmax.f32 %v974, %v926
      %v983 = vmax.f32 %v975, %v927
      %v984 = vmax.f32 %v976, %v928
      %v985 = vmax.f32 %v977, %v929
      %v986 = vmax.f32 %v978, %v930
      %v987 = vmax.f32 %v979, %v931
      %v988 = vmax.f32 %v980, %v932
      %v989 = vmax.f32 %v981, %v933
      %v990 = vmax.f32 %v982, %v934
      %v991 = vmax.f32 %v983, %v935
      %v992 = vmax.f32 %v984, %v936
      %v993 = vmax.f32 %v985, %v937
      %v994 = vmax.f32 %v986, %v938
      %v995 = vmax.f32 %v987, %v939
      %v996 = vmax.f32 %v988, %v940
      %v997 = vmax.f32 %v989, %v941
      %v998 = vmax.f32 %v990, %v942
      %v999 = vmax.f32 %v991, %v943
      %v1000 = vmax.f32 %v992, %v944
      %v1001 = vmax.f32 %v993, %v945
      %v1002 = vmax.f32 %v994, %v946
      %v1003 = vmax.f32 %v995, %v947
      %v1004 = vmax.f32 %v996, %v948
      %v1005 = vmax.f32 %v997, %v949
      %v1006 = vmax.f32 %v998, %v950
      %v1007 = vmax.f32 %v999, %v951
      %v1008 = vmax.f32 %v1000, %v952
      %v1009 = vmax.f32 %v1001, %v953
      %v1010 = vmax.f32 %v1002, %v954
      %v1011 = vmax.f32 %v1003, %v955
      %v1012 = vmax.f32 %v1004, %v956
      %v1013 = vmax.f32 %v1005, %v957
      %v1014 = vmax.f32 %v1006, %v958
      %v1015 = vmax.f32 %v1007, %v959
      %v1016 = vmax.f32 %v1008, %v960
      %v1017 = vmax.f32 %v1009, %v961
      %v1018 = vmax.f32 %v1010, %v962
      %v1019 = vmax.f32 %v1011, %v963
      %v1020 = vmax.f32 %v1012, %v964
      %v1021 = vmax.f32 %v1013, %v965
      %v1022 = vld [vmem:[%s4] sm:$0xff]
      %v1023 = vld [vmem:[%s4 + $0x8] sm:$0xff]
      %v1024 = vld [vmem:[%s4 + $0x10] sm:$0xff]
      %v1025 = vld [vmem:[%s4 + $0x18] sm:$0xff]
      %v1026 = vld [vmem:[%s4 + $0x20] sm:$0xff]
      %v1027 = vld [vmem:[%s4 + $0x28] sm:$0xff]
      %v1028 = vld [vmem:[%s4 + $0x30] sm:$0xff]
      %v1029 = vld [vmem:[%s4 + $0x38] sm:$0xff]
      %v1030 = vld [vmem:[%s4 + $0x40] sm:$0xff]
      %v1031 = vld [vmem:[%s4 + $0x48] sm:$0xff]
      %v1032 = vld [vmem:[%s4 + $0x50] sm:$0xff]
      %v1033 = vld [vmem:[%s4 + $0x58] sm:$0xff]
      %v1034 = vld [vmem:[%s4 + $0x60] sm:$0xff]
      %v1035 = vld [vmem:[%s4 + $0x68] sm:$0xff]
      %v1036 = vld [vmem:[%s4 + $0x70] sm:$0xff]
      %v1037 = vld [vmem:[%s4 + $0x78] sm:$0xff]
      %v1038 = vld [vmem:[%s4 + $0x80] sm:$0xff]
      %v1039 = vld [vmem:[%s4 + $0x88] sm:$0xff]
      %v1040 = vld [vmem:[%s4 + $0x90] sm:$0xff]
      %v1041 = vld [vmem:[%s4 + $0x98] sm:$0xff]
      %v1042 = vld [vmem:[%s4 + $0xa0] sm:$0xff]
      %v1043 = vld [vmem:[%s4 + $0xa8] sm:$0xff]
      %v1044 = vld [vmem:[%s4 + $0xb0] sm:$0xff]
      %v1045 = vld [vmem:[%s4 + $0xb8] sm:$0xff]
      %v1046 = vld [vmem:[%s4 + $0xc0] sm:$0xff]
      %v1047 = vld [vmem:[%s4 + $0xc8] sm:$0xff]
      %v1048 = vld [vmem:[%s4 + $0xd0] sm:$0xff]
      %v1049 = vld [vmem:[%s4 + $0xd8] sm:$0xff]
      %v1050 = vld [vmem:[%s4 + $0xe0] sm:$0xff]
      %v1051 = vld [vmem:[%s4 + $0xe8] sm:$0xff]
      %v1052 = vld [vmem:[%s4 + $0xf0] sm:$0xff]
      %v1053 = vld [vmem:[%s4 + $0xf8] sm:$0xff]
      %v1054 = vld [vmem:[%s4 + $0x100] sm:$0xff]
      %v1055 = vld [vmem:[%s4 + $0x108] sm:$0xff]
      %v1056 = vld [vmem:[%s4 + $0x110] sm:$0xff]
      %v1057 = vld [vmem:[%s4 + $0x118] sm:$0xff]
      %v1058 = vld [vmem:[%s4 + $0x120] sm:$0xff]
      %v1059 = vld [vmem:[%s4 + $0x128] sm:$0xff]
      %v1060 = vld [vmem:[%s4 + $0x130] sm:$0xff]
      %v1061 = vld [vmem:[%s4 + $0x138] sm:$0xff]
      %v1062 = vld [vmem:[%s4 + $0x140] sm:$0xff]
      %v1063 = vld [vmem:[%s4 + $0x148] sm:$0xff]
      %v1064 = vld [vmem:[%s4 + $0x150] sm:$0xff]
      %v1065 = vld [vmem:[%s4 + $0x158] sm:$0xff]
      %v1066 = vld [vmem:[%s4 + $0x160] sm:$0xff]
      %v1067 = vld [vmem:[%s4 + $0x168] sm:$0xff]
      %v1068 = vld [vmem:[%s4 + $0x170] sm:$0xff]
      %v1069 = vld [vmem:[%s4 + $0x178] sm:$0xff]
      %v1070 = vld [vmem:[%s4 + $0x180] sm:$0xff]
      %v1071 = vld [vmem:[%s4 + $0x188] sm:$0xff]
      %v1072 = vld [vmem:[%s4 + $0x190] sm:$0xff]
      %v1073 = vld [vmem:[%s4 + $0x198] sm:$0xff]
      %v1074 = vld [vmem:[%s4 + $0x1a0] sm:$0xff]
      %v1075 = vld [vmem:[%s4 + $0x1a8] sm:$0xff]
      %v1076 = vld [vmem:[%s4 + $0x1b0] sm:$0xff]
      %v1077 = vld [vmem:[%s4 + $0x1b8] sm:$0xff]
      %v1078 = vld [vmem:[%s4 + $0x1c0] sm:$0xff]
      %v1079 = vld [vmem:[%s4 + $0x1c8] sm:$0xff]
      %v1080 = vld [vmem:[%s4 + $0x1d0] sm:$0xff]
      %v1081 = vld [vmem:[%s4 + $0x1d8] sm:$0xff]
      %v1082 = vld [vmem:[%s4 + $0x1e0] sm:$0xff]
      %v1083 = vld [vmem:[%s4 + $0x1e8] sm:$0xff]
      %v1084 = vld [vmem:[%s4 + $0x1f0] sm:$0xff]
      %v1085 = vld [vmem:[%s4 + $0x1f8] sm:$0xff]
      %v1086 = vld [vmem:[%s4 + $0x200] sm:$0xff]
      %v1087 = vld [vmem:[%s4 + $0x208] sm:$0xff]
      %v1088 = vld [vmem:[%s4 + $0x210] sm:$0xff]
      %v1089 = vld [vmem:[%s4 + $0x218] sm:$0xff]
      %v1090 = vld [vmem:[%s4 + $0x220] sm:$0xff]
      %v1091 = vld [vmem:[%s4 + $0x228] sm:$0xff]
      %v1092 = vld [vmem:[%s4 + $0x230] sm:$0xff]
      %v1093 = vld [vmem:[%s4 + $0x238] sm:$0xff]
      %v1094 = vld [vmem:[%s4 + $0x240] sm:$0xff]
      %v1095 = vld [vmem:[%s4 + $0x248] sm:$0xff]
      %v1096 = vld [vmem:[%s4 + $0x250] sm:$0xff]
      %v1097 = vld [vmem:[%s4 + $0x258] sm:$0xff]
      %v1098 = vld [vmem:[%s4 + $0x260] sm:$0xff]
      %v1099 = vld [vmem:[%s4 + $0x268] sm:$0xff]
      %v1100 = vld [vmem:[%s4 + $0x270] sm:$0xff]
      %v1101 = vld [vmem:[%s4 + $0x278] sm:$0xff]
      %v1102 = vld [vmem:[%s4 + $0x280] sm:$0xff]
      %v1103 = vld [vmem:[%s4 + $0x288] sm:$0xff]
      %v1104 = vld [vmem:[%s4 + $0x290] sm:$0xff]
      %v1105 = vld [vmem:[%s4 + $0x298] sm:$0xff]
      %v1106 = vld [vmem:[%s4 + $0x2a0] sm:$0xff]
      %v1107 = vld [vmem:[%s4 + $0x2a8] sm:$0xff]
      %v1108 = vld [vmem:[%s4 + $0x2b0] sm:$0xff]
      %v1109 = vld [vmem:[%s4 + $0x2b8] sm:$0xff]
      %v1110 = vld [vmem:[%s4 + $0x2c0] sm:$0xff]
      %v1111 = vld [vmem:[%s4 + $0x2c8] sm:$0xff]
      %v1112 = vld [vmem:[%s4 + $0x2d0] sm:$0xff]
      %v1113 = vld [vmem:[%s4 + $0x2d8] sm:$0xff]
      %v1114 = vld [vmem:[%s4 + $0x2e0] sm:$0xff]
      %v1115 = vld [vmem:[%s4 + $0x2e8] sm:$0xff]
      %v1116 = vld [vmem:[%s4 + $0x2f0] sm:$0xff]
      %v1117 = vld [vmem:[%s4 + $0x2f8] sm:$0xff]
      %v1118 = vld [vmem:[%s4 + $0x300] sm:$0xff]
      %v1119 = vld [vmem:[%s4 + $0x308] sm:$0xff]
      %v1120 = vld [vmem:[%s4 + $0x310] sm:$0xff]
      %v1121 = vld [vmem:[%s4 + $0x318] sm:$0xff]
      %v1122 = vld [vmem:[%s4 + $0x320] sm:$0xff]
      %v1123 = vld [vmem:[%s4 + $0x328] sm:$0xff]
      %v1124 = vld [vmem:[%s4 + $0x330] sm:$0xff]
      %v1125 = vld [vmem:[%s4 + $0x338] sm:$0xff]
      %v1126 = vld [vmem:[%s4 + $0x340] sm:$0xff]
      %v1127 = vld [vmem:[%s4 + $0x348] sm:$0xff]
      %v1128 = vld [vmem:[%s4 + $0x350] sm:$0xff]
      %v1129 = vld [vmem:[%s4 + $0x358] sm:$0xff]
      %v1130 = vld [vmem:[%s4 + $0x360] sm:$0xff]
      %v1131 = vld [vmem:[%s4 + $0x368] sm:$0xff]
      %v1132 = vld [vmem:[%s4 + $0x370] sm:$0xff]
      %v1133 = vld [vmem:[%s4 + $0x378] sm:$0xff]
      %v1134 = vld [vmem:[%s4 + $0x380] sm:$0xff]
      %v1135 = vld [vmem:[%s4 + $0x388] sm:$0xff]
      %v1136 = vld [vmem:[%s4 + $0x390] sm:$0xff]
      %v1137 = vld [vmem:[%s4 + $0x398] sm:$0xff]
      %v1138 = vld [vmem:[%s4 + $0x3a0] sm:$0xff]
      %v1139 = vld [vmem:[%s4 + $0x3a8] sm:$0xff]
      %v1140 = vld [vmem:[%s4 + $0x3b0] sm:$0xff]
      %v1141 = vld [vmem:[%s4 + $0x3b8] sm:$0xff]
      %v1142 = vld [vmem:[%s4 + $0x3c0] sm:$0xff]
      %v1143 = vld [vmem:[%s4 + $0x3c8] sm:$0xff]
      %v1144 = vld [vmem:[%s4 + $0x3d0] sm:$0xff]
      %v1145 = vld [vmem:[%s4 + $0x3d8] sm:$0xff]
      %v1146 = vld [vmem:[%s4 + $0x3e0] sm:$0xff]
      %v1147 = vld [vmem:[%s4 + $0x3e8] sm:$0xff]
      %v1148 = vld [vmem:[%s4 + $0x3f0] sm:$0xff]
      %v1149 = vld [vmem:[%s4 + $0x3f8] sm:$0xff]
      %vm1158 = vcmask 1046528
      %v1159 = vrot.slane %v1014, 1
      %v1160 = vrot.slane %v1015, 1
      %v1161 = vsel %vm1158, %v1159, %v1160
      %v1162 = vrot.slane %v1016, 1
      %v1163 = vsel %vm1158, %v1160, %v1162
      %v1164 = vrot.slane %v1017, 1
      %v1165 = vsel %vm1158, %v1162, %v1164
      %v1166 = vrot.slane %v1018, 1
      %v1167 = vsel %vm1158, %v1164, %v1166
      %v1168 = vrot.slane %v1019, 1
      %v1169 = vsel %vm1158, %v1166, %v1168
      %v1170 = vrot.slane %v1020, 1
      %v1171 = vsel %vm1158, %v1168, %v1170
      %v1172 = vrot.slane %v1021, 1
      %v1173 = vsel %vm1158, %v1170, %v1172
      %vm1181 = vcmask 1045504
      %v1182 = vrot.slane %v1014, 2
      %v1183 = vrot.slane %v1015, 2
      %v1184 = vsel %vm1181, %v1182, %v1183
      %v1185 = vrot.slane %v1016, 2
      %v1186 = vsel %vm1181, %v1183, %v1185
      %v1187 = vrot.slane %v1017, 2
      %v1188 = vsel %vm1181, %v1185, %v1187
      %v1189 = vrot.slane %v1018, 2
      %v1190 = vsel %vm1181, %v1187, %v1189
      %v1191 = vrot.slane %v1019, 2
      %v1192 = vsel %vm1181, %v1189, %v1191
      %v1193 = vrot.slane %v1020, 2
      %v1194 = vsel %vm1181, %v1191, %v1193
      %v1195 = vrot.slane %v1021, 2
      %v1196 = vsel %vm1181, %v1193, %v1195
      %vm1204 = vcmask 1044480
      %v1205 = vrot.slane %v1014, 3
      %v1206 = vrot.slane %v1015, 3
      %v1207 = vsel %vm1204, %v1205, %v1206
      %v1208 = vrot.slane %v1016, 3
      %v1209 = vsel %vm1204, %v1206, %v1208
      %v1210 = vrot.slane %v1017, 3
      %v1211 = vsel %vm1204, %v1208, %v1210
      %v1212 = vrot.slane %v1018, 3
      %v1213 = vsel %vm1204, %v1210, %v1212
      %v1214 = vrot.slane %v1019, 3
      %v1215 = vsel %vm1204, %v1212, %v1214
      %v1216 = vrot.slane %v1020, 3
      %v1217 = vsel %vm1204, %v1214, %v1216
      %v1218 = vrot.slane %v1021, 3
      %v1219 = vsel %vm1204, %v1216, %v1218
      %vm1227 = vcmask 1043456
      %v1228 = vrot.slane %v1014, 4
      %v1229 = vrot.slane %v1015, 4
      %v1230 = vsel %vm1227, %v1228, %v1229
      %v1231 = vrot.slane %v1016, 4
      %v1232 = vsel %vm1227, %v1229, %v1231
      %v1233 = vrot.slane %v1017, 4
      %v1234 = vsel %vm1227, %v1231, %v1233
      %v1235 = vrot.slane %v1018, 4
      %v1236 = vsel %vm1227, %v1233, %v1235
      %v1237 = vrot.slane %v1019, 4
      %v1238 = vsel %vm1227, %v1235, %v1237
      %v1239 = vrot.slane %v1020, 4
      %v1240 = vsel %vm1227, %v1237, %v1239
      %v1241 = vrot.slane %v1021, 4
      %v1242 = vsel %vm1227, %v1239, %v1241
      %vm1250 = vcmask 1042432
      %v1251 = vrot.slane %v1014, 5
      %v1252 = vrot.slane %v1015, 5
      %v1253 = vsel %vm1250, %v1251, %v1252
      %v1254 = vrot.slane %v1016, 5
      %v1255 = vsel %vm1250, %v1252, %v1254
      %v1256 = vrot.slane %v1017, 5
      %v1257 = vsel %vm1250, %v1254, %v1256
      %v1258 = vrot.slane %v1018, 5
      %v1259 = vsel %vm1250, %v1256, %v1258
      %v1260 = vrot.slane %v1019, 5
      %v1261 = vsel %vm1250, %v1258, %v1260
      %v1262 = vrot.slane %v1020, 5
      %v1263 = vsel %vm1250, %v1260, %v1262
      %v1264 = vrot.slane %v1021, 5
      %v1265 = vsel %vm1250, %v1262, %v1264
      %vm1273 = vcmask 1041408
      %v1274 = vrot.slane %v1014, 6
      %v1275 = vrot.slane %v1015, 6
      %v1276 = vsel %vm1273, %v1274, %v1275
      %v1277 = vrot.slane %v1016, 6
      %v1278 = vsel %vm1273, %v1275, %v1277
      %v1279 = vrot.slane %v1017, 6
      %v1280 = vsel %vm1273, %v1277, %v1279
      %v1281 = vrot.slane %v1018, 6
      %v1282 = vsel %vm1273, %v1279, %v1281
      %v1283 = vrot.slane %v1019, 6
      %v1284 = vsel %vm1273, %v1281, %v1283
      %v1285 = vrot.slane %v1020, 6
      %v1286 = vsel %vm1273, %v1283, %v1285
      %v1287 = vrot.slane %v1021, 6
      %v1288 = vsel %vm1273, %v1285, %v1287
      %vm1296 = vcmask 1040384
      %v1297 = vrot.slane %v1014, 7
      %v1298 = vrot.slane %v1015, 7
      %v1299 = vsel %vm1296, %v1297, %v1298
      %v1300 = vrot.slane %v1016, 7
      %v1301 = vsel %vm1296, %v1298, %v1300
      %v1302 = vrot.slane %v1017, 7
      %v1303 = vsel %vm1296, %v1300, %v1302
      %v1304 = vrot.slane %v1018, 7
      %v1305 = vsel %vm1296, %v1302, %v1304
      %v1306 = vrot.slane %v1019, 7
      %v1307 = vsel %vm1296, %v1304, %v1306
      %v1308 = vrot.slane %v1020, 7
      %v1309 = vsel %vm1296, %v1306, %v1308
      %v1310 = vrot.slane %v1021, 7
      %v1311 = vsel %vm1296, %v1308, %v1310
      %1319 = vmatprep.subr.mxu0 0.0
      %1320 = vmatpush1.msra.mxu0 %v1037
      %1321 = vmatprep.subr.mxu0 0.0
      %1322 = vmatpush1.msra.mxu0 %v1036
      %1323 = vmatprep.subr.mxu0 0.0
      %1324 = vmatpush1.msra.mxu0 %v1035
      %1325 = vmatprep.subr.mxu0 0.0
      %1326 = vmatpush1.msra.mxu0 %v1034
      %1327 = vmatprep.subr.mxu0 0.0
      %1328 = vmatpush1.msra.mxu0 %v1033
      %1329 = vmatprep.subr.mxu0 0.0
      %1330 = vmatpush1.msra.mxu0 %v1032
      %1331 = vmatprep.subr.mxu0 0.0
      %1332 = vmatpush1.msra.mxu0 %v1031
      %1333 = vmatprep.subr.mxu0 0.0
      %1334 = vmatpush1.msra.mxu0 %v1030
      %1335 = vmatprep.subr.mxu0 0.0
      %1336 = vmatpush1.msra.mxu0 %v1029
      %1337 = vmatprep.subr.mxu0 0.0
      %1338 = vmatpush1.msra.mxu0 %v1028
      %1339 = vmatprep.subr.mxu0 0.0
      %1340 = vmatpush1.msra.mxu0 %v1027
      %1341 = vmatprep.subr.mxu0 0.0
      %1342 = vmatpush1.msra.mxu0 %v1026
      %1343 = vmatprep.subr.mxu0 0.0
      %1344 = vmatpush1.msra.mxu0 %v1025
      %1345 = vmatprep.subr.mxu0 0.0
      %1346 = vmatpush1.msra.mxu0 %v1024
      %1347 = vmatprep.subr.mxu0 0.0
      %1348 = vmatpush1.msra.mxu0 %v1023
      %1349 = vmatprep.subr.mxu0 0.0
      %1350 = vmatpush1.msra.mxu0 %v1022
      %1351 = vmatprep.subr.mxu0 0.0
      %1352 = vmatpush2.msra.mxu0 %v1053
      %1353 = vmatprep.subr.mxu0 0.0
      %1354 = vmatpush2.msra.mxu0 %v1052
      %1355 = vmatprep.subr.mxu0 0.0
      %1356 = vmatpush2.msra.mxu0 %v1051
      %1357 = vmatprep.subr.mxu0 0.0
      %1358 = vmatpush2.msra.mxu0 %v1050
      %1359 = vmatprep.subr.mxu0 0.0
      %1360 = vmatpush2.msra.mxu0 %v1049
      %1361 = vmatprep.subr.mxu0 0.0
      %1362 = vmatpush2.msra.mxu0 %v1048
      %1363 = vmatprep.subr.mxu0 0.0
      %1364 = vmatpush2.msra.mxu0 %v1047
      %1365 = vmatprep.subr.mxu0 0.0
      %1366 = vmatpush2.msra.mxu0 %v1046
      %1367 = vmatprep.subr.mxu0 0.0
      %1368 = vmatpush2.msra.mxu0 %v1045
      %1369 = vmatprep.subr.mxu0 0.0
      %1370 = vmatpush2.msra.mxu0 %v1044
      %1371 = vmatprep.subr.mxu0 0.0
      %1372 = vmatpush2.msra.mxu0 %v1043
      %1373 = vmatprep.subr.mxu0 0.0
      %1374 = vmatpush2.msra.mxu0 %v1042
      %1375 = vmatprep.subr.mxu0 0.0
      %1376 = vmatpush2.msra.mxu0 %v1041
      %1377 = vmatprep.subr.mxu0 0.0
      %1378 = vmatpush2.msra.mxu0 %v1040
      %1379 = vmatprep.subr.mxu0 0.0
      %1380 = vmatpush2.msra.mxu0 %v1039
      %1381 = vmatprep.subr.mxu0 0.0
      %1382 = vmatpush2.msra.mxu0 %v1038
      %1383 = vmatprep.mubr.f32.mxu0 %v1161
      %1384 = vmatmul.mubr.f32.gmra.mxu0 %v1014
      %v1385 = vpop.f32.mrf.mxu0
      %v1386 = vadd.f32 0.0, %v1385
      %v1387 = vpop.f32.mrf.mxu0
      %1388 = vmatprep.mubr.f32.mxu0 %v1163
      %1389 = vmatmul.mubr.f32.gmra.mxu0 %v1015
      %v1390 = vpop.f32.mrf.mxu0
      %v1391 = vadd.f32 0.0, %v1390
      %v1392 = vpop.f32.mrf.mxu0
      %1393 = vmatprep.mubr.f32.mxu0 %v1165
      %1394 = vmatmul.mubr.f32.gmra.mxu0 %v1016
      %v1395 = vpop.f32.mrf.mxu0
      %v1396 = vadd.f32 0.0, %v1395
      %v1397 = vpop.f32.mrf.mxu0
      %1398 = vmatprep.mubr.f32.mxu0 %v1167
      %1399 = vmatmul.mubr.f32.gmra.mxu0 %v1017
      %v1400 = vpop.f32.mrf.mxu0
      %v1401 = vadd.f32 0.0, %v1400
      %v1402 = vpop.f32.mrf.mxu0
      %1403 = vmatprep.mubr.f32.mxu0 %v1169
      %1404 = vmatmul.mubr.f32.gmra.mxu0 %v1018
      %v1405 = vpop.f32.mrf.mxu0
      %v1406 = vadd.f32 0.0, %v1405
      %v1407 = vpop.f32.mrf.mxu0
      %1408 = vmatprep.mubr.f32.mxu0 %v1171
      %1409 = vmatmul.mubr.f32.gmra.mxu0 %v1019
      %v1410 = vpop.f32.mrf.mxu0
      %v1411 = vadd.f32 0.0, %v1410
      %v1412 = vpop.f32.mrf.mxu0
      %1413 = vmatprep.mubr.f32.mxu0 %v1173
      %1414 = vmatmul.mubr.f32.gmra.mxu0 %v1020
      %v1415 = vpop.f32.mrf.mxu0
      %v1416 = vadd.f32 0.0, %v1415
      %v1417 = vpop.f32.mrf.mxu0
      %1418 = vdwg.mxu0
      %1419 = vmatprep.subr.mxu0 0.0
      %1420 = vmatpush1.msra.mxu0 %v1069
      %1421 = vmatprep.subr.mxu0 0.0
      %1422 = vmatpush1.msra.mxu0 %v1068
      %1423 = vmatprep.subr.mxu0 0.0
      %1424 = vmatpush1.msra.mxu0 %v1067
      %1425 = vmatprep.subr.mxu0 0.0
      %1426 = vmatpush1.msra.mxu0 %v1066
      %1427 = vmatprep.subr.mxu0 0.0
      %1428 = vmatpush1.msra.mxu0 %v1065
      %1429 = vmatprep.subr.mxu0 0.0
      %1430 = vmatpush1.msra.mxu0 %v1064
      %1431 = vmatprep.subr.mxu0 0.0
      %1432 = vmatpush1.msra.mxu0 %v1063
      %1433 = vmatprep.subr.mxu0 0.0
      %1434 = vmatpush1.msra.mxu0 %v1062
      %1435 = vmatprep.subr.mxu0 0.0
      %1436 = vmatpush1.msra.mxu0 %v1061
      %1437 = vmatprep.subr.mxu0 0.0
      %1438 = vmatpush1.msra.mxu0 %v1060
      %1439 = vmatprep.subr.mxu0 0.0
      %1440 = vmatpush1.msra.mxu0 %v1059
      %1441 = vmatprep.subr.mxu0 0.0
      %1442 = vmatpush1.msra.mxu0 %v1058
      %1443 = vmatprep.subr.mxu0 0.0
      %1444 = vmatpush1.msra.mxu0 %v1057
      %1445 = vmatprep.subr.mxu0 0.0
      %1446 = vmatpush1.msra.mxu0 %v1056
      %1447 = vmatprep.subr.mxu0 0.0
      %1448 = vmatpush1.msra.mxu0 %v1055
      %1449 = vmatprep.subr.mxu0 0.0
      %1450 = vmatpush1.msra.mxu0 %v1054
      %1451 = vmatprep.subr.mxu0 0.0
      %1452 = vmatpush2.msra.mxu0 %v1085
      %1453 = vmatprep.subr.mxu0 0.0
      %1454 = vmatpush2.msra.mxu0 %v1084
      %1455 = vmatprep.subr.mxu0 0.0
      %1456 = vmatpush2.msra.mxu0 %v1083
      %1457 = vmatprep.subr.mxu0 0.0
      %1458 = vmatpush2.msra.mxu0 %v1082
      %1459 = vmatprep.subr.mxu0 0.0
      %1460 = vmatpush2.msra.mxu0 %v1081
      %1461 = vmatprep.subr.mxu0 0.0
      %1462 = vmatpush2.msra.mxu0 %v1080
      %1463 = vmatprep.subr.mxu0 0.0
      %1464 = vmatpush2.msra.mxu0 %v1079
      %1465 = vmatprep.subr.mxu0 0.0
      %1466 = vmatpush2.msra.mxu0 %v1078
      %1467 = vmatprep.subr.mxu0 0.0
      %1468 = vmatpush2.msra.mxu0 %v1077
      %1469 = vmatprep.subr.mxu0 0.0
      %1470 = vmatpush2.msra.mxu0 %v1076
      %1471 = vmatprep.subr.mxu0 0.0
      %1472 = vmatpush2.msra.mxu0 %v1075
      %1473 = vmatprep.subr.mxu0 0.0
      %1474 = vmatpush2.msra.mxu0 %v1074
      %1475 = vmatprep.subr.mxu0 0.0
      %1476 = vmatpush2.msra.mxu0 %v1073
      %1477 = vmatprep.subr.mxu0 0.0
      %1478 = vmatpush2.msra.mxu0 %v1072
      %1479 = vmatprep.subr.mxu0 0.0
      %1480 = vmatpush2.msra.mxu0 %v1071
      %1481 = vmatprep.subr.mxu0 0.0
      %1482 = vmatpush2.msra.mxu0 %v1070
      %1483 = vmatprep.mubr.f32.mxu0 %v1207
      %1484 = vmatmul.mubr.f32.gmra.mxu0 %v1184
      %v1485 = vpop.f32.mrf.mxu0
      %v1486 = vadd.f32 %v1386, %v1485
      %v1487 = vpop.f32.mrf.mxu0
      %1488 = vmatprep.mubr.f32.mxu0 %v1209
      %1489 = vmatmul.mubr.f32.gmra.mxu0 %v1186
      %v1490 = vpop.f32.mrf.mxu0
      %v1491 = vadd.f32 %v1391, %v1490
      %v1492 = vpop.f32.mrf.mxu0
      %1493 = vmatprep.mubr.f32.mxu0 %v1211
      %1494 = vmatmul.mubr.f32.gmra.mxu0 %v1188
      %v1495 = vpop.f32.mrf.mxu0
      %v1496 = vadd.f32 %v1396, %v1495
      %v1497 = vpop.f32.mrf.mxu0
      %1498 = vmatprep.mubr.f32.mxu0 %v1213
      %1499 = vmatmul.mubr.f32.gmra.mxu0 %v1190
      %v1500 = vpop.f32.mrf.mxu0
      %v1501 = vadd.f32 %v1401, %v1500
      %v1502 = vpop.f32.mrf.mxu0
      %1503 = vmatprep.mubr.f32.mxu0 %v1215
      %1504 = vmatmul.mubr.f32.gmra.mxu0 %v1192
      %v1505 = vpop.f32.mrf.mxu0
      %v1506 = vadd.f32 %v1406, %v1505
      %v1507 = vpop.f32.mrf.mxu0
      %1508 = vmatprep.mubr.f32.mxu0 %v1217
      %1509 = vmatmul.mubr.f32.gmra.mxu0 %v1194
      %v1510 = vpop.f32.mrf.mxu0
      %v1511 = vadd.f32 %v1411, %v1510
      %v1512 = vpop.f32.mrf.mxu0
      %1513 = vmatprep.mubr.f32.mxu0 %v1219
      %1514 = vmatmul.mubr.f32.gmra.mxu0 %v1196
      %v1515 = vpop.f32.mrf.mxu0
      %v1516 = vadd.f32 %v1416, %v1515
      %v1517 = vpop.f32.mrf.mxu0
      %1518 = vdwg.mxu0
      %1519 = vmatprep.subr.mxu0 0.0
      %1520 = vmatpush1.msra.mxu0 %v1101
      %1521 = vmatprep.subr.mxu0 0.0
      %1522 = vmatpush1.msra.mxu0 %v1100
      %1523 = vmatprep.subr.mxu0 0.0
      %1524 = vmatpush1.msra.mxu0 %v1099
      %1525 = vmatprep.subr.mxu0 0.0
      %1526 = vmatpush1.msra.mxu0 %v1098
      %1527 = vmatprep.subr.mxu0 0.0
      %1528 = vmatpush1.msra.mxu0 %v1097
      %1529 = vmatprep.subr.mxu0 0.0
      %1530 = vmatpush1.msra.mxu0 %v1096
      %1531 = vmatprep.subr.mxu0 0.0
      %1532 = vmatpush1.msra.mxu0 %v1095
      %1533 = vmatprep.subr.mxu0 0.0
      %1534 = vmatpush1.msra.mxu0 %v1094
      %1535 = vmatprep.subr.mxu0 0.0
      %1536 = vmatpush1.msra.mxu0 %v1093
      %1537 = vmatprep.subr.mxu0 0.0
      %1538 = vmatpush1.msra.mxu0 %v1092
      %1539 = vmatprep.subr.mxu0 0.0
      %1540 = vmatpush1.msra.mxu0 %v1091
      %1541 = vmatprep.subr.mxu0 0.0
      %1542 = vmatpush1.msra.mxu0 %v1090
      %1543 = vmatprep.subr.mxu0 0.0
      %1544 = vmatpush1.msra.mxu0 %v1089
      %1545 = vmatprep.subr.mxu0 0.0
      %1546 = vmatpush1.msra.mxu0 %v1088
      %1547 = vmatprep.subr.mxu0 0.0
      %1548 = vmatpush1.msra.mxu0 %v1087
      %1549 = vmatprep.subr.mxu0 0.0
      %1550 = vmatpush1.msra.mxu0 %v1086
      %1551 = vmatprep.subr.mxu0 0.0
      %1552 = vmatpush2.msra.mxu0 %v1117
      %1553 = vmatprep.subr.mxu0 0.0
      %1554 = vmatpush2.msra.mxu0 %v1116
      %1555 = vmatprep.subr.mxu0 0.0
      %1556 = vmatpush2.msra.mxu0 %v1115
      %1557 = vmatprep.subr.mxu0 0.0
      %1558 = vmatpush2.msra.mxu0 %v1114
      %1559 = vmatprep.subr.mxu0 0.0
      %1560 = vmatpush2.msra.mxu0 %v1113
      %1561 = vmatprep.subr.mxu0 0.0
      %1562 = vmatpush2.msra.mxu0 %v1112
      %1563 = vmatprep.subr.mxu0 0.0
      %1564 = vmatpush2.msra.mxu0 %v1111
      %1565 = vmatprep.subr.mxu0 0.0
      %1566 = vmatpush2.msra.mxu0 %v1110
      %1567 = vmatprep.subr.mxu0 0.0
      %1568 = vmatpush2.msra.mxu0 %v1109
      %1569 = vmatprep.subr.mxu0 0.0
      %1570 = vmatpush2.msra.mxu0 %v1108
      %1571 = vmatprep.subr.mxu0 0.0
      %1572 = vmatpush2.msra.mxu0 %v1107
      %1573 = vmatprep.subr.mxu0 0.0
      %1574 = vmatpush2.msra.mxu0 %v1106
      %1575 = vmatprep.subr.mxu0 0.0
      %1576 = vmatpush2.msra.mxu0 %v1105
      %1577 = vmatprep.subr.mxu0 0.0
      %1578 = vmatpush2.msra.mxu0 %v1104
      %1579 = vmatprep.subr.mxu0 0.0
      %1580 = vmatpush2.msra.mxu0 %v1103
      %1581 = vmatprep.subr.mxu0 0.0
      %1582 = vmatpush2.msra.mxu0 %v1102
      %1583 = vmatprep.mubr.f32.mxu0 %v1253
      %1584 = vmatmul.mubr.f32.gmra.mxu0 %v1230
      %v1585 = vpop.f32.mrf.mxu0
      %v1586 = vadd.f32 %v1486, %v1585
      %v1587 = vpop.f32.mrf.mxu0
      %1588 = vmatprep.mubr.f32.mxu0 %v1255
      %1589 = vmatmul.mubr.f32.gmra.mxu0 %v1232
      %v1590 = vpop.f32.mrf.mxu0
      %v1591 = vadd.f32 %v1491, %v1590
      %v1592 = vpop.f32.mrf.mxu0
      %1593 = vmatprep.mubr.f32.mxu0 %v1257
      %1594 = vmatmul.mubr.f32.gmra.mxu0 %v1234
      %v1595 = vpop.f32.mrf.mxu0
      %v1596 = vadd.f32 %v1496, %v1595
      %v1597 = vpop.f32.mrf.mxu0
      %1598 = vmatprep.mubr.f32.mxu0 %v1259
      %1599 = vmatmul.mubr.f32.gmra.mxu0 %v1236
      %v1600 = vpop.f32.mrf.mxu0
      %v1601 = vadd.f32 %v1501, %v1600
      %v1602 = vpop.f32.mrf.mxu0
      %1603 = vmatprep.mubr.f32.mxu0 %v1261
      %1604 = vmatmul.mubr.f32.gmra.mxu0 %v1238
      %v1605 = vpop.f32.mrf.mxu0
      %v1606 = vadd.f32 %v1506, %v1605
      %v1607 = vpop.f32.mrf.mxu0
      %1608 = vmatprep.mubr.f32.mxu0 %v1263
      %1609 = vmatmul.mubr.f32.gmra.mxu0 %v1240
      %v1610 = vpop.f32.mrf.mxu0
      %v1611 = vadd.f32 %v1511, %v1610
      %v1612 = vpop.f32.mrf.mxu0
      %1613 = vmatprep.mubr.f32.mxu0 %v1265
      %1614 = vmatmul.mubr.f32.gmra.mxu0 %v1242
      %v1615 = vpop.f32.mrf.mxu0
      %v1616 = vadd.f32 %v1516, %v1615
      %v1617 = vpop.f32.mrf.mxu0
      %1618 = vdwg.mxu0
      %1619 = vmatprep.subr.mxu0 0.0
      %1620 = vmatpush1.msra.mxu0 %v1133
      %1621 = vmatprep.subr.mxu0 0.0
      %1622 = vmatpush1.msra.mxu0 %v1132
      %1623 = vmatprep.subr.mxu0 0.0
      %1624 = vmatpush1.msra.mxu0 %v1131
      %1625 = vmatprep.subr.mxu0 0.0
      %1626 = vmatpush1.msra.mxu0 %v1130
      %1627 = vmatprep.subr.mxu0 0.0
      %1628 = vmatpush1.msra.mxu0 %v1129
      %1629 = vmatprep.subr.mxu0 0.0
      %1630 = vmatpush1.msra.mxu0 %v1128
      %1631 = vmatprep.subr.mxu0 0.0
      %1632 = vmatpush1.msra.mxu0 %v1127
      %1633 = vmatprep.subr.mxu0 0.0
      %1634 = vmatpush1.msra.mxu0 %v1126
      %1635 = vmatprep.subr.mxu0 0.0
      %1636 = vmatpush1.msra.mxu0 %v1125
      %1637 = vmatprep.subr.mxu0 0.0
      %1638 = vmatpush1.msra.mxu0 %v1124
      %1639 = vmatprep.subr.mxu0 0.0
      %1640 = vmatpush1.msra.mxu0 %v1123
      %1641 = vmatprep.subr.mxu0 0.0
      %1642 = vmatpush1.msra.mxu0 %v1122
      %1643 = vmatprep.subr.mxu0 0.0
      %1644 = vmatpush1.msra.mxu0 %v1121
      %1645 = vmatprep.subr.mxu0 0.0
      %1646 = vmatpush1.msra.mxu0 %v1120
      %1647 = vmatprep.subr.mxu0 0.0
      %1648 = vmatpush1.msra.mxu0 %v1119
      %1649 = vmatprep.subr.mxu0 0.0
      %1650 = vmatpush1.msra.mxu0 %v1118
      %1651 = vmatprep.subr.mxu0 0.0
      %1652 = vmatpush2.msra.mxu0 %v1149
      %1653 = vmatprep.subr.mxu0 0.0
      %1654 = vmatpush2.msra.mxu0 %v1148
      %1655 = vmatprep.subr.mxu0 0.0
      %1656 = vmatpush2.msra.mxu0 %v1147
      %1657 = vmatprep.subr.mxu0 0.0
      %1658 = vmatpush2.msra.mxu0 %v1146
      %1659 = vmatprep.subr.mxu0 0.0
      %1660 = vmatpush2.msra.mxu0 %v1145
      %1661 = vmatprep.subr.mxu0 0.0
      %1662 = vmatpush2.msra.mxu0 %v1144
      %1663 = vmatprep.subr.mxu0 0.0
      %1664 = vmatpush2.msra.mxu0 %v1143
      %1665 = vmatprep.subr.mxu0 0.0
      %1666 = vmatpush2.msra.mxu0 %v1142
      %1667 = vmatprep.subr.mxu0 0.0
      %1668 = vmatpush2.msra.mxu0 %v1141
      %1669 = vmatprep.subr.mxu0 0.0
      %1670 = vmatpush2.msra.mxu0 %v1140
      %1671 = vmatprep.subr.mxu0 0.0
      %1672 = vmatpush2.msra.mxu0 %v1139
      %1673 = vmatprep.subr.mxu0 0.0
      %1674 = vmatpush2.msra.mxu0 %v1138
      %1675 = vmatprep.subr.mxu0 0.0
      %1676 = vmatpush2.msra.mxu0 %v1137
      %1677 = vmatprep.subr.mxu0 0.0
      %1678 = vmatpush2.msra.mxu0 %v1136
      %1679 = vmatprep.subr.mxu0 0.0
      %1680 = vmatpush2.msra.mxu0 %v1135
      %1681 = vmatprep.subr.mxu0 0.0
      %1682 = vmatpush2.msra.mxu0 %v1134
      %1683 = vmatprep.mubr.f32.mxu0 %v1299
      %1684 = vmatmul.mubr.f32.gmra.mxu0 %v1276
      %v1685 = vpop.f32.mrf.mxu0
      %v1686 = vadd.f32 %v1586, %v1685
      %v1687 = vpop.f32.mrf.mxu0
      %1688 = vmatprep.mubr.f32.mxu0 %v1301
      %1689 = vmatmul.mubr.f32.gmra.mxu0 %v1278
      %v1690 = vpop.f32.mrf.mxu0
      %v1691 = vadd.f32 %v1591, %v1690
      %v1692 = vpop.f32.mrf.mxu0
      %1693 = vmatprep.mubr.f32.mxu0 %v1303
      %1694 = vmatmul.mubr.f32.gmra.mxu0 %v1280
      %v1695 = vpop.f32.mrf.mxu0
      %v1696 = vadd.f32 %v1596, %v1695
      %v1697 = vpop.f32.mrf.mxu0
      %1698 = vmatprep.mubr.f32.mxu0 %v1305
      %1699 = vmatmul.mubr.f32.gmra.mxu0 %v1282
      %v1700 = vpop.f32.mrf.mxu0
      %v1701 = vadd.f32 %v1601, %v1700
      %v1702 = vpop.f32.mrf.mxu0
      %1703 = vmatprep.mubr.f32.mxu0 %v1307
      %1704 = vmatmul.mubr.f32.gmra.mxu0 %v1284
      %v1705 = vpop.f32.mrf.mxu0
      %v1706 = vadd.f32 %v1606, %v1705
      %v1707 = vpop.f32.mrf.mxu0
      %1708 = vmatprep.mubr.f32.mxu0 %v1309
      %1709 = vmatmul.mubr.f32.gmra.mxu0 %v1286
      %v1710 = vpop.f32.mrf.mxu0
      %v1711 = vadd.f32 %v1611, %v1710
      %v1712 = vpop.f32.mrf.mxu0
      %1713 = vmatprep.mubr.f32.mxu0 %v1311
      %1714 = vmatmul.mubr.f32.gmra.mxu0 %v1288
      %v1715 = vpop.f32.mrf.mxu0
      %v1716 = vadd.f32 %v1616, %v1715
      %v1717 = vpop.f32.mrf.mxu0
      %1718 = vdwg.mxu0
      %v1719 = vlaneseq
      %v1720 = vshrl.u32 %v1719, 7
      %v1721 = vsub.s32 1, %v1720
      %v1722 = vrot.slane %v299, %v1721
      %v1723 = vmul.f32 %v1686, %v1722
      %v1724 = vmul.f32 %v1691, %v1722
      %v1725 = vmul.f32 %v1696, %v1722
      %v1726 = vmul.f32 %v1701, %v1722
      %v1727 = vmul.f32 %v1706, %v1722
      %v1728 = vmul.f32 %v1711, %v1722
      %v1729 = vmul.f32 %v1716, %v1722
      %v1730 = vlaneseq
      %v1731 = vshrl.u32 %v1730, 7
      %v1732 = vsub.s32 1, %v1731
      %v1733 = vrot.slane %v300, %v1732
      %v1734 = vadd.f32 %v1723, %v1733
      %v1735 = vadd.f32 %v1724, %v1733
      %v1736 = vadd.f32 %v1725, %v1733
      %v1737 = vadd.f32 %v1726, %v1733
      %v1738 = vadd.f32 %v1727, %v1733
      %v1739 = vadd.f32 %v1728, %v1733
      %v1740 = vadd.f32 %v1729, %v1733
      %v1741 = vmax.f32 %v1734, 0.0
      %v1742 = vmax.f32 %v1735, 0.0
      %v1743 = vmax.f32 %v1736, 0.0
      %v1744 = vmax.f32 %v1737, 0.0
      %v1745 = vmax.f32 %v1738, 0.0
      %v1746 = vmax.f32 %v1739, 0.0
      %v1747 = vmax.f32 %v1740, 0.0
      %s1748 = scalar_lea.vmem %s4, 1024
      %v1749 = vld [vmem:[%s1748] sm:$0xff]
      %v1750 = vld [vmem:[%s1748 + $0x8] sm:$0xff]
      %v1751 = vld [vmem:[%s1748 + $0x10] sm:$0xff]
      %v1752 = vld [vmem:[%s1748 + $0x18] sm:$0xff]
      %v1753 = vld [vmem:[%s1748 + $0x20] sm:$0xff]
      %v1754 = vld [vmem:[%s1748 + $0x28] sm:$0xff]
      %v1755 = vld [vmem:[%s1748 + $0x30] sm:$0xff]
      %v1756 = vld [vmem:[%s1748 + $0x38] sm:$0xff]
      %v1757 = vld [vmem:[%s1748 + $0x40] sm:$0xff]
      %v1758 = vld [vmem:[%s1748 + $0x48] sm:$0xff]
      %v1759 = vld [vmem:[%s1748 + $0x50] sm:$0xff]
      %v1760 = vld [vmem:[%s1748 + $0x58] sm:$0xff]
      %v1761 = vld [vmem:[%s1748 + $0x60] sm:$0xff]
      %v1762 = vld [vmem:[%s1748 + $0x68] sm:$0xff]
      %v1763 = vld [vmem:[%s1748 + $0x70] sm:$0xff]
      %v1764 = vld [vmem:[%s1748 + $0x78] sm:$0xff]
      %v1765 = vld [vmem:[%s1748 + $0x80] sm:$0xff]
      %v1766 = vld [vmem:[%s1748 + $0x88] sm:$0xff]
      %v1767 = vld [vmem:[%s1748 + $0x90] sm:$0xff]
      %v1768 = vld [vmem:[%s1748 + $0x98] sm:$0xff]
      %v1769 = vld [vmem:[%s1748 + $0xa0] sm:$0xff]
      %v1770 = vld [vmem:[%s1748 + $0xa8] sm:$0xff]
      %v1771 = vld [vmem:[%s1748 + $0xb0] sm:$0xff]
      %v1772 = vld [vmem:[%s1748 + $0xb8] sm:$0xff]
      %v1773 = vld [vmem:[%s1748 + $0xc0] sm:$0xff]
      %v1774 = vld [vmem:[%s1748 + $0xc8] sm:$0xff]
      %v1775 = vld [vmem:[%s1748 + $0xd0] sm:$0xff]
      %v1776 = vld [vmem:[%s1748 + $0xd8] sm:$0xff]
      %v1777 = vld [vmem:[%s1748 + $0xe0] sm:$0xff]
      %v1778 = vld [vmem:[%s1748 + $0xe8] sm:$0xff]
      %v1779 = vld [vmem:[%s1748 + $0xf0] sm:$0xff]
      %v1780 = vld [vmem:[%s1748 + $0xf8] sm:$0xff]
      %v1781 = vld [vmem:[%s1748 + $0x100] sm:$0xff]
      %v1782 = vld [vmem:[%s1748 + $0x108] sm:$0xff]
      %v1783 = vld [vmem:[%s1748 + $0x110] sm:$0xff]
      %v1784 = vld [vmem:[%s1748 + $0x118] sm:$0xff]
      %v1785 = vld [vmem:[%s1748 + $0x120] sm:$0xff]
      %v1786 = vld [vmem:[%s1748 + $0x128] sm:$0xff]
      %v1787 = vld [vmem:[%s1748 + $0x130] sm:$0xff]
      %v1788 = vld [vmem:[%s1748 + $0x138] sm:$0xff]
      %v1789 = vld [vmem:[%s1748 + $0x140] sm:$0xff]
      %v1790 = vld [vmem:[%s1748 + $0x148] sm:$0xff]
      %v1791 = vld [vmem:[%s1748 + $0x150] sm:$0xff]
      %v1792 = vld [vmem:[%s1748 + $0x158] sm:$0xff]
      %v1793 = vld [vmem:[%s1748 + $0x160] sm:$0xff]
      %v1794 = vld [vmem:[%s1748 + $0x168] sm:$0xff]
      %v1795 = vld [vmem:[%s1748 + $0x170] sm:$0xff]
      %v1796 = vld [vmem:[%s1748 + $0x178] sm:$0xff]
      %v1797 = vld [vmem:[%s1748 + $0x180] sm:$0xff]
      %v1798 = vld [vmem:[%s1748 + $0x188] sm:$0xff]
      %v1799 = vld [vmem:[%s1748 + $0x190] sm:$0xff]
      %v1800 = vld [vmem:[%s1748 + $0x198] sm:$0xff]
      %v1801 = vld [vmem:[%s1748 + $0x1a0] sm:$0xff]
      %v1802 = vld [vmem:[%s1748 + $0x1a8] sm:$0xff]
      %v1803 = vld [vmem:[%s1748 + $0x1b0] sm:$0xff]
      %v1804 = vld [vmem:[%s1748 + $0x1b8] sm:$0xff]
      %v1805 = vld [vmem:[%s1748 + $0x1c0] sm:$0xff]
      %v1806 = vld [vmem:[%s1748 + $0x1c8] sm:$0xff]
      %v1807 = vld [vmem:[%s1748 + $0x1d0] sm:$0xff]
      %v1808 = vld [vmem:[%s1748 + $0x1d8] sm:$0xff]
      %v1809 = vld [vmem:[%s1748 + $0x1e0] sm:$0xff]
      %v1810 = vld [vmem:[%s1748 + $0x1e8] sm:$0xff]
      %v1811 = vld [vmem:[%s1748 + $0x1f0] sm:$0xff]
      %v1812 = vld [vmem:[%s1748 + $0x1f8] sm:$0xff]
      %v1813 = vld [vmem:[%s1748 + $0x200] sm:$0xff]
      %v1814 = vld [vmem:[%s1748 + $0x208] sm:$0xff]
      %v1815 = vld [vmem:[%s1748 + $0x210] sm:$0xff]
      %v1816 = vld [vmem:[%s1748 + $0x218] sm:$0xff]
      %v1817 = vld [vmem:[%s1748 + $0x220] sm:$0xff]
      %v1818 = vld [vmem:[%s1748 + $0x228] sm:$0xff]
      %v1819 = vld [vmem:[%s1748 + $0x230] sm:$0xff]
      %v1820 = vld [vmem:[%s1748 + $0x238] sm:$0xff]
      %v1821 = vld [vmem:[%s1748 + $0x240] sm:$0xff]
      %v1822 = vld [vmem:[%s1748 + $0x248] sm:$0xff]
      %v1823 = vld [vmem:[%s1748 + $0x250] sm:$0xff]
      %v1824 = vld [vmem:[%s1748 + $0x258] sm:$0xff]
      %v1825 = vld [vmem:[%s1748 + $0x260] sm:$0xff]
      %v1826 = vld [vmem:[%s1748 + $0x268] sm:$0xff]
      %v1827 = vld [vmem:[%s1748 + $0x270] sm:$0xff]
      %v1828 = vld [vmem:[%s1748 + $0x278] sm:$0xff]
      %v1829 = vld [vmem:[%s1748 + $0x280] sm:$0xff]
      %v1830 = vld [vmem:[%s1748 + $0x288] sm:$0xff]
      %v1831 = vld [vmem:[%s1748 + $0x290] sm:$0xff]
      %v1832 = vld [vmem:[%s1748 + $0x298] sm:$0xff]
      %v1833 = vld [vmem:[%s1748 + $0x2a0] sm:$0xff]
      %v1834 = vld [vmem:[%s1748 + $0x2a8] sm:$0xff]
      %v1835 = vld [vmem:[%s1748 + $0x2b0] sm:$0xff]
      %v1836 = vld [vmem:[%s1748 + $0x2b8] sm:$0xff]
      %v1837 = vld [vmem:[%s1748 + $0x2c0] sm:$0xff]
      %v1838 = vld [vmem:[%s1748 + $0x2c8] sm:$0xff]
      %v1839 = vld [vmem:[%s1748 + $0x2d0] sm:$0xff]
      %v1840 = vld [vmem:[%s1748 + $0x2d8] sm:$0xff]
      %v1841 = vld [vmem:[%s1748 + $0x2e0] sm:$0xff]
      %v1842 = vld [vmem:[%s1748 + $0x2e8] sm:$0xff]
      %v1843 = vld [vmem:[%s1748 + $0x2f0] sm:$0xff]
      %v1844 = vld [vmem:[%s1748 + $0x2f8] sm:$0xff]
      %v1845 = vld [vmem:[%s1748 + $0x300] sm:$0xff]
      %v1846 = vld [vmem:[%s1748 + $0x308] sm:$0xff]
      %v1847 = vld [vmem:[%s1748 + $0x310] sm:$0xff]
      %v1848 = vld [vmem:[%s1748 + $0x318] sm:$0xff]
      %v1849 = vld [vmem:[%s1748 + $0x320] sm:$0xff]
      %v1850 = vld [vmem:[%s1748 + $0x328] sm:$0xff]
      %v1851 = vld [vmem:[%s1748 + $0x330] sm:$0xff]
      %v1852 = vld [vmem:[%s1748 + $0x338] sm:$0xff]
      %v1853 = vld [vmem:[%s1748 + $0x340] sm:$0xff]
      %v1854 = vld [vmem:[%s1748 + $0x348] sm:$0xff]
      %v1855 = vld [vmem:[%s1748 + $0x350] sm:$0xff]
      %v1856 = vld [vmem:[%s1748 + $0x358] sm:$0xff]
      %v1857 = vld [vmem:[%s1748 + $0x360] sm:$0xff]
      %v1858 = vld [vmem:[%s1748 + $0x368] sm:$0xff]
      %v1859 = vld [vmem:[%s1748 + $0x370] sm:$0xff]
      %v1860 = vld [vmem:[%s1748 + $0x378] sm:$0xff]
      %v1861 = vld [vmem:[%s1748 + $0x380] sm:$0xff]
      %v1862 = vld [vmem:[%s1748 + $0x388] sm:$0xff]
      %v1863 = vld [vmem:[%s1748 + $0x390] sm:$0xff]
      %v1864 = vld [vmem:[%s1748 + $0x398] sm:$0xff]
      %v1865 = vld [vmem:[%s1748 + $0x3a0] sm:$0xff]
      %v1866 = vld [vmem:[%s1748 + $0x3a8] sm:$0xff]
      %v1867 = vld [vmem:[%s1748 + $0x3b0] sm:$0xff]
      %v1868 = vld [vmem:[%s1748 + $0x3b8] sm:$0xff]
      %v1869 = vld [vmem:[%s1748 + $0x3c0] sm:$0xff]
      %v1870 = vld [vmem:[%s1748 + $0x3c8] sm:$0xff]
      %v1871 = vld [vmem:[%s1748 + $0x3d0] sm:$0xff]
      %v1872 = vld [vmem:[%s1748 + $0x3d8] sm:$0xff]
      %v1873 = vld [vmem:[%s1748 + $0x3e0] sm:$0xff]
      %v1874 = vld [vmem:[%s1748 + $0x3e8] sm:$0xff]
      %v1875 = vld [vmem:[%s1748 + $0x3f0] sm:$0xff]
      %v1876 = vld [vmem:[%s1748 + $0x3f8] sm:$0xff]
      %v1884 = vrot.slane %v1741, 1
      %v1885 = vrot.slane %v1742, 1
      %v1886 = vsel %vm1158, %v1884, %v1885
      %v1887 = vrot.slane %v1743, 1
      %v1888 = vsel %vm1158, %v1885, %v1887
      %v1889 = vrot.slane %v1744, 1
      %v1890 = vsel %vm1158, %v1887, %v1889
      %v1891 = vrot.slane %v1745, 1
      %v1892 = vsel %vm1158, %v1889, %v1891
      %v1893 = vrot.slane %v1746, 1
      %v1894 = vsel %vm1158, %v1891, %v1893
      %v1895 = vrot.slane %v1747, 1
      %v1896 = vsel %vm1158, %v1893, %v1895
      %v1903 = vrot.slane %v1741, 2
      %v1904 = vrot.slane %v1742, 2
      %v1905 = vsel %vm1181, %v1903, %v1904
      %v1906 = vrot.slane %v1743, 2
      %v1907 = vsel %vm1181, %v1904, %v1906
      %v1908 = vrot.slane %v1744, 2
      %v1909 = vsel %vm1181, %v1906, %v1908
      %v1910 = vrot.slane %v1745, 2
      %v1911 = vsel %vm1181, %v1908, %v1910
      %v1912 = vrot.slane %v1746, 2
      %v1913 = vsel %vm1181, %v1910, %v1912
      %v1914 = vrot.slane %v1747, 2
      %v1915 = vsel %vm1181, %v1912, %v1914
      %v1922 = vrot.slane %v1741, 3
      %v1923 = vrot.slane %v1742, 3
      %v1924 = vsel %vm1204, %v1922, %v1923
      %v1925 = vrot.slane %v1743, 3
      %v1926 = vsel %vm1204, %v1923, %v1925
      %v1927 = vrot.slane %v1744, 3
      %v1928 = vsel %vm1204, %v1925, %v1927
      %v1929 = vrot.slane %v1745, 3
      %v1930 = vsel %vm1204, %v1927, %v1929
      %v1931 = vrot.slane %v1746, 3
      %v1932 = vsel %vm1204, %v1929, %v1931
      %v1933 = vrot.slane %v1747, 3
      %v1934 = vsel %vm1204, %v1931, %v1933
      %v1941 = vrot.slane %v1741, 4
      %v1942 = vrot.slane %v1742, 4
      %v1943 = vsel %vm1227, %v1941, %v1942
      %v1944 = vrot.slane %v1743, 4
      %v1945 = vsel %vm1227, %v1942, %v1944
      %v1946 = vrot.slane %v1744, 4
      %v1947 = vsel %vm1227, %v1944, %v1946
      %v1948 = vrot.slane %v1745, 4
      %v1949 = vsel %vm1227, %v1946, %v1948
      %v1950 = vrot.slane %v1746, 4
      %v1951 = vsel %vm1227, %v1948, %v1950
      %v1952 = vrot.slane %v1747, 4
      %v1953 = vsel %vm1227, %v1950, %v1952
      %v1960 = vrot.slane %v1741, 5
      %v1961 = vrot.slane %v1742, 5
      %v1962 = vsel %vm1250, %v1960, %v1961
      %v1963 = vrot.slane %v1743, 5
      %v1964 = vsel %vm1250, %v1961, %v1963
      %v1965 = vrot.slane %v1744, 5
      %v1966 = vsel %vm1250, %v1963, %v1965
      %v1967 = vrot.slane %v1745, 5
      %v1968 = vsel %vm1250, %v1965, %v1967
      %v1969 = vrot.slane %v1746, 5
      %v1970 = vsel %vm1250, %v1967, %v1969
      %v1971 = vrot.slane %v1747, 5
      %v1972 = vsel %vm1250, %v1969, %v1971
      %v1979 = vrot.slane %v1741, 6
      %v1980 = vrot.slane %v1742, 6
      %v1981 = vsel %vm1273, %v1979, %v1980
      %v1982 = vrot.slane %v1743, 6
      %v1983 = vsel %vm1273, %v1980, %v1982
      %v1984 = vrot.slane %v1744, 6
      %v1985 = vsel %vm1273, %v1982, %v1984
      %v1986 = vrot.slane %v1745, 6
      %v1987 = vsel %vm1273, %v1984, %v1986
      %v1988 = vrot.slane %v1746, 6
      %v1989 = vsel %vm1273, %v1986, %v1988
      %v1990 = vrot.slane %v1747, 6
      %v1991 = vsel %vm1273, %v1988, %v1990
      %v1998 = vrot.slane %v1741, 7
      %v1999 = vrot.slane %v1742, 7
      %v2000 = vsel %vm1296, %v1998, %v1999
      %v2001 = vrot.slane %v1743, 7
      %v2002 = vsel %vm1296, %v1999, %v2001
      %v2003 = vrot.slane %v1744, 7
      %v2004 = vsel %vm1296, %v2001, %v2003
      %v2005 = vrot.slane %v1745, 7
      %v2006 = vsel %vm1296, %v2003, %v2005
      %v2007 = vrot.slane %v1746, 7
      %v2008 = vsel %vm1296, %v2005, %v2007
      %v2009 = vrot.slane %v1747, 7
      %v2010 = vsel %vm1296, %v2007, %v2009
      %2017 = vmatprep.subr.mxu0 0.0
      %2018 = vmatpush1.msra.mxu0 %v1764
      %2019 = vmatprep.subr.mxu0 0.0
      %2020 = vmatpush1.msra.mxu0 %v1763
      %2021 = vmatprep.subr.mxu0 0.0
      %2022 = vmatpush1.msra.mxu0 %v1762
      %2023 = vmatprep.subr.mxu0 0.0
      %2024 = vmatpush1.msra.mxu0 %v1761
      %2025 = vmatprep.subr.mxu0 0.0
      %2026 = vmatpush1.msra.mxu0 %v1760
      %2027 = vmatprep.subr.mxu0 0.0
      %2028 = vmatpush1.msra.mxu0 %v1759
      %2029 = vmatprep.subr.mxu0 0.0
      %2030 = vmatpush1.msra.mxu0 %v1758
      %2031 = vmatprep.subr.mxu0 0.0
      %2032 = vmatpush1.msra.mxu0 %v1757
      %2033 = vmatprep.subr.mxu0 0.0
      %2034 = vmatpush1.msra.mxu0 %v1756
      %2035 = vmatprep.subr.mxu0 0.0
      %2036 = vmatpush1.msra.mxu0 %v1755
      %2037 = vmatprep.subr.mxu0 0.0
      %2038 = vmatpush1.msra.mxu0 %v1754
      %2039 = vmatprep.subr.mxu0 0.0
      %2040 = vmatpush1.msra.mxu0 %v1753
      %2041 = vmatprep.subr.mxu0 0.0
      %2042 = vmatpush1.msra.mxu0 %v1752
      %2043 = vmatprep.subr.mxu0 0.0
      %2044 = vmatpush1.msra.mxu0 %v1751
      %2045 = vmatprep.subr.mxu0 0.0
      %2046 = vmatpush1.msra.mxu0 %v1750
      %2047 = vmatprep.subr.mxu0 0.0
      %2048 = vmatpush1.msra.mxu0 %v1749
      %2049 = vmatprep.subr.mxu0 0.0
      %2050 = vmatpush2.msra.mxu0 %v1780
      %2051 = vmatprep.subr.mxu0 0.0
      %2052 = vmatpush2.msra.mxu0 %v1779
      %2053 = vmatprep.subr.mxu0 0.0
      %2054 = vmatpush2.msra.mxu0 %v1778
      %2055 = vmatprep.subr.mxu0 0.0
      %2056 = vmatpush2.msra.mxu0 %v1777
      %2057 = vmatprep.subr.mxu0 0.0
      %2058 = vmatpush2.msra.mxu0 %v1776
      %2059 = vmatprep.subr.mxu0 0.0
      %2060 = vmatpush2.msra.mxu0 %v1775
      %2061 = vmatprep.subr.mxu0 0.0
      %2062 = vmatpush2.msra.mxu0 %v1774
      %2063 = vmatprep.subr.mxu0 0.0
      %2064 = vmatpush2.msra.mxu0 %v1773
      %2065 = vmatprep.subr.mxu0 0.0
      %2066 = vmatpush2.msra.mxu0 %v1772
      %2067 = vmatprep.subr.mxu0 0.0
      %2068 = vmatpush2.msra.mxu0 %v1771
      %2069 = vmatprep.subr.mxu0 0.0
      %2070 = vmatpush2.msra.mxu0 %v1770
      %2071 = vmatprep.subr.mxu0 0.0
      %2072 = vmatpush2.msra.mxu0 %v1769
      %2073 = vmatprep.subr.mxu0 0.0
      %2074 = vmatpush2.msra.mxu0 %v1768
      %2075 = vmatprep.subr.mxu0 0.0
      %2076 = vmatpush2.msra.mxu0 %v1767
      %2077 = vmatprep.subr.mxu0 0.0
      %2078 = vmatpush2.msra.mxu0 %v1766
      %2079 = vmatprep.subr.mxu0 0.0
      %2080 = vmatpush2.msra.mxu0 %v1765
      %2081 = vmatprep.mubr.f32.mxu0 %v1886
      %2082 = vmatmul.mubr.f32.gmra.mxu0 %v1741
      %v2083 = vpop.f32.mrf.mxu0
      %v2084 = vadd.f32 0.0, %v2083
      %v2085 = vpop.f32.mrf.mxu0
      %2086 = vmatprep.mubr.f32.mxu0 %v1888
      %2087 = vmatmul.mubr.f32.gmra.mxu0 %v1742
      %v2088 = vpop.f32.mrf.mxu0
      %v2089 = vadd.f32 0.0, %v2088
      %v2090 = vpop.f32.mrf.mxu0
      %2091 = vmatprep.mubr.f32.mxu0 %v1890
      %2092 = vmatmul.mubr.f32.gmra.mxu0 %v1743
      %v2093 = vpop.f32.mrf.mxu0
      %v2094 = vadd.f32 0.0, %v2093
      %v2095 = vpop.f32.mrf.mxu0
      %2096 = vmatprep.mubr.f32.mxu0 %v1892
      %2097 = vmatmul.mubr.f32.gmra.mxu0 %v1744
      %v2098 = vpop.f32.mrf.mxu0
      %v2099 = vadd.f32 0.0, %v2098
      %v2100 = vpop.f32.mrf.mxu0
      %2101 = vmatprep.mubr.f32.mxu0 %v1894
      %2102 = vmatmul.mubr.f32.gmra.mxu0 %v1745
      %v2103 = vpop.f32.mrf.mxu0
      %v2104 = vadd.f32 0.0, %v2103
      %v2105 = vpop.f32.mrf.mxu0
      %2106 = vmatprep.mubr.f32.mxu0 %v1896
      %2107 = vmatmul.mubr.f32.gmra.mxu0 %v1746
      %v2108 = vpop.f32.mrf.mxu0
      %v2109 = vadd.f32 0.0, %v2108
      %v2110 = vpop.f32.mrf.mxu0
      %2111 = vdwg.mxu0
      %2112 = vmatprep.subr.mxu0 0.0
      %2113 = vmatpush1.msra.mxu0 %v1796
      %2114 = vmatprep.subr.mxu0 0.0
      %2115 = vmatpush1.msra.mxu0 %v1795
      %2116 = vmatprep.subr.mxu0 0.0
      %2117 = vmatpush1.msra.mxu0 %v1794
      %2118 = vmatprep.subr.mxu0 0.0
      %2119 = vmatpush1.msra.mxu0 %v1793
      %2120 = vmatprep.subr.mxu0 0.0
      %2121 = vmatpush1.msra.mxu0 %v1792
      %2122 = vmatprep.subr.mxu0 0.0
      %2123 = vmatpush1.msra.mxu0 %v1791
      %2124 = vmatprep.subr.mxu0 0.0
      %2125 = vmatpush1.msra.mxu0 %v1790
      %2126 = vmatprep.subr.mxu0 0.0
      %2127 = vmatpush1.msra.mxu0 %v1789
      %2128 = vmatprep.subr.mxu0 0.0
      %2129 = vmatpush1.msra.mxu0 %v1788
      %2130 = vmatprep.subr.mxu0 0.0
      %2131 = vmatpush1.msra.mxu0 %v1787
      %2132 = vmatprep.subr.mxu0 0.0
      %2133 = vmatpush1.msra.mxu0 %v1786
      %2134 = vmatprep.subr.mxu0 0.0
      %2135 = vmatpush1.msra.mxu0 %v1785
      %2136 = vmatprep.subr.mxu0 0.0
      %2137 = vmatpush1.msra.mxu0 %v1784
      %2138 = vmatprep.subr.mxu0 0.0
      %2139 = vmatpush1.msra.mxu0 %v1783
      %2140 = vmatprep.subr.mxu0 0.0
      %2141 = vmatpush1.msra.mxu0 %v1782
      %2142 = vmatprep.subr.mxu0 0.0
      %2143 = vmatpush1.msra.mxu0 %v1781
      %2144 = vmatprep.subr.mxu0 0.0
      %2145 = vmatpush2.msra.mxu0 %v1812
      %2146 = vmatprep.subr.mxu0 0.0
      %2147 = vmatpush2.msra.mxu0 %v1811
      %2148 = vmatprep.subr.mxu0 0.0
      %2149 = vmatpush2.msra.mxu0 %v1810
      %2150 = vmatprep.subr.mxu0 0.0
      %2151 = vmatpush2.msra.mxu0 %v1809
      %2152 = vmatprep.subr.mxu0 0.0
      %2153 = vmatpush2.msra.mxu0 %v1808
      %2154 = vmatprep.subr.mxu0 0.0
      %2155 = vmatpush2.msra.mxu0 %v1807
      %2156 = vmatprep.subr.mxu0 0.0
      %2157 = vmatpush2.msra.mxu0 %v1806
      %2158 = vmatprep.subr.mxu0 0.0
      %2159 = vmatpush2.msra.mxu0 %v1805
      %2160 = vmatprep.subr.mxu0 0.0
      %2161 = vmatpush2.msra.mxu0 %v1804
      %2162 = vmatprep.subr.mxu0 0.0
      %2163 = vmatpush2.msra.mxu0 %v1803
      %2164 = vmatprep.subr.mxu0 0.0
      %2165 = vmatpush2.msra.mxu0 %v1802
      %2166 = vmatprep.subr.mxu0 0.0
      %2167 = vmatpush2.msra.mxu0 %v1801
      %2168 = vmatprep.subr.mxu0 0.0
      %2169 = vmatpush2.msra.mxu0 %v1800
      %2170 = vmatprep.subr.mxu0 0.0
      %2171 = vmatpush2.msra.mxu0 %v1799
      %2172 = vmatprep.subr.mxu0 0.0
      %2173 = vmatpush2.msra.mxu0 %v1798
      %2174 = vmatprep.subr.mxu0 0.0
      %2175 = vmatpush2.msra.mxu0 %v1797
      %2176 = vmatprep.mubr.f32.mxu0 %v1924
      %2177 = vmatmul.mubr.f32.gmra.mxu0 %v1905
      %v2178 = vpop.f32.mrf.mxu0
      %v2179 = vadd.f32 %v2084, %v2178
      %v2180 = vpop.f32.mrf.mxu0
      %2181 = vmatprep.mubr.f32.mxu0 %v1926
      %2182 = vmatmul.mubr.f32.gmra.mxu0 %v1907
      %v2183 = vpop.f32.mrf.mxu0
      %v2184 = vadd.f32 %v2089, %v2183
      %v2185 = vpop.f32.mrf.mxu0
      %2186 = vmatprep.mubr.f32.mxu0 %v1928
      %2187 = vmatmul.mubr.f32.gmra.mxu0 %v1909
      %v2188 = vpop.f32.mrf.mxu0
      %v2189 = vadd.f32 %v2094, %v2188
      %v2190 = vpop.f32.mrf.mxu0
      %2191 = vmatprep.mubr.f32.mxu0 %v1930
      %2192 = vmatmul.mubr.f32.gmra.mxu0 %v1911
      %v2193 = vpop.f32.mrf.mxu0
      %v2194 = vadd.f32 %v2099, %v2193
      %v2195 = vpop.f32.mrf.mxu0
      %2196 = vmatprep.mubr.f32.mxu0 %v1932
      %2197 = vmatmul.mubr.f32.gmra.mxu0 %v1913
      %v2198 = vpop.f32.mrf.mxu0
      %v2199 = vadd.f32 %v2104, %v2198
      %v2200 = vpop.f32.mrf.mxu0
      %2201 = vmatprep.mubr.f32.mxu0 %v1934
      %2202 = vmatmul.mubr.f32.gmra.mxu0 %v1915
      %v2203 = vpop.f32.mrf.mxu0
      %v2204 = vadd.f32 %v2109, %v2203
      %v2205 = vpop.f32.mrf.mxu0
      %2206 = vdwg.mxu0
      %2207 = vmatprep.subr.mxu0 0.0
      %2208 = vmatpush1.msra.mxu0 %v1828
      %2209 = vmatprep.subr.mxu0 0.0
      %2210 = vmatpush1.msra.mxu0 %v1827
      %2211 = vmatprep.subr.mxu0 0.0
      %2212 = vmatpush1.msra.mxu0 %v1826
      %2213 = vmatprep.subr.mxu0 0.0
      %2214 = vmatpush1.msra.mxu0 %v1825
      %2215 = vmatprep.subr.mxu0 0.0
      %2216 = vmatpush1.msra.mxu0 %v1824
      %2217 = vmatprep.subr.mxu0 0.0
      %2218 = vmatpush1.msra.mxu0 %v1823
      %2219 = vmatprep.subr.mxu0 0.0
      %2220 = vmatpush1.msra.mxu0 %v1822
      %2221 = vmatprep.subr.mxu0 0.0
      %2222 = vmatpush1.msra.mxu0 %v1821
      %2223 = vmatprep.subr.mxu0 0.0
      %2224 = vmatpush1.msra.mxu0 %v1820
      %2225 = vmatprep.subr.mxu0 0.0
      %2226 = vmatpush1.msra.mxu0 %v1819
      %2227 = vmatprep.subr.mxu0 0.0
      %2228 = vmatpush1.msra.mxu0 %v1818
      %2229 = vmatprep.subr.mxu0 0.0
      %2230 = vmatpush1.msra.mxu0 %v1817
      %2231 = vmatprep.subr.mxu0 0.0
      %2232 = vmatpush1.msra.mxu0 %v1816
      %2233 = vmatprep.subr.mxu0 0.0
      %2234 = vmatpush1.msra.mxu0 %v1815
      %2235 = vmatprep.subr.mxu0 0.0
      %2236 = vmatpush1.msra.mxu0 %v1814
      %2237 = vmatprep.subr.mxu0 0.0
      %2238 = vmatpush1.msra.mxu0 %v1813
      %2239 = vmatprep.subr.mxu0 0.0
      %2240 = vmatpush2.msra.mxu0 %v1844
      %2241 = vmatprep.subr.mxu0 0.0
      %2242 = vmatpush2.msra.mxu0 %v1843
      %2243 = vmatprep.subr.mxu0 0.0
      %2244 = vmatpush2.msra.mxu0 %v1842
      %2245 = vmatprep.subr.mxu0 0.0
      %2246 = vmatpush2.msra.mxu0 %v1841
      %2247 = vmatprep.subr.mxu0 0.0
      %2248 = vmatpush2.msra.mxu0 %v1840
      %2249 = vmatprep.subr.mxu0 0.0
      %2250 = vmatpush2.msra.mxu0 %v1839
      %2251 = vmatprep.subr.mxu0 0.0
      %2252 = vmatpush2.msra.mxu0 %v1838
      %2253 = vmatprep.subr.mxu0 0.0
      %2254 = vmatpush2.msra.mxu0 %v1837
      %2255 = vmatprep.subr.mxu0 0.0
      %2256 = vmatpush2.msra.mxu0 %v1836
      %2257 = vmatprep.subr.mxu0 0.0
      %2258 = vmatpush2.msra.mxu0 %v1835
      %2259 = vmatprep.subr.mxu0 0.0
      %2260 = vmatpush2.msra.mxu0 %v1834
      %2261 = vmatprep.subr.mxu0 0.0
      %2262 = vmatpush2.msra.mxu0 %v1833
      %2263 = vmatprep.subr.mxu0 0.0
      %2264 = vmatpush2.msra.mxu0 %v1832
      %2265 = vmatprep.subr.mxu0 0.0
      %2266 = vmatpush2.msra.mxu0 %v1831
      %2267 = vmatprep.subr.mxu0 0.0
      %2268 = vmatpush2.msra.mxu0 %v1830
      %2269 = vmatprep.subr.mxu0 0.0
      %2270 = vmatpush2.msra.mxu0 %v1829
      %2271 = vmatprep.mubr.f32.mxu0 %v1962
      %2272 = vmatmul.mubr.f32.gmra.mxu0 %v1943
      %v2273 = vpop.f32.mrf.mxu0
      %v2274 = vadd.f32 %v2179, %v2273
      %v2275 = vpop.f32.mrf.mxu0
      %2276 = vmatprep.mubr.f32.mxu0 %v1964
      %2277 = vmatmul.mubr.f32.gmra.mxu0 %v1945
      %v2278 = vpop.f32.mrf.mxu0
      %v2279 = vadd.f32 %v2184, %v2278
      %v2280 = vpop.f32.mrf.mxu0
      %2281 = vmatprep.mubr.f32.mxu0 %v1966
      %2282 = vmatmul.mubr.f32.gmra.mxu0 %v1947
      %v2283 = vpop.f32.mrf.mxu0
      %v2284 = vadd.f32 %v2189, %v2283
      %v2285 = vpop.f32.mrf.mxu0
      %2286 = vmatprep.mubr.f32.mxu0 %v1968
      %2287 = vmatmul.mubr.f32.gmra.mxu0 %v1949
      %v2288 = vpop.f32.mrf.mxu0
      %v2289 = vadd.f32 %v2194, %v2288
      %v2290 = vpop.f32.mrf.mxu0
      %2291 = vmatprep.mubr.f32.mxu0 %v1970
      %2292 = vmatmul.mubr.f32.gmra.mxu0 %v1951
      %v2293 = vpop.f32.mrf.mxu0
      %v2294 = vadd.f32 %v2199, %v2293
      %v2295 = vpop.f32.mrf.mxu0
      %2296 = vmatprep.mubr.f32.mxu0 %v1972
      %2297 = vmatmul.mubr.f32.gmra.mxu0 %v1953
      %v2298 = vpop.f32.mrf.mxu0
      %v2299 = vadd.f32 %v2204, %v2298
      %v2300 = vpop.f32.mrf.mxu0
      %2301 = vdwg.mxu0
      %2302 = vmatprep.subr.mxu0 0.0
      %2303 = vmatpush1.msra.mxu0 %v1860
      %2304 = vmatprep.subr.mxu0 0.0
      %2305 = vmatpush1.msra.mxu0 %v1859
      %2306 = vmatprep.subr.mxu0 0.0
      %2307 = vmatpush1.msra.mxu0 %v1858
      %2308 = vmatprep.subr.mxu0 0.0
      %2309 = vmatpush1.msra.mxu0 %v1857
      %2310 = vmatprep.subr.mxu0 0.0
      %2311 = vmatpush1.msra.mxu0 %v1856
      %2312 = vmatprep.subr.mxu0 0.0
      %2313 = vmatpush1.msra.mxu0 %v1855
      %2314 = vmatprep.subr.mxu0 0.0
      %2315 = vmatpush1.msra.mxu0 %v1854
      %2316 = vmatprep.subr.mxu0 0.0
      %2317 = vmatpush1.msra.mxu0 %v1853
      %2318 = vmatprep.subr.mxu0 0.0
      %2319 = vmatpush1.msra.mxu0 %v1852
      %2320 = vmatprep.subr.mxu0 0.0
      %2321 = vmatpush1.msra.mxu0 %v1851
      %2322 = vmatprep.subr.mxu0 0.0
      %2323 = vmatpush1.msra.mxu0 %v1850
      %2324 = vmatprep.subr.mxu0 0.0
      %2325 = vmatpush1.msra.mxu0 %v1849
      %2326 = vmatprep.subr.mxu0 0.0
      %2327 = vmatpush1.msra.mxu0 %v1848
      %2328 = vmatprep.subr.mxu0 0.0
      %2329 = vmatpush1.msra.mxu0 %v1847
      %2330 = vmatprep.subr.mxu0 0.0
      %2331 = vmatpush1.msra.mxu0 %v1846
      %2332 = vmatprep.subr.mxu0 0.0
      %2333 = vmatpush1.msra.mxu0 %v1845
      %2334 = vmatprep.subr.mxu0 0.0
      %2335 = vmatpush2.msra.mxu0 %v1876
      %2336 = vmatprep.subr.mxu0 0.0
      %2337 = vmatpush2.msra.mxu0 %v1875
      %2338 = vmatprep.subr.mxu0 0.0
      %2339 = vmatpush2.msra.mxu0 %v1874
      %2340 = vmatprep.subr.mxu0 0.0
      %2341 = vmatpush2.msra.mxu0 %v1873
      %2342 = vmatprep.subr.mxu0 0.0
      %2343 = vmatpush2.msra.mxu0 %v1872
      %2344 = vmatprep.subr.mxu0 0.0
      %2345 = vmatpush2.msra.mxu0 %v1871
      %2346 = vmatprep.subr.mxu0 0.0
      %2347 = vmatpush2.msra.mxu0 %v1870
      %2348 = vmatprep.subr.mxu0 0.0
      %2349 = vmatpush2.msra.mxu0 %v1869
      %2350 = vmatprep.subr.mxu0 0.0
      %2351 = vmatpush2.msra.mxu0 %v1868
      %2352 = vmatprep.subr.mxu0 0.0
      %2353 = vmatpush2.msra.mxu0 %v1867
      %2354 = vmatprep.subr.mxu0 0.0
      %2355 = vmatpush2.msra.mxu0 %v1866
      %2356 = vmatprep.subr.mxu0 0.0
      %2357 = vmatpush2.msra.mxu0 %v1865
      %2358 = vmatprep.subr.mxu0 0.0
      %2359 = vmatpush2.msra.mxu0 %v1864
      %2360 = vmatprep.subr.mxu0 0.0
      %2361 = vmatpush2.msra.mxu0 %v1863
      %2362 = vmatprep.subr.mxu0 0.0
      %2363 = vmatpush2.msra.mxu0 %v1862
      %2364 = vmatprep.subr.mxu0 0.0
      %2365 = vmatpush2.msra.mxu0 %v1861
      %2366 = vmatprep.mubr.f32.mxu0 %v2000
      %2367 = vmatmul.mubr.f32.gmra.mxu0 %v1981
      %v2368 = vpop.f32.mrf.mxu0
      %v2369 = vadd.f32 %v2274, %v2368
      %v2370 = vpop.f32.mrf.mxu0
      %2371 = vmatprep.mubr.f32.mxu0 %v2002
      %2372 = vmatmul.mubr.f32.gmra.mxu0 %v1983
      %v2373 = vpop.f32.mrf.mxu0
      %v2374 = vadd.f32 %v2279, %v2373
      %v2375 = vpop.f32.mrf.mxu0
      %2376 = vmatprep.mubr.f32.mxu0 %v2004
      %2377 = vmatmul.mubr.f32.gmra.mxu0 %v1985
      %v2378 = vpop.f32.mrf.mxu0
      %v2379 = vadd.f32 %v2284, %v2378
      %v2380 = vpop.f32.mrf.mxu0
      %2381 = vmatprep.mubr.f32.mxu0 %v2006
      %2382 = vmatmul.mubr.f32.gmra.mxu0 %v1987
      %v2383 = vpop.f32.mrf.mxu0
      %v2384 = vadd.f32 %v2289, %v2383
      %v2385 = vpop.f32.mrf.mxu0
      %2386 = vmatprep.mubr.f32.mxu0 %v2008
      %2387 = vmatmul.mubr.f32.gmra.mxu0 %v1989
      %v2388 = vpop.f32.mrf.mxu0
      %v2389 = vadd.f32 %v2294, %v2388
      %v2390 = vpop.f32.mrf.mxu0
      %2391 = vmatprep.mubr.f32.mxu0 %v2010
      %2392 = vmatmul.mubr.f32.gmra.mxu0 %v1991
      %v2393 = vpop.f32.mrf.mxu0
      %v2394 = vadd.f32 %v2299, %v2393
      %v2395 = vpop.f32.mrf.mxu0
      %2396 = vdwg.mxu0
      %v2397 = vlaneseq
      %v2398 = vshrl.u32 %v2397, 7
      %v2399 = vsub.s32 2, %v2398
      %v2400 = vrot.slane %v299, %v2399
      %v2401 = vmul.f32 %v2369, %v2400
      %v2402 = vmul.f32 %v2374, %v2400
      %v2403 = vmul.f32 %v2379, %v2400
      %v2404 = vmul.f32 %v2384, %v2400
      %v2405 = vmul.f32 %v2389, %v2400
      %v2406 = vmul.f32 %v2394, %v2400
      %v2407 = vlaneseq
      %v2408 = vshrl.u32 %v2407, 7
      %v2409 = vsub.s32 2, %v2408
      %v2410 = vrot.slane %v300, %v2409
      %v2411 = vadd.f32 %v2401, %v2410
      %v2412 = vadd.f32 %v2402, %v2410
      %v2413 = vadd.f32 %v2403, %v2410
      %v2414 = vadd.f32 %v2404, %v2410
      %v2415 = vadd.f32 %v2405, %v2410
      %v2416 = vadd.f32 %v2406, %v2410
      %v2417 = vmax.f32 %v2411, 0.0
      %v2418 = vmax.f32 %v2412, 0.0
      %v2419 = vmax.f32 %v2413, 0.0
      %v2420 = vmax.f32 %v2414, 0.0
      %v2421 = vmax.f32 %v2415, 0.0
      %v2422 = vmax.f32 %v2416, 0.0
      %s2423 = scalar_lea.vmem %s4, 2048
      %v2424 = vld [vmem:[%s2423] sm:$0xff]
      %v2425 = vld [vmem:[%s2423 + $0x8] sm:$0xff]
      %v2426 = vld [vmem:[%s2423 + $0x10] sm:$0xff]
      %v2427 = vld [vmem:[%s2423 + $0x18] sm:$0xff]
      %v2428 = vld [vmem:[%s2423 + $0x20] sm:$0xff]
      %v2429 = vld [vmem:[%s2423 + $0x28] sm:$0xff]
      %v2430 = vld [vmem:[%s2423 + $0x30] sm:$0xff]
      %v2431 = vld [vmem:[%s2423 + $0x38] sm:$0xff]
      %v2432 = vld [vmem:[%s2423 + $0x40] sm:$0xff]
      %v2433 = vld [vmem:[%s2423 + $0x48] sm:$0xff]
      %v2434 = vld [vmem:[%s2423 + $0x50] sm:$0xff]
      %v2435 = vld [vmem:[%s2423 + $0x58] sm:$0xff]
      %v2436 = vld [vmem:[%s2423 + $0x60] sm:$0xff]
      %v2437 = vld [vmem:[%s2423 + $0x68] sm:$0xff]
      %v2438 = vld [vmem:[%s2423 + $0x70] sm:$0xff]
      %v2439 = vld [vmem:[%s2423 + $0x78] sm:$0xff]
      %v2440 = vld [vmem:[%s2423 + $0x80] sm:$0xff]
      %v2441 = vld [vmem:[%s2423 + $0x88] sm:$0xff]
      %v2442 = vld [vmem:[%s2423 + $0x90] sm:$0xff]
      %v2443 = vld [vmem:[%s2423 + $0x98] sm:$0xff]
      %v2444 = vld [vmem:[%s2423 + $0xa0] sm:$0xff]
      %v2445 = vld [vmem:[%s2423 + $0xa8] sm:$0xff]
      %v2446 = vld [vmem:[%s2423 + $0xb0] sm:$0xff]
      %v2447 = vld [vmem:[%s2423 + $0xb8] sm:$0xff]
      %v2448 = vld [vmem:[%s2423 + $0xc0] sm:$0xff]
      %v2449 = vld [vmem:[%s2423 + $0xc8] sm:$0xff]
      %v2450 = vld [vmem:[%s2423 + $0xd0] sm:$0xff]
      %v2451 = vld [vmem:[%s2423 + $0xd8] sm:$0xff]
      %v2452 = vld [vmem:[%s2423 + $0xe0] sm:$0xff]
      %v2453 = vld [vmem:[%s2423 + $0xe8] sm:$0xff]
      %v2454 = vld [vmem:[%s2423 + $0xf0] sm:$0xff]
      %v2455 = vld [vmem:[%s2423 + $0xf8] sm:$0xff]
      %v2456 = vld [vmem:[%s2423 + $0x100] sm:$0xff]
      %v2457 = vld [vmem:[%s2423 + $0x108] sm:$0xff]
      %v2458 = vld [vmem:[%s2423 + $0x110] sm:$0xff]
      %v2459 = vld [vmem:[%s2423 + $0x118] sm:$0xff]
      %v2460 = vld [vmem:[%s2423 + $0x120] sm:$0xff]
      %v2461 = vld [vmem:[%s2423 + $0x128] sm:$0xff]
      %v2462 = vld [vmem:[%s2423 + $0x130] sm:$0xff]
      %v2463 = vld [vmem:[%s2423 + $0x138] sm:$0xff]
      %v2464 = vld [vmem:[%s2423 + $0x140] sm:$0xff]
      %v2465 = vld [vmem:[%s2423 + $0x148] sm:$0xff]
      %v2466 = vld [vmem:[%s2423 + $0x150] sm:$0xff]
      %v2467 = vld [vmem:[%s2423 + $0x158] sm:$0xff]
      %v2468 = vld [vmem:[%s2423 + $0x160] sm:$0xff]
      %v2469 = vld [vmem:[%s2423 + $0x168] sm:$0xff]
      %v2470 = vld [vmem:[%s2423 + $0x170] sm:$0xff]
      %v2471 = vld [vmem:[%s2423 + $0x178] sm:$0xff]
      %v2472 = vld [vmem:[%s2423 + $0x180] sm:$0xff]
      %v2473 = vld [vmem:[%s2423 + $0x188] sm:$0xff]
      %v2474 = vld [vmem:[%s2423 + $0x190] sm:$0xff]
      %v2475 = vld [vmem:[%s2423 + $0x198] sm:$0xff]
      %v2476 = vld [vmem:[%s2423 + $0x1a0] sm:$0xff]
      %v2477 = vld [vmem:[%s2423 + $0x1a8] sm:$0xff]
      %v2478 = vld [vmem:[%s2423 + $0x1b0] sm:$0xff]
      %v2479 = vld [vmem:[%s2423 + $0x1b8] sm:$0xff]
      %v2480 = vld [vmem:[%s2423 + $0x1c0] sm:$0xff]
      %v2481 = vld [vmem:[%s2423 + $0x1c8] sm:$0xff]
      %v2482 = vld [vmem:[%s2423 + $0x1d0] sm:$0xff]
      %v2483 = vld [vmem:[%s2423 + $0x1d8] sm:$0xff]
      %v2484 = vld [vmem:[%s2423 + $0x1e0] sm:$0xff]
      %v2485 = vld [vmem:[%s2423 + $0x1e8] sm:$0xff]
      %v2486 = vld [vmem:[%s2423 + $0x1f0] sm:$0xff]
      %v2487 = vld [vmem:[%s2423 + $0x1f8] sm:$0xff]
      %v2488 = vld [vmem:[%s2423 + $0x200] sm:$0xff]
      %v2489 = vld [vmem:[%s2423 + $0x208] sm:$0xff]
      %v2490 = vld [vmem:[%s2423 + $0x210] sm:$0xff]
      %v2491 = vld [vmem:[%s2423 + $0x218] sm:$0xff]
      %v2492 = vld [vmem:[%s2423 + $0x220] sm:$0xff]
      %v2493 = vld [vmem:[%s2423 + $0x228] sm:$0xff]
      %v2494 = vld [vmem:[%s2423 + $0x230] sm:$0xff]
      %v2495 = vld [vmem:[%s2423 + $0x238] sm:$0xff]
      %v2496 = vld [vmem:[%s2423 + $0x240] sm:$0xff]
      %v2497 = vld [vmem:[%s2423 + $0x248] sm:$0xff]
      %v2498 = vld [vmem:[%s2423 + $0x250] sm:$0xff]
      %v2499 = vld [vmem:[%s2423 + $0x258] sm:$0xff]
      %v2500 = vld [vmem:[%s2423 + $0x260] sm:$0xff]
      %v2501 = vld [vmem:[%s2423 + $0x268] sm:$0xff]
      %v2502 = vld [vmem:[%s2423 + $0x270] sm:$0xff]
      %v2503 = vld [vmem:[%s2423 + $0x278] sm:$0xff]
      %v2504 = vld [vmem:[%s2423 + $0x280] sm:$0xff]
      %v2505 = vld [vmem:[%s2423 + $0x288] sm:$0xff]
      %v2506 = vld [vmem:[%s2423 + $0x290] sm:$0xff]
      %v2507 = vld [vmem:[%s2423 + $0x298] sm:$0xff]
      %v2508 = vld [vmem:[%s2423 + $0x2a0] sm:$0xff]
      %v2509 = vld [vmem:[%s2423 + $0x2a8] sm:$0xff]
      %v2510 = vld [vmem:[%s2423 + $0x2b0] sm:$0xff]
      %v2511 = vld [vmem:[%s2423 + $0x2b8] sm:$0xff]
      %v2512 = vld [vmem:[%s2423 + $0x2c0] sm:$0xff]
      %v2513 = vld [vmem:[%s2423 + $0x2c8] sm:$0xff]
      %v2514 = vld [vmem:[%s2423 + $0x2d0] sm:$0xff]
      %v2515 = vld [vmem:[%s2423 + $0x2d8] sm:$0xff]
      %v2516 = vld [vmem:[%s2423 + $0x2e0] sm:$0xff]
      %v2517 = vld [vmem:[%s2423 + $0x2e8] sm:$0xff]
      %v2518 = vld [vmem:[%s2423 + $0x2f0] sm:$0xff]
      %v2519 = vld [vmem:[%s2423 + $0x2f8] sm:$0xff]
      %v2520 = vld [vmem:[%s2423 + $0x300] sm:$0xff]
      %v2521 = vld [vmem:[%s2423 + $0x308] sm:$0xff]
      %v2522 = vld [vmem:[%s2423 + $0x310] sm:$0xff]
      %v2523 = vld [vmem:[%s2423 + $0x318] sm:$0xff]
      %v2524 = vld [vmem:[%s2423 + $0x320] sm:$0xff]
      %v2525 = vld [vmem:[%s2423 + $0x328] sm:$0xff]
      %v2526 = vld [vmem:[%s2423 + $0x330] sm:$0xff]
      %v2527 = vld [vmem:[%s2423 + $0x338] sm:$0xff]
      %v2528 = vld [vmem:[%s2423 + $0x340] sm:$0xff]
      %v2529 = vld [vmem:[%s2423 + $0x348] sm:$0xff]
      %v2530 = vld [vmem:[%s2423 + $0x350] sm:$0xff]
      %v2531 = vld [vmem:[%s2423 + $0x358] sm:$0xff]
      %v2532 = vld [vmem:[%s2423 + $0x360] sm:$0xff]
      %v2533 = vld [vmem:[%s2423 + $0x368] sm:$0xff]
      %v2534 = vld [vmem:[%s2423 + $0x370] sm:$0xff]
      %v2535 = vld [vmem:[%s2423 + $0x378] sm:$0xff]
      %v2536 = vld [vmem:[%s2423 + $0x380] sm:$0xff]
      %v2537 = vld [vmem:[%s2423 + $0x388] sm:$0xff]
      %v2538 = vld [vmem:[%s2423 + $0x390] sm:$0xff]
      %v2539 = vld [vmem:[%s2423 + $0x398] sm:$0xff]
      %v2540 = vld [vmem:[%s2423 + $0x3a0] sm:$0xff]
      %v2541 = vld [vmem:[%s2423 + $0x3a8] sm:$0xff]
      %v2542 = vld [vmem:[%s2423 + $0x3b0] sm:$0xff]
      %v2543 = vld [vmem:[%s2423 + $0x3b8] sm:$0xff]
      %v2544 = vld [vmem:[%s2423 + $0x3c0] sm:$0xff]
      %v2545 = vld [vmem:[%s2423 + $0x3c8] sm:$0xff]
      %v2546 = vld [vmem:[%s2423 + $0x3d0] sm:$0xff]
      %v2547 = vld [vmem:[%s2423 + $0x3d8] sm:$0xff]
      %v2548 = vld [vmem:[%s2423 + $0x3e0] sm:$0xff]
      %v2549 = vld [vmem:[%s2423 + $0x3e8] sm:$0xff]
      %v2550 = vld [vmem:[%s2423 + $0x3f0] sm:$0xff]
      %v2551 = vld [vmem:[%s2423 + $0x3f8] sm:$0xff]
      %v2558 = vrot.slane %v2417, 1
      %v2559 = vrot.slane %v2418, 1
      %v2560 = vsel %vm1158, %v2558, %v2559
      %v2561 = vrot.slane %v2419, 1
      %v2562 = vsel %vm1158, %v2559, %v2561
      %v2563 = vrot.slane %v2420, 1
      %v2564 = vsel %vm1158, %v2561, %v2563
      %v2565 = vrot.slane %v2421, 1
      %v2566 = vsel %vm1158, %v2563, %v2565
      %v2567 = vrot.slane %v2422, 1
      %v2568 = vsel %vm1158, %v2565, %v2567
      %v2574 = vrot.slane %v2417, 2
      %v2575 = vrot.slane %v2418, 2
      %v2576 = vsel %vm1181, %v2574, %v2575
      %v2577 = vrot.slane %v2419, 2
      %v2578 = vsel %vm1181, %v2575, %v2577
      %v2579 = vrot.slane %v2420, 2
      %v2580 = vsel %vm1181, %v2577, %v2579
      %v2581 = vrot.slane %v2421, 2
      %v2582 = vsel %vm1181, %v2579, %v2581
      %v2583 = vrot.slane %v2422, 2
      %v2584 = vsel %vm1181, %v2581, %v2583
      %v2590 = vrot.slane %v2417, 3
      %v2591 = vrot.slane %v2418, 3
      %v2592 = vsel %vm1204, %v2590, %v2591
      %v2593 = vrot.slane %v2419, 3
      %v2594 = vsel %vm1204, %v2591, %v2593
      %v2595 = vrot.slane %v2420, 3
      %v2596 = vsel %vm1204, %v2593, %v2595
      %v2597 = vrot.slane %v2421, 3
      %v2598 = vsel %vm1204, %v2595, %v2597
      %v2599 = vrot.slane %v2422, 3
      %v2600 = vsel %vm1204, %v2597, %v2599
      %v2606 = vrot.slane %v2417, 4
      %v2607 = vrot.slane %v2418, 4
      %v2608 = vsel %vm1227, %v2606, %v2607
      %v2609 = vrot.slane %v2419, 4
      %v2610 = vsel %vm1227, %v2607, %v2609
      %v2611 = vrot.slane %v2420, 4
      %v2612 = vsel %vm1227, %v2609, %v2611
      %v2613 = vrot.slane %v2421, 4
      %v2614 = vsel %vm1227, %v2611, %v2613
      %v2615 = vrot.slane %v2422, 4
      %v2616 = vsel %vm1227, %v2613, %v2615
      %v2622 = vrot.slane %v2417, 5
      %v2623 = vrot.slane %v2418, 5
      %v2624 = vsel %vm1250, %v2622, %v2623
      %v2625 = vrot.slane %v2419, 5
      %v2626 = vsel %vm1250, %v2623, %v2625
      %v2627 = vrot.slane %v2420, 5
      %v2628 = vsel %vm1250, %v2625, %v2627
      %v2629 = vrot.slane %v2421, 5
      %v2630 = vsel %vm1250, %v2627, %v2629
      %v2631 = vrot.slane %v2422, 5
      %v2632 = vsel %vm1250, %v2629, %v2631
      %v2638 = vrot.slane %v2417, 6
      %v2639 = vrot.slane %v2418, 6
      %v2640 = vsel %vm1273, %v2638, %v2639
      %v2641 = vrot.slane %v2419, 6
      %v2642 = vsel %vm1273, %v2639, %v2641
      %v2643 = vrot.slane %v2420, 6
      %v2644 = vsel %vm1273, %v2641, %v2643
      %v2645 = vrot.slane %v2421, 6
      %v2646 = vsel %vm1273, %v2643, %v2645
      %v2647 = vrot.slane %v2422, 6
      %v2648 = vsel %vm1273, %v2645, %v2647
      %v2654 = vrot.slane %v2417, 7
      %v2655 = vrot.slane %v2418, 7
      %v2656 = vsel %vm1296, %v2654, %v2655
      %v2657 = vrot.slane %v2419, 7
      %v2658 = vsel %vm1296, %v2655, %v2657
      %v2659 = vrot.slane %v2420, 7
      %v2660 = vsel %vm1296, %v2657, %v2659
      %v2661 = vrot.slane %v2421, 7
      %v2662 = vsel %vm1296, %v2659, %v2661
      %v2663 = vrot.slane %v2422, 7
      %v2664 = vsel %vm1296, %v2661, %v2663
      %2670 = vmatprep.subr.mxu0 0.0
      %2671 = vmatpush1.msra.mxu0 %v2439
      %2672 = vmatprep.subr.mxu0 0.0
      %2673 = vmatpush1.msra.mxu0 %v2438
      %2674 = vmatprep.subr.mxu0 0.0
      %2675 = vmatpush1.msra.mxu0 %v2437
      %2676 = vmatprep.subr.mxu0 0.0
      %2677 = vmatpush1.msra.mxu0 %v2436
      %2678 = vmatprep.subr.mxu0 0.0
      %2679 = vmatpush1.msra.mxu0 %v2435
      %2680 = vmatprep.subr.mxu0 0.0
      %2681 = vmatpush1.msra.mxu0 %v2434
      %2682 = vmatprep.subr.mxu0 0.0
      %2683 = vmatpush1.msra.mxu0 %v2433
      %2684 = vmatprep.subr.mxu0 0.0
      %2685 = vmatpush1.msra.mxu0 %v2432
      %2686 = vmatprep.subr.mxu0 0.0
      %2687 = vmatpush1.msra.mxu0 %v2431
      %2688 = vmatprep.subr.mxu0 0.0
      %2689 = vmatpush1.msra.mxu0 %v2430
      %2690 = vmatprep.subr.mxu0 0.0
      %2691 = vmatpush1.msra.mxu0 %v2429
      %2692 = vmatprep.subr.mxu0 0.0
      %2693 = vmatpush1.msra.mxu0 %v2428
      %2694 = vmatprep.subr.mxu0 0.0
      %2695 = vmatpush1.msra.mxu0 %v2427
      %2696 = vmatprep.subr.mxu0 0.0
      %2697 = vmatpush1.msra.mxu0 %v2426
      %2698 = vmatprep.subr.mxu0 0.0
      %2699 = vmatpush1.msra.mxu0 %v2425
      %2700 = vmatprep.subr.mxu0 0.0
      %2701 = vmatpush1.msra.mxu0 %v2424
      %2702 = vmatprep.subr.mxu0 0.0
      %2703 = vmatpush2.msra.mxu0 %v2455
      %2704 = vmatprep.subr.mxu0 0.0
      %2705 = vmatpush2.msra.mxu0 %v2454
      %2706 = vmatprep.subr.mxu0 0.0
      %2707 = vmatpush2.msra.mxu0 %v2453
      %2708 = vmatprep.subr.mxu0 0.0
      %2709 = vmatpush2.msra.mxu0 %v2452
      %2710 = vmatprep.subr.mxu0 0.0
      %2711 = vmatpush2.msra.mxu0 %v2451
      %2712 = vmatprep.subr.mxu0 0.0
      %2713 = vmatpush2.msra.mxu0 %v2450
      %2714 = vmatprep.subr.mxu0 0.0
      %2715 = vmatpush2.msra.mxu0 %v2449
      %2716 = vmatprep.subr.mxu0 0.0
      %2717 = vmatpush2.msra.mxu0 %v2448
      %2718 = vmatprep.subr.mxu0 0.0
      %2719 = vmatpush2.msra.mxu0 %v2447
      %2720 = vmatprep.subr.mxu0 0.0
      %2721 = vmatpush2.msra.mxu0 %v2446
      %2722 = vmatprep.subr.mxu0 0.0
      %2723 = vmatpush2.msra.mxu0 %v2445
      %2724 = vmatprep.subr.mxu0 0.0
      %2725 = vmatpush2.msra.mxu0 %v2444
      %2726 = vmatprep.subr.mxu0 0.0
      %2727 = vmatpush2.msra.mxu0 %v2443
      %2728 = vmatprep.subr.mxu0 0.0
      %2729 = vmatpush2.msra.mxu0 %v2442
      %2730 = vmatprep.subr.mxu0 0.0
      %2731 = vmatpush2.msra.mxu0 %v2441
      %2732 = vmatprep.subr.mxu0 0.0
      %2733 = vmatpush2.msra.mxu0 %v2440
      %2734 = vmatprep.mubr.f32.mxu0 %v2560
      %2735 = vmatmul.mubr.f32.gmra.mxu0 %v2417
      %v2736 = vpop.f32.mrf.mxu0
      %v2737 = vadd.f32 0.0, %v2736
      %v2738 = vpop.f32.mrf.mxu0
      %2739 = vmatprep.mubr.f32.mxu0 %v2562
      %2740 = vmatmul.mubr.f32.gmra.mxu0 %v2418
      %v2741 = vpop.f32.mrf.mxu0
      %v2742 = vadd.f32 0.0, %v2741
      %v2743 = vpop.f32.mrf.mxu0
      %2744 = vmatprep.mubr.f32.mxu0 %v2564
      %2745 = vmatmul.mubr.f32.gmra.mxu0 %v2419
      %v2746 = vpop.f32.mrf.mxu0
      %v2747 = vadd.f32 0.0, %v2746
      %v2748 = vpop.f32.mrf.mxu0
      %2749 = vmatprep.mubr.f32.mxu0 %v2566
      %2750 = vmatmul.mubr.f32.gmra.mxu0 %v2420
      %v2751 = vpop.f32.mrf.mxu0
      %v2752 = vadd.f32 0.0, %v2751
      %v2753 = vpop.f32.mrf.mxu0
      %2754 = vmatprep.mubr.f32.mxu0 %v2568
      %2755 = vmatmul.mubr.f32.gmra.mxu0 %v2421
      %v2756 = vpop.f32.mrf.mxu0
      %v2757 = vadd.f32 0.0, %v2756
      %v2758 = vpop.f32.mrf.mxu0
      %2759 = vdwg.mxu0
      %2760 = vmatprep.subr.mxu0 0.0
      %2761 = vmatpush1.msra.mxu0 %v2471
      %2762 = vmatprep.subr.mxu0 0.0
      %2763 = vmatpush1.msra.mxu0 %v2470
      %2764 = vmatprep.subr.mxu0 0.0
      %2765 = vmatpush1.msra.mxu0 %v2469
      %2766 = vmatprep.subr.mxu0 0.0
      %2767 = vmatpush1.msra.mxu0 %v2468
      %2768 = vmatprep.subr.mxu0 0.0
      %2769 = vmatpush1.msra.mxu0 %v2467
      %2770 = vmatprep.subr.mxu0 0.0
      %2771 = vmatpush1.msra.mxu0 %v2466
      %2772 = vmatprep.subr.mxu0 0.0
      %2773 = vmatpush1.msra.mxu0 %v2465
      %2774 = vmatprep.subr.mxu0 0.0
      %2775 = vmatpush1.msra.mxu0 %v2464
      %2776 = vmatprep.subr.mxu0 0.0
      %2777 = vmatpush1.msra.mxu0 %v2463
      %2778 = vmatprep.subr.mxu0 0.0
      %2779 = vmatpush1.msra.mxu0 %v2462
      %2780 = vmatprep.subr.mxu0 0.0
      %2781 = vmatpush1.msra.mxu0 %v2461
      %2782 = vmatprep.subr.mxu0 0.0
      %2783 = vmatpush1.msra.mxu0 %v2460
      %2784 = vmatprep.subr.mxu0 0.0
      %2785 = vmatpush1.msra.mxu0 %v2459
      %2786 = vmatprep.subr.mxu0 0.0
      %2787 = vmatpush1.msra.mxu0 %v2458
      %2788 = vmatprep.subr.mxu0 0.0
      %2789 = vmatpush1.msra.mxu0 %v2457
      %2790 = vmatprep.subr.mxu0 0.0
      %2791 = vmatpush1.msra.mxu0 %v2456
      %2792 = vmatprep.subr.mxu0 0.0
      %2793 = vmatpush2.msra.mxu0 %v2487
      %2794 = vmatprep.subr.mxu0 0.0
      %2795 = vmatpush2.msra.mxu0 %v2486
      %2796 = vmatprep.subr.mxu0 0.0
      %2797 = vmatpush2.msra.mxu0 %v2485
      %2798 = vmatprep.subr.mxu0 0.0
      %2799 = vmatpush2.msra.mxu0 %v2484
      %2800 = vmatprep.subr.mxu0 0.0
      %2801 = vmatpush2.msra.mxu0 %v2483
      %2802 = vmatprep.subr.mxu0 0.0
      %2803 = vmatpush2.msra.mxu0 %v2482
      %2804 = vmatprep.subr.mxu0 0.0
      %2805 = vmatpush2.msra.mxu0 %v2481
      %2806 = vmatprep.subr.mxu0 0.0
      %2807 = vmatpush2.msra.mxu0 %v2480
      %2808 = vmatprep.subr.mxu0 0.0
      %2809 = vmatpush2.msra.mxu0 %v2479
      %2810 = vmatprep.subr.mxu0 0.0
      %2811 = vmatpush2.msra.mxu0 %v2478
      %2812 = vmatprep.subr.mxu0 0.0
      %2813 = vmatpush2.msra.mxu0 %v2477
      %2814 = vmatprep.subr.mxu0 0.0
      %2815 = vmatpush2.msra.mxu0 %v2476
      %2816 = vmatprep.subr.mxu0 0.0
      %2817 = vmatpush2.msra.mxu0 %v2475
      %2818 = vmatprep.subr.mxu0 0.0
      %2819 = vmatpush2.msra.mxu0 %v2474
      %2820 = vmatprep.subr.mxu0 0.0
      %2821 = vmatpush2.msra.mxu0 %v2473
      %2822 = vmatprep.subr.mxu0 0.0
      %2823 = vmatpush2.msra.mxu0 %v2472
      %2824 = vmatprep.mubr.f32.mxu0 %v2592
      %2825 = vmatmul.mubr.f32.gmra.mxu0 %v2576
      %v2826 = vpop.f32.mrf.mxu0
      %v2827 = vadd.f32 %v2737, %v2826
      %v2828 = vpop.f32.mrf.mxu0
      %2829 = vmatprep.mubr.f32.mxu0 %v2594
      %2830 = vmatmul.mubr.f32.gmra.mxu0 %v2578
      %v2831 = vpop.f32.mrf.mxu0
      %v2832 = vadd.f32 %v2742, %v2831
      %v2833 = vpop.f32.mrf.mxu0
      %2834 = vmatprep.mubr.f32.mxu0 %v2596
      %2835 = vmatmul.mubr.f32.gmra.mxu0 %v2580
      %v2836 = vpop.f32.mrf.mxu0
      %v2837 = vadd.f32 %v2747, %v2836
      %v2838 = vpop.f32.mrf.mxu0
      %2839 = vmatprep.mubr.f32.mxu0 %v2598
      %2840 = vmatmul.mubr.f32.gmra.mxu0 %v2582
      %v2841 = vpop.f32.mrf.mxu0
      %v2842 = vadd.f32 %v2752, %v2841
      %v2843 = vpop.f32.mrf.mxu0
      %2844 = vmatprep.mubr.f32.mxu0 %v2600
      %2845 = vmatmul.mubr.f32.gmra.mxu0 %v2584
      %v2846 = vpop.f32.mrf.mxu0
      %v2847 = vadd.f32 %v2757, %v2846
      %v2848 = vpop.f32.mrf.mxu0
      %2849 = vdwg.mxu0
      %2850 = vmatprep.subr.mxu0 0.0
      %2851 = vmatpush1.msra.mxu0 %v2503
      %2852 = vmatprep.subr.mxu0 0.0
      %2853 = vmatpush1.msra.mxu0 %v2502
      %2854 = vmatprep.subr.mxu0 0.0
      %2855 = vmatpush1.msra.mxu0 %v2501
      %2856 = vmatprep.subr.mxu0 0.0
      %2857 = vmatpush1.msra.mxu0 %v2500
      %2858 = vmatprep.subr.mxu0 0.0
      %2859 = vmatpush1.msra.mxu0 %v2499
      %2860 = vmatprep.subr.mxu0 0.0
      %2861 = vmatpush1.msra.mxu0 %v2498
      %2862 = vmatprep.subr.mxu0 0.0
      %2863 = vmatpush1.msra.mxu0 %v2497
      %2864 = vmatprep.subr.mxu0 0.0
      %2865 = vmatpush1.msra.mxu0 %v2496
      %2866 = vmatprep.subr.mxu0 0.0
      %2867 = vmatpush1.msra.mxu0 %v2495
      %2868 = vmatprep.subr.mxu0 0.0
      %2869 = vmatpush1.msra.mxu0 %v2494
      %2870 = vmatprep.subr.mxu0 0.0
      %2871 = vmatpush1.msra.mxu0 %v2493
      %2872 = vmatprep.subr.mxu0 0.0
      %2873 = vmatpush1.msra.mxu0 %v2492
      %2874 = vmatprep.subr.mxu0 0.0
      %2875 = vmatpush1.msra.mxu0 %v2491
      %2876 = vmatprep.subr.mxu0 0.0
      %2877 = vmatpush1.msra.mxu0 %v2490
      %2878 = vmatprep.subr.mxu0 0.0
      %2879 = vmatpush1.msra.mxu0 %v2489
      %2880 = vmatprep.subr.mxu0 0.0
      %2881 = vmatpush1.msra.mxu0 %v2488
      %2882 = vmatprep.subr.mxu0 0.0
      %2883 = vmatpush2.msra.mxu0 %v2519
      %2884 = vmatprep.subr.mxu0 0.0
      %2885 = vmatpush2.msra.mxu0 %v2518
      %2886 = vmatprep.subr.mxu0 0.0
      %2887 = vmatpush2.msra.mxu0 %v2517
      %2888 = vmatprep.subr.mxu0 0.0
      %2889 = vmatpush2.msra.mxu0 %v2516
      %2890 = vmatprep.subr.mxu0 0.0
      %2891 = vmatpush2.msra.mxu0 %v2515
      %2892 = vmatprep.subr.mxu0 0.0
      %2893 = vmatpush2.msra.mxu0 %v2514
      %2894 = vmatprep.subr.mxu0 0.0
      %2895 = vmatpush2.msra.mxu0 %v2513
      %2896 = vmatprep.subr.mxu0 0.0
      %2897 = vmatpush2.msra.mxu0 %v2512
      %2898 = vmatprep.subr.mxu0 0.0
      %2899 = vmatpush2.msra.mxu0 %v2511
      %2900 = vmatprep.subr.mxu0 0.0
      %2901 = vmatpush2.msra.mxu0 %v2510
      %2902 = vmatprep.subr.mxu0 0.0
      %2903 = vmatpush2.msra.mxu0 %v2509
      %2904 = vmatprep.subr.mxu0 0.0
      %2905 = vmatpush2.msra.mxu0 %v2508
      %2906 = vmatprep.subr.mxu0 0.0
      %2907 = vmatpush2.msra.mxu0 %v2507
      %2908 = vmatprep.subr.mxu0 0.0
      %2909 = vmatpush2.msra.mxu0 %v2506
      %2910 = vmatprep.subr.mxu0 0.0
      %2911 = vmatpush2.msra.mxu0 %v2505
      %2912 = vmatprep.subr.mxu0 0.0
      %2913 = vmatpush2.msra.mxu0 %v2504
      %2914 = vmatprep.mubr.f32.mxu0 %v2624
      %2915 = vmatmul.mubr.f32.gmra.mxu0 %v2608
      %v2916 = vpop.f32.mrf.mxu0
      %v2917 = vadd.f32 %v2827, %v2916
      %v2918 = vpop.f32.mrf.mxu0
      %2919 = vmatprep.mubr.f32.mxu0 %v2626
      %2920 = vmatmul.mubr.f32.gmra.mxu0 %v2610
      %v2921 = vpop.f32.mrf.mxu0
      %v2922 = vadd.f32 %v2832, %v2921
      %v2923 = vpop.f32.mrf.mxu0
      %2924 = vmatprep.mubr.f32.mxu0 %v2628
      %2925 = vmatmul.mubr.f32.gmra.mxu0 %v2612
      %v2926 = vpop.f32.mrf.mxu0
      %v2927 = vadd.f32 %v2837, %v2926
      %v2928 = vpop.f32.mrf.mxu0
      %2929 = vmatprep.mubr.f32.mxu0 %v2630
      %2930 = vmatmul.mubr.f32.gmra.mxu0 %v2614
      %v2931 = vpop.f32.mrf.mxu0
      %v2932 = vadd.f32 %v2842, %v2931
      %v2933 = vpop.f32.mrf.mxu0
      %2934 = vmatprep.mubr.f32.mxu0 %v2632
      %2935 = vmatmul.mubr.f32.gmra.mxu0 %v2616
      %v2936 = vpop.f32.mrf.mxu0
      %v2937 = vadd.f32 %v2847, %v2936
      %v2938 = vpop.f32.mrf.mxu0
      %2939 = vdwg.mxu0
      %2940 = vmatprep.subr.mxu0 0.0
      %2941 = vmatpush1.msra.mxu0 %v2535
      %2942 = vmatprep.subr.mxu0 0.0
      %2943 = vmatpush1.msra.mxu0 %v2534
      %2944 = vmatprep.subr.mxu0 0.0
      %2945 = vmatpush1.msra.mxu0 %v2533
      %2946 = vmatprep.subr.mxu0 0.0
      %2947 = vmatpush1.msra.mxu0 %v2532
      %2948 = vmatprep.subr.mxu0 0.0
      %2949 = vmatpush1.msra.mxu0 %v2531
      %2950 = vmatprep.subr.mxu0 0.0
      %2951 = vmatpush1.msra.mxu0 %v2530
      %2952 = vmatprep.subr.mxu0 0.0
      %2953 = vmatpush1.msra.mxu0 %v2529
      %2954 = vmatprep.subr.mxu0 0.0
      %2955 = vmatpush1.msra.mxu0 %v2528
      %2956 = vmatprep.subr.mxu0 0.0
      %2957 = vmatpush1.msra.mxu0 %v2527
      %2958 = vmatprep.subr.mxu0 0.0
      %2959 = vmatpush1.msra.mxu0 %v2526
      %2960 = vmatprep.subr.mxu0 0.0
      %2961 = vmatpush1.msra.mxu0 %v2525
      %2962 = vmatprep.subr.mxu0 0.0
      %2963 = vmatpush1.msra.mxu0 %v2524
      %2964 = vmatprep.subr.mxu0 0.0
      %2965 = vmatpush1.msra.mxu0 %v2523
      %2966 = vmatprep.subr.mxu0 0.0
      %2967 = vmatpush1.msra.mxu0 %v2522
      %2968 = vmatprep.subr.mxu0 0.0
      %2969 = vmatpush1.msra.mxu0 %v2521
      %2970 = vmatprep.subr.mxu0 0.0
      %2971 = vmatpush1.msra.mxu0 %v2520
      %2972 = vmatprep.subr.mxu0 0.0
      %2973 = vmatpush2.msra.mxu0 %v2551
      %2974 = vmatprep.subr.mxu0 0.0
      %2975 = vmatpush2.msra.mxu0 %v2550
      %2976 = vmatprep.subr.mxu0 0.0
      %2977 = vmatpush2.msra.mxu0 %v2549
      %2978 = vmatprep.subr.mxu0 0.0
      %2979 = vmatpush2.msra.mxu0 %v2548
      %2980 = vmatprep.subr.mxu0 0.0
      %2981 = vmatpush2.msra.mxu0 %v2547
      %2982 = vmatprep.subr.mxu0 0.0
      %2983 = vmatpush2.msra.mxu0 %v2546
      %2984 = vmatprep.subr.mxu0 0.0
      %2985 = vmatpush2.msra.mxu0 %v2545
      %2986 = vmatprep.subr.mxu0 0.0
      %2987 = vmatpush2.msra.mxu0 %v2544
      %2988 = vmatprep.subr.mxu0 0.0
      %2989 = vmatpush2.msra.mxu0 %v2543
      %2990 = vmatprep.subr.mxu0 0.0
      %2991 = vmatpush2.msra.mxu0 %v2542
      %2992 = vmatprep.subr.mxu0 0.0
      %2993 = vmatpush2.msra.mxu0 %v2541
      %2994 = vmatprep.subr.mxu0 0.0
      %2995 = vmatpush2.msra.mxu0 %v2540
      %2996 = vmatprep.subr.mxu0 0.0
      %2997 = vmatpush2.msra.mxu0 %v2539
      %2998 = vmatprep.subr.mxu0 0.0
      %2999 = vmatpush2.msra.mxu0 %v2538
      %3000 = vmatprep.subr.mxu0 0.0
      %3001 = vmatpush2.msra.mxu0 %v2537
      %3002 = vmatprep.subr.mxu0 0.0
      %3003 = vmatpush2.msra.mxu0 %v2536
      %3004 = vmatprep.mubr.f32.mxu0 %v2656
      %3005 = vmatmul.mubr.f32.gmra.mxu0 %v2640
      %v3006 = vpop.f32.mrf.mxu0
      %v3007 = vadd.f32 %v2917, %v3006
      %v3008 = vpop.f32.mrf.mxu0
      %3009 = vmatprep.mubr.f32.mxu0 %v2658
      %3010 = vmatmul.mubr.f32.gmra.mxu0 %v2642
      %v3011 = vpop.f32.mrf.mxu0
      %v3012 = vadd.f32 %v2922, %v3011
      %v3013 = vpop.f32.mrf.mxu0
      %3014 = vmatprep.mubr.f32.mxu0 %v2660
      %3015 = vmatmul.mubr.f32.gmra.mxu0 %v2644
      %v3016 = vpop.f32.mrf.mxu0
      %v3017 = vadd.f32 %v2927, %v3016
      %v3018 = vpop.f32.mrf.mxu0
      %3019 = vmatprep.mubr.f32.mxu0 %v2662
      %3020 = vmatmul.mubr.f32.gmra.mxu0 %v2646
      %v3021 = vpop.f32.mrf.mxu0
      %v3022 = vadd.f32 %v2932, %v3021
      %v3023 = vpop.f32.mrf.mxu0
      %3024 = vmatprep.mubr.f32.mxu0 %v2664
      %3025 = vmatmul.mubr.f32.gmra.mxu0 %v2648
      %v3026 = vpop.f32.mrf.mxu0
      %v3027 = vadd.f32 %v2937, %v3026
      %v3028 = vpop.f32.mrf.mxu0
      %3029 = vdwg.mxu0
      %v3030 = vlaneseq
      %v3031 = vshrl.u32 %v3030, 7
      %v3032 = vsub.s32 3, %v3031
      %v3033 = vrot.slane %v299, %v3032
      %v3034 = vmul.f32 %v3007, %v3033
      %v3035 = vmul.f32 %v3012, %v3033
      %v3036 = vmul.f32 %v3017, %v3033
      %v3037 = vmul.f32 %v3022, %v3033
      %v3038 = vmul.f32 %v3027, %v3033
      %v3039 = vlaneseq
      %v3040 = vshrl.u32 %v3039, 7
      %v3041 = vsub.s32 3, %v3040
      %v3042 = vrot.slane %v300, %v3041
      %v3043 = vadd.f32 %v3034, %v3042
      %v3044 = vadd.f32 %v3035, %v3042
      %v3045 = vadd.f32 %v3036, %v3042
      %v3046 = vadd.f32 %v3037, %v3042
      %v3047 = vadd.f32 %v3038, %v3042
      %v3048 = vmax.f32 %v3043, 0.0
      %v3049 = vmax.f32 %v3044, 0.0
      %v3050 = vmax.f32 %v3045, 0.0
      %v3051 = vmax.f32 %v3046, 0.0
      %v3052 = vmax.f32 %v3047, 0.0
      %v3053 = vsel %vm1227, %v3048, -inf
      %v3054 = vrot.slane %v3053, 4
      %v3055 = vmax.f32 %v3053, %v3054
      %v3056 = vrot.slane %v3055, 2
      %v3057 = vmax.f32 %v3055, %v3056
      %v3058 = vrot.slane %v3057, 1
      %v3059 = vmax.f32 %v3057, %v3058
      %vm3060 = vcmask 1047556
      %v3061 = vsel %vm3060, %v3048, -inf
      %v3062 = vrot.slane %v3061, 4
      %v3063 = vmax.f32 %v3061, %v3062
      %v3064 = vrot.slane %v3063, 2
      %v3065 = vmax.f32 %v3063, %v3064
      %v3066 = vrot.slane %v3065, 1
      %v3067 = vmax.f32 %v3065, %v3066
      %v3068 = vsel %vm1227, %v3049, -inf
      %v3069 = vrot.slane %v3068, 4
      %v3070 = vmax.f32 %v3068, %v3069
      %v3071 = vrot.slane %v3070, 2
      %v3072 = vmax.f32 %v3070, %v3071
      %v3073 = vrot.slane %v3072, 1
      %v3074 = vmax.f32 %v3072, %v3073
      %v3075 = vsel %vm3060, %v3049, -inf
      %v3076 = vrot.slane %v3075, 4
      %v3077 = vmax.f32 %v3075, %v3076
      %v3078 = vrot.slane %v3077, 2
      %v3079 = vmax.f32 %v3077, %v3078
      %v3080 = vrot.slane %v3079, 1
      %v3081 = vmax.f32 %v3079, %v3080
      %v3082 = vsel %vm1227, %v3050, -inf
      %v3083 = vrot.slane %v3082, 4
      %v3084 = vmax.f32 %v3082, %v3083
      %v3085 = vrot.slane %v3084, 2
      %v3086 = vmax.f32 %v3084, %v3085
      %v3087 = vrot.slane %v3086, 1
      %v3088 = vmax.f32 %v3086, %v3087
      %v3089 = vsel %vm3060, %v3050, -inf
      %v3090 = vrot.slane %v3089, 4
      %v3091 = vmax.f32 %v3089, %v3090
      %v3092 = vrot.slane %v3091, 2
      %v3093 = vmax.f32 %v3091, %v3092
      %v3094 = vrot.slane %v3093, 1
      %v3095 = vmax.f32 %v3093, %v3094
      %v3096 = vsel %vm1227, %v3051, -inf
      %v3097 = vrot.slane %v3096, 4
      %v3098 = vmax.f32 %v3096, %v3097
      %v3099 = vrot.slane %v3098, 2
      %v3100 = vmax.f32 %v3098, %v3099
      %v3101 = vrot.slane %v3100, 1
      %v3102 = vmax.f32 %v3100, %v3101
      %v3103 = vsel %vm3060, %v3051, -inf
      %v3104 = vrot.slane %v3103, 4
      %v3105 = vmax.f32 %v3103, %v3104
      %v3106 = vrot.slane %v3105, 2
      %v3107 = vmax.f32 %v3105, %v3106
      %v3108 = vrot.slane %v3107, 1
      %v3109 = vmax.f32 %v3107, %v3108
      %v3110 = vsel %vm1227, %v3052, -inf
      %v3111 = vrot.slane %v3110, 4
      %v3112 = vmax.f32 %v3110, %v3111
      %v3113 = vrot.slane %v3112, 2
      %v3114 = vmax.f32 %v3112, %v3113
      %v3115 = vrot.slane %v3114, 1
      %v3116 = vmax.f32 %v3114, %v3115
      %v3117 = vsel %vm3060, %v3052, -inf
      %v3118 = vrot.slane %v3117, 4
      %v3119 = vmax.f32 %v3117, %v3118
      %v3120 = vrot.slane %v3119, 2
      %v3121 = vmax.f32 %v3119, %v3120
      %v3122 = vrot.slane %v3121, 1
      %v3123 = vmax.f32 %v3121, %v3122
      %v3124 = vld [vmem:[%s293] sm:$0xff]
      %v3125 = vld [vmem:[%s293 + $0x8] sm:$0xff]
      %v3126 = vld [vmem:[%s293 + $0x10] sm:$0xff]
      %v3127 = vld [vmem:[%s293 + $0x18] sm:$0xff]
      %v3128 = vld [vmem:[%s293 + $0x20] sm:$0xff]
      %v3129 = vld [vmem:[%s293 + $0x28] sm:$0xff]
      %v3130 = vld [vmem:[%s293 + $0x30] sm:$0xff]
      %v3131 = vld [vmem:[%s293 + $0x38] sm:$0xff]
      %v3132 = vld [vmem:[%s293 + $0x40] sm:$0xff]
      %v3133 = vld [vmem:[%s293 + $0x48] sm:$0xff]
      %v3134 = vld [vmem:[%s293 + $0x50] sm:$0xff]
      %v3135 = vld [vmem:[%s293 + $0x58] sm:$0xff]
      %v3136 = vld [vmem:[%s293 + $0x60] sm:$0xff]
      %v3137 = vld [vmem:[%s293 + $0x68] sm:$0xff]
      %v3138 = vld [vmem:[%s293 + $0x70] sm:$0xff]
      %v3139 = vld [vmem:[%s293 + $0x78] sm:$0xff]
      %v3140 = vld [vmem:[%s293 + $0x80] sm:$0xff]
      %v3141 = vld [vmem:[%s293 + $0x88] sm:$0xff]
      %v3142 = vld [vmem:[%s293 + $0x90] sm:$0xff]
      %v3143 = vld [vmem:[%s293 + $0x98] sm:$0xff]
      %v3144 = vld [vmem:[%s293 + $0xa0] sm:$0xff]
      %v3145 = vld [vmem:[%s293 + $0xa8] sm:$0xff]
      %v3146 = vld [vmem:[%s293 + $0xb0] sm:$0xff]
      %v3147 = vld [vmem:[%s293 + $0xb8] sm:$0xff]
      %v3148 = vld [vmem:[%s293 + $0xc0] sm:$0xff]
      %v3149 = vld [vmem:[%s293 + $0xc8] sm:$0xff]
      %v3150 = vld [vmem:[%s293 + $0xd0] sm:$0xff]
      %v3151 = vld [vmem:[%s293 + $0xd8] sm:$0xff]
      %v3152 = vld [vmem:[%s293 + $0xe0] sm:$0xff]
      %v3153 = vld [vmem:[%s293 + $0xe8] sm:$0xff]
      %v3154 = vld [vmem:[%s293 + $0xf0] sm:$0xff]
      %v3155 = vld [vmem:[%s293 + $0xf8] sm:$0xff]
      %v3156 = vld [vmem:[%s3] sm:$0xff]
      %v3157 = vld [vmem:[%s3 + $0x8] sm:$0xff]
      %v3158 = vld [vmem:[%s3 + $0x10] sm:$0xff]
      %v3159 = vld [vmem:[%s3 + $0x18] sm:$0xff]
      %v3160 = vld [vmem:[%s3 + $0x20] sm:$0xff]
      %v3161 = vld [vmem:[%s3 + $0x28] sm:$0xff]
      %v3162 = vld [vmem:[%s3 + $0x30] sm:$0xff]
      %v3163 = vld [vmem:[%s3 + $0x38] sm:$0xff]
      %v3164 = vld [vmem:[%s3 + $0x40] sm:$0xff]
      %v3165 = vld [vmem:[%s3 + $0x48] sm:$0xff]
      %v3166 = vld [vmem:[%s3 + $0x50] sm:$0xff]
      %v3167 = vld [vmem:[%s3 + $0x58] sm:$0xff]
      %v3168 = vld [vmem:[%s3 + $0x60] sm:$0xff]
      %v3169 = vld [vmem:[%s3 + $0x68] sm:$0xff]
      %v3170 = vld [vmem:[%s3 + $0x70] sm:$0xff]
      %v3171 = vld [vmem:[%s3 + $0x78] sm:$0xff]
      %v3172 = vld [vmem:[%s3 + $0x80] sm:$0xff]
      %v3173 = vld [vmem:[%s3 + $0x88] sm:$0xff]
      %v3174 = vld [vmem:[%s3 + $0x90] sm:$0xff]
      %v3175 = vld [vmem:[%s3 + $0x98] sm:$0xff]
      %v3176 = vld [vmem:[%s3 + $0xa0] sm:$0xff]
      %v3177 = vld [vmem:[%s3 + $0xa8] sm:$0xff]
      %v3178 = vld [vmem:[%s3 + $0xb0] sm:$0xff]
      %v3179 = vld [vmem:[%s3 + $0xb8] sm:$0xff]
      %v3180 = vld [vmem:[%s3 + $0xc0] sm:$0xff]
      %v3181 = vld [vmem:[%s3 + $0xc8] sm:$0xff]
      %v3182 = vld [vmem:[%s3 + $0xd0] sm:$0xff]
      %v3183 = vld [vmem:[%s3 + $0xd8] sm:$0xff]
      %v3184 = vld [vmem:[%s3 + $0xe0] sm:$0xff]
      %v3185 = vld [vmem:[%s3 + $0xe8] sm:$0xff]
      %v3186 = vld [vmem:[%s3 + $0xf0] sm:$0xff]
      %v3187 = vld [vmem:[%s3 + $0xf8] sm:$0xff]
      %v3188 = vld [vmem:[%s3 + $0x100] sm:$0xff]
      %v3189 = vld [vmem:[%s3 + $0x108] sm:$0xff]
      %v3190 = vld [vmem:[%s3 + $0x110] sm:$0xff]
      %v3191 = vld [vmem:[%s3 + $0x118] sm:$0xff]
      %v3192 = vld [vmem:[%s3 + $0x120] sm:$0xff]
      %v3193 = vld [vmem:[%s3 + $0x128] sm:$0xff]
      %v3194 = vld [vmem:[%s3 + $0x130] sm:$0xff]
      %v3195 = vld [vmem:[%s3 + $0x138] sm:$0xff]
      %v3196 = vld [vmem:[%s3 + $0x140] sm:$0xff]
      %v3197 = vld [vmem:[%s3 + $0x148] sm:$0xff]
      %v3198 = vld [vmem:[%s3 + $0x150] sm:$0xff]
      %v3199 = vld [vmem:[%s3 + $0x158] sm:$0xff]
      %v3200 = vld [vmem:[%s3 + $0x160] sm:$0xff]
      %v3201 = vld [vmem:[%s3 + $0x168] sm:$0xff]
      %v3202 = vld [vmem:[%s3 + $0x170] sm:$0xff]
      %v3203 = vld [vmem:[%s3 + $0x178] sm:$0xff]
      %v3204 = vld [vmem:[%s3 + $0x180] sm:$0xff]
      %v3205 = vld [vmem:[%s3 + $0x188] sm:$0xff]
      %v3206 = vld [vmem:[%s3 + $0x190] sm:$0xff]
      %v3207 = vld [vmem:[%s3 + $0x198] sm:$0xff]
      %v3208 = vld [vmem:[%s3 + $0x1a0] sm:$0xff]
      %v3209 = vld [vmem:[%s3 + $0x1a8] sm:$0xff]
      %v3210 = vld [vmem:[%s3 + $0x1b0] sm:$0xff]
      %v3211 = vld [vmem:[%s3 + $0x1b8] sm:$0xff]
      %v3212 = vld [vmem:[%s3 + $0x1c0] sm:$0xff]
      %v3213 = vld [vmem:[%s3 + $0x1c8] sm:$0xff]
      %v3214 = vld [vmem:[%s3 + $0x1d0] sm:$0xff]
      %v3215 = vld [vmem:[%s3 + $0x1d8] sm:$0xff]
      %v3216 = vld [vmem:[%s3 + $0x1e0] sm:$0xff]
      %v3217 = vld [vmem:[%s3 + $0x1e8] sm:$0xff]
      %v3218 = vld [vmem:[%s3 + $0x1f0] sm:$0xff]
      %v3219 = vld [vmem:[%s3 + $0x1f8] sm:$0xff]
      %3220 = vmatprep.subr.mxu0 0.0
      %3221 = vmatpush1.msra.mxu0 %v3171
      %3222 = vmatprep.subr.mxu0 0.0
      %3223 = vmatpush1.msra.mxu0 %v3170
      %3224 = vmatprep.subr.mxu0 0.0
      %3225 = vmatpush1.msra.mxu0 %v3169
      %3226 = vmatprep.subr.mxu0 0.0
      %3227 = vmatpush1.msra.mxu0 %v3168
      %3228 = vmatprep.subr.mxu0 0.0
      %3229 = vmatpush1.msra.mxu0 %v3167
      %3230 = vmatprep.subr.mxu0 0.0
      %3231 = vmatpush1.msra.mxu0 %v3166
      %3232 = vmatprep.subr.mxu0 0.0
      %3233 = vmatpush1.msra.mxu0 %v3165
      %3234 = vmatprep.subr.mxu0 0.0
      %3235 = vmatpush1.msra.mxu0 %v3164
      %3236 = vmatprep.subr.mxu0 0.0
      %3237 = vmatpush1.msra.mxu0 %v3163
      %3238 = vmatprep.subr.mxu0 0.0
      %3239 = vmatpush1.msra.mxu0 %v3162
      %3240 = vmatprep.subr.mxu0 0.0
      %3241 = vmatpush1.msra.mxu0 %v3161
      %3242 = vmatprep.subr.mxu0 0.0
      %3243 = vmatpush1.msra.mxu0 %v3160
      %3244 = vmatprep.subr.mxu0 0.0
      %3245 = vmatpush1.msra.mxu0 %v3159
      %3246 = vmatprep.subr.mxu0 0.0
      %3247 = vmatpush1.msra.mxu0 %v3158
      %3248 = vmatprep.subr.mxu0 0.0
      %3249 = vmatpush1.msra.mxu0 %v3157
      %3250 = vmatprep.subr.mxu0 0.0
      %3251 = vmatpush1.msra.mxu0 %v3156
      %3252 = vmatprep.subr.mxu0 0.0
      %3253 = vmatpush2.msra.mxu0 %v3187
      %3254 = vmatprep.subr.mxu0 0.0
      %3255 = vmatpush2.msra.mxu0 %v3186
      %3256 = vmatprep.subr.mxu0 0.0
      %3257 = vmatpush2.msra.mxu0 %v3185
      %3258 = vmatprep.subr.mxu0 0.0
      %3259 = vmatpush2.msra.mxu0 %v3184
      %3260 = vmatprep.subr.mxu0 0.0
      %3261 = vmatpush2.msra.mxu0 %v3183
      %3262 = vmatprep.subr.mxu0 0.0
      %3263 = vmatpush2.msra.mxu0 %v3182
      %3264 = vmatprep.subr.mxu0 0.0
      %3265 = vmatpush2.msra.mxu0 %v3181
      %3266 = vmatprep.subr.mxu0 0.0
      %3267 = vmatpush2.msra.mxu0 %v3180
      %3268 = vmatprep.subr.mxu0 0.0
      %3269 = vmatpush2.msra.mxu0 %v3179
      %3270 = vmatprep.subr.mxu0 0.0
      %3271 = vmatpush2.msra.mxu0 %v3178
      %3272 = vmatprep.subr.mxu0 0.0
      %3273 = vmatpush2.msra.mxu0 %v3177
      %3274 = vmatprep.subr.mxu0 0.0
      %3275 = vmatpush2.msra.mxu0 %v3176
      %3276 = vmatprep.subr.mxu0 0.0
      %3277 = vmatpush2.msra.mxu0 %v3175
      %3278 = vmatprep.subr.mxu0 0.0
      %3279 = vmatpush2.msra.mxu0 %v3174
      %3280 = vmatprep.subr.mxu0 0.0
      %3281 = vmatpush2.msra.mxu0 %v3173
      %3282 = vmatprep.subr.mxu0 0.0
      %3283 = vmatpush2.msra.mxu0 %v3172
      %3284 = vmatprep.mubr.f32.mxu0 %v3125
      %3285 = vmatmul.mubr.f32.gmra.mxu0 %v3124
      %v3286 = vpop.f32.mrf.mxu0
      %v3287 = vadd.f32 0.0, %v3286
      %v3288 = vpop.f32.mrf.mxu0
      %3289 = vmatprep.mubr.f32.mxu0 %v3129
      %3290 = vmatmul.mubr.f32.gmra.mxu0 %v3128
      %v3291 = vpop.f32.mrf.mxu0
      %v3292 = vadd.f32 0.0, %v3291
      %v3293 = vpop.f32.mrf.mxu0
      %3294 = vmatprep.mubr.f32.mxu0 %v3133
      %3295 = vmatmul.mubr.f32.gmra.mxu0 %v3132
      %v3296 = vpop.f32.mrf.mxu0
      %v3297 = vadd.f32 0.0, %v3296
      %v3298 = vpop.f32.mrf.mxu0
      %3299 = vmatprep.mubr.f32.mxu0 %v3137
      %3300 = vmatmul.mubr.f32.gmra.mxu0 %v3136
      %v3301 = vpop.f32.mrf.mxu0
      %v3302 = vadd.f32 0.0, %v3301
      %v3303 = vpop.f32.mrf.mxu0
      %3304 = vmatprep.mubr.f32.mxu0 %v3141
      %3305 = vmatmul.mubr.f32.gmra.mxu0 %v3140
      %v3306 = vpop.f32.mrf.mxu0
      %v3307 = vadd.f32 0.0, %v3306
      %v3308 = vpop.f32.mrf.mxu0
      %3309 = vmatprep.mubr.f32.mxu0 %v3145
      %3310 = vmatmul.mubr.f32.gmra.mxu0 %v3144
      %v3311 = vpop.f32.mrf.mxu0
      %v3312 = vadd.f32 0.0, %v3311
      %v3313 = vpop.f32.mrf.mxu0
      %3314 = vmatprep.mubr.f32.mxu0 %v3149
      %3315 = vmatmul.mubr.f32.gmra.mxu0 %v3148
      %v3316 = vpop.f32.mrf.mxu0
      %v3317 = vadd.f32 0.0, %v3316
      %v3318 = vpop.f32.mrf.mxu0
      %3319 = vmatprep.mubr.f32.mxu0 %v3153
      %3320 = vmatmul.mubr.f32.gmra.mxu0 %v3152
      %v3321 = vpop.f32.mrf.mxu0
      %v3322 = vadd.f32 0.0, %v3321
      %v3323 = vpop.f32.mrf.mxu0
      %3324 = vdwg.mxu0
      %3325 = vmatprep.subr.mxu0 0.0
      %3326 = vmatpush1.msra.mxu0 %v3203
      %3327 = vmatprep.subr.mxu0 0.0
      %3328 = vmatpush1.msra.mxu0 %v3202
      %3329 = vmatprep.subr.mxu0 0.0
      %3330 = vmatpush1.msra.mxu0 %v3201
      %3331 = vmatprep.subr.mxu0 0.0
      %3332 = vmatpush1.msra.mxu0 %v3200
      %3333 = vmatprep.subr.mxu0 0.0
      %3334 = vmatpush1.msra.mxu0 %v3199
      %3335 = vmatprep.subr.mxu0 0.0
      %3336 = vmatpush1.msra.mxu0 %v3198
      %3337 = vmatprep.subr.mxu0 0.0
      %3338 = vmatpush1.msra.mxu0 %v3197
      %3339 = vmatprep.subr.mxu0 0.0
      %3340 = vmatpush1.msra.mxu0 %v3196
      %3341 = vmatprep.subr.mxu0 0.0
      %3342 = vmatpush1.msra.mxu0 %v3195
      %3343 = vmatprep.subr.mxu0 0.0
      %3344 = vmatpush1.msra.mxu0 %v3194
      %3345 = vmatprep.subr.mxu0 0.0
      %3346 = vmatpush1.msra.mxu0 %v3193
      %3347 = vmatprep.subr.mxu0 0.0
      %3348 = vmatpush1.msra.mxu0 %v3192
      %3349 = vmatprep.subr.mxu0 0.0
      %3350 = vmatpush1.msra.mxu0 %v3191
      %3351 = vmatprep.subr.mxu0 0.0
      %3352 = vmatpush1.msra.mxu0 %v3190
      %3353 = vmatprep.subr.mxu0 0.0
      %3354 = vmatpush1.msra.mxu0 %v3189
      %3355 = vmatprep.subr.mxu0 0.0
      %3356 = vmatpush1.msra.mxu0 %v3188
      %3357 = vmatprep.subr.mxu0 0.0
      %3358 = vmatpush2.msra.mxu0 %v3219
      %3359 = vmatprep.subr.mxu0 0.0
      %3360 = vmatpush2.msra.mxu0 %v3218
      %3361 = vmatprep.subr.mxu0 0.0
      %3362 = vmatpush2.msra.mxu0 %v3217
      %3363 = vmatprep.subr.mxu0 0.0
      %3364 = vmatpush2.msra.mxu0 %v3216
      %3365 = vmatprep.subr.mxu0 0.0
      %3366 = vmatpush2.msra.mxu0 %v3215
      %3367 = vmatprep.subr.mxu0 0.0
      %3368 = vmatpush2.msra.mxu0 %v3214
      %3369 = vmatprep.subr.mxu0 0.0
      %3370 = vmatpush2.msra.mxu0 %v3213
      %3371 = vmatprep.subr.mxu0 0.0
      %3372 = vmatpush2.msra.mxu0 %v3212
      %3373 = vmatprep.subr.mxu0 0.0
      %3374 = vmatpush2.msra.mxu0 %v3211
      %3375 = vmatprep.subr.mxu0 0.0
      %3376 = vmatpush2.msra.mxu0 %v3210
      %3377 = vmatprep.subr.mxu0 0.0
      %3378 = vmatpush2.msra.mxu0 %v3209
      %3379 = vmatprep.subr.mxu0 0.0
      %3380 = vmatpush2.msra.mxu0 %v3208
      %3381 = vmatprep.subr.mxu0 0.0
      %3382 = vmatpush2.msra.mxu0 %v3207
      %3383 = vmatprep.subr.mxu0 0.0
      %3384 = vmatpush2.msra.mxu0 %v3206
      %3385 = vmatprep.subr.mxu0 0.0
      %3386 = vmatpush2.msra.mxu0 %v3205
      %3387 = vmatprep.subr.mxu0 0.0
      %3388 = vmatpush2.msra.mxu0 %v3204
      %3389 = vmatprep.mubr.f32.mxu0 %v3127
      %3390 = vmatmul.mubr.f32.gmra.mxu0 %v3126
      %v3391 = vpop.f32.mrf.mxu0
      %v3392 = vadd.f32 %v3287, %v3391
      %v3393 = vpop.f32.mrf.mxu0
      %3394 = vmatprep.mubr.f32.mxu0 %v3131
      %3395 = vmatmul.mubr.f32.gmra.mxu0 %v3130
      %v3396 = vpop.f32.mrf.mxu0
      %v3397 = vadd.f32 %v3292, %v3396
      %v3398 = vpop.f32.mrf.mxu0
      %3399 = vmatprep.mubr.f32.mxu0 %v3135
      %3400 = vmatmul.mubr.f32.gmra.mxu0 %v3134
      %v3401 = vpop.f32.mrf.mxu0
      %v3402 = vadd.f32 %v3297, %v3401
      %v3403 = vpop.f32.mrf.mxu0
      %3404 = vmatprep.mubr.f32.mxu0 %v3139
      %3405 = vmatmul.mubr.f32.gmra.mxu0 %v3138
      %v3406 = vpop.f32.mrf.mxu0
      %v3407 = vadd.f32 %v3302, %v3406
      %v3408 = vpop.f32.mrf.mxu0
      %3409 = vmatprep.mubr.f32.mxu0 %v3143
      %3410 = vmatmul.mubr.f32.gmra.mxu0 %v3142
      %v3411 = vpop.f32.mrf.mxu0
      %v3412 = vadd.f32 %v3307, %v3411
      %v3413 = vpop.f32.mrf.mxu0
      %3414 = vmatprep.mubr.f32.mxu0 %v3147
      %3415 = vmatmul.mubr.f32.gmra.mxu0 %v3146
      %v3416 = vpop.f32.mrf.mxu0
      %v3417 = vadd.f32 %v3312, %v3416
      %v3418 = vpop.f32.mrf.mxu0
      %3419 = vmatprep.mubr.f32.mxu0 %v3151
      %3420 = vmatmul.mubr.f32.gmra.mxu0 %v3150
      %v3421 = vpop.f32.mrf.mxu0
      %v3422 = vadd.f32 %v3317, %v3421
      %v3423 = vpop.f32.mrf.mxu0
      %3424 = vmatprep.mubr.f32.mxu0 %v3155
      %3425 = vmatmul.mubr.f32.gmra.mxu0 %v3154
      %v3426 = vpop.f32.mrf.mxu0
      %v3427 = vadd.f32 %v3322, %v3426
      %v3428 = vpop.f32.mrf.mxu0
      %3429 = vdwg.mxu0
      %v3430 = vlaneseq
      %v3431 = vshrl.u32 %v3430, 7
      %v3432 = vsub.s32 4, %v3431
      %v3433 = vrot.slane %v299, %v3432
      %v3434 = vmul.f32 %v3392, %v3433
      %v3435 = vmul.f32 %v3397, %v3433
      %v3436 = vmul.f32 %v3402, %v3433
      %v3437 = vmul.f32 %v3407, %v3433
      %v3438 = vmul.f32 %v3412, %v3433
      %v3439 = vmul.f32 %v3417, %v3433
      %v3440 = vmul.f32 %v3422, %v3433
      %v3441 = vmul.f32 %v3427, %v3433
      %v3442 = vlaneseq
      %v3443 = vshrl.u32 %v3442, 7
      %v3444 = vsub.s32 4, %v3443
      %v3445 = vrot.slane %v300, %v3444
      %v3446 = vadd.f32 %v3434, %v3445
      %v3447 = vadd.f32 %v3435, %v3445
      %v3448 = vadd.f32 %v3436, %v3445
      %v3449 = vadd.f32 %v3437, %v3445
      %v3450 = vadd.f32 %v3438, %v3445
      %v3451 = vadd.f32 %v3439, %v3445
      %v3452 = vadd.f32 %v3440, %v3445
      %v3453 = vadd.f32 %v3441, %v3445
      %v3454 = vmax.f32 %v3446, 0.0
      %v3455 = vmax.f32 %v3447, 0.0
      %v3456 = vmax.f32 %v3448, 0.0
      %v3457 = vmax.f32 %v3449, 0.0
      %v3458 = vmax.f32 %v3450, 0.0
      %v3459 = vmax.f32 %v3451, 0.0
      %v3460 = vmax.f32 %v3452, 0.0
      %v3461 = vmax.f32 %v3453, 0.0
      %v3462 = vmax.f32 %v3454, %v3456
      %v3463 = vmax.f32 %v3455, %v3457
      %v3464 = vmax.f32 %v3462, %v3458
      %v3465 = vmax.f32 %v3463, %v3459
      %v3466 = vmax.f32 %v3464, %v3460
      %v3467 = vmax.f32 %v3465, %v3461
      %v3468 = vlaneseq
      %v3469 = vshrl.u32 %v3468, 7
      %v3470 = vadd.s32 %v3469, 8
      %vm3471 = vcmp.lt.s32.totalorder %v3469, 13
      %vm3472 = vcmp.lt.s32.totalorder %v3470, 13
      %v3473 = vsel %vm3471, %v3466, 0.0
      %v3474 = vsel %vm3472, %v3467, 0.0
      %v3477 = vrot.slane %v3473, 6
      %v3478 = vrot.slane %v3474, 6
      %v3479 = vsel %vm1273, %v3477, %v3478
      %v3483 = vsel %vm1273, 0.0, %v3477
      %v3484 = vsel %vm1273, %v3478, 0.0
      %v3487 = vrot.slane %v3483, 1
      %v3488 = vrot.slane %v3479, 1
      %v3489 = vsel %vm1158, %v3487, %v3488
      %v3490 = vrot.slane %v3484, 1
      %v3491 = vsel %vm1158, %v3488, %v3490
      %v3494 = vrot.slane %v3483, 2
      %v3495 = vrot.slane %v3479, 2
      %v3496 = vsel %vm1181, %v3494, %v3495
      %v3497 = vrot.slane %v3484, 2
      %v3498 = vsel %vm1181, %v3495, %v3497
      %v3501 = vrot.slane %v3483, 3
      %v3502 = vrot.slane %v3479, 3
      %v3503 = vsel %vm1204, %v3501, %v3502
      %v3504 = vrot.slane %v3484, 3
      %v3505 = vsel %vm1204, %v3502, %v3504
      %v3508 = vrot.slane %v3483, 4
      %v3509 = vrot.slane %v3479, 4
      %v3510 = vsel %vm1227, %v3508, %v3509
      %v3511 = vrot.slane %v3484, 4
      %v3512 = vsel %vm1227, %v3509, %v3511
      %v3515 = vrot.slane %v3483, 5
      %v3516 = vrot.slane %v3479, 5
      %v3517 = vsel %vm1250, %v3515, %v3516
      %v3518 = vrot.slane %v3484, 5
      %v3519 = vsel %vm1250, %v3516, %v3518
      %v3522 = vld [vmem:[%s5] sm:$0xff]
      %v3523 = vld [vmem:[%s5 + $0x8] sm:$0xff]
      %v3524 = vld [vmem:[%s5 + $0x10] sm:$0xff]
      %v3525 = vld [vmem:[%s5 + $0x18] sm:$0xff]
      %v3526 = vld [vmem:[%s5 + $0x20] sm:$0xff]
      %v3527 = vld [vmem:[%s5 + $0x28] sm:$0xff]
      %v3528 = vld [vmem:[%s5 + $0x30] sm:$0xff]
      %v3529 = vld [vmem:[%s5 + $0x38] sm:$0xff]
      %v3530 = vld [vmem:[%s5 + $0x40] sm:$0xff]
      %v3531 = vld [vmem:[%s5 + $0x48] sm:$0xff]
      %v3532 = vld [vmem:[%s5 + $0x50] sm:$0xff]
      %v3533 = vld [vmem:[%s5 + $0x58] sm:$0xff]
      %v3534 = vld [vmem:[%s5 + $0x60] sm:$0xff]
      %v3535 = vld [vmem:[%s5 + $0x68] sm:$0xff]
      %v3536 = vld [vmem:[%s5 + $0x70] sm:$0xff]
      %v3537 = vld [vmem:[%s5 + $0x78] sm:$0xff]
      %v3538 = vld [vmem:[%s5 + $0x80] sm:$0xff]
      %v3539 = vld [vmem:[%s5 + $0x88] sm:$0xff]
      %v3540 = vld [vmem:[%s5 + $0x90] sm:$0xff]
      %v3541 = vld [vmem:[%s5 + $0x98] sm:$0xff]
      %v3542 = vld [vmem:[%s5 + $0xa0] sm:$0xff]
      %v3543 = vld [vmem:[%s5 + $0xa8] sm:$0xff]
      %v3544 = vld [vmem:[%s5 + $0xb0] sm:$0xff]
      %v3545 = vld [vmem:[%s5 + $0xb8] sm:$0xff]
      %v3546 = vld [vmem:[%s5 + $0xc0] sm:$0xff]
      %v3547 = vld [vmem:[%s5 + $0xc8] sm:$0xff]
      %v3548 = vld [vmem:[%s5 + $0xd0] sm:$0xff]
      %v3549 = vld [vmem:[%s5 + $0xd8] sm:$0xff]
      %v3550 = vld [vmem:[%s5 + $0xe0] sm:$0xff]
      %v3551 = vld [vmem:[%s5 + $0xe8] sm:$0xff]
      %v3552 = vld [vmem:[%s5 + $0xf0] sm:$0xff]
      %v3553 = vld [vmem:[%s5 + $0xf8] sm:$0xff]
      %v3554 = vld [vmem:[%s5 + $0x100] sm:$0xff]
      %v3555 = vld [vmem:[%s5 + $0x108] sm:$0xff]
      %v3556 = vld [vmem:[%s5 + $0x110] sm:$0xff]
      %v3557 = vld [vmem:[%s5 + $0x118] sm:$0xff]
      %v3558 = vld [vmem:[%s5 + $0x120] sm:$0xff]
      %v3559 = vld [vmem:[%s5 + $0x128] sm:$0xff]
      %v3560 = vld [vmem:[%s5 + $0x130] sm:$0xff]
      %v3561 = vld [vmem:[%s5 + $0x138] sm:$0xff]
      %v3562 = vld [vmem:[%s5 + $0x140] sm:$0xff]
      %v3563 = vld [vmem:[%s5 + $0x148] sm:$0xff]
      %v3564 = vld [vmem:[%s5 + $0x150] sm:$0xff]
      %v3565 = vld [vmem:[%s5 + $0x158] sm:$0xff]
      %v3566 = vld [vmem:[%s5 + $0x160] sm:$0xff]
      %v3567 = vld [vmem:[%s5 + $0x168] sm:$0xff]
      %v3568 = vld [vmem:[%s5 + $0x170] sm:$0xff]
      %v3569 = vld [vmem:[%s5 + $0x178] sm:$0xff]
      %v3570 = vld [vmem:[%s5 + $0x180] sm:$0xff]
      %v3571 = vld [vmem:[%s5 + $0x188] sm:$0xff]
      %v3572 = vld [vmem:[%s5 + $0x190] sm:$0xff]
      %v3573 = vld [vmem:[%s5 + $0x198] sm:$0xff]
      %v3574 = vld [vmem:[%s5 + $0x1a0] sm:$0xff]
      %v3575 = vld [vmem:[%s5 + $0x1a8] sm:$0xff]
      %v3576 = vld [vmem:[%s5 + $0x1b0] sm:$0xff]
      %v3577 = vld [vmem:[%s5 + $0x1b8] sm:$0xff]
      %v3578 = vld [vmem:[%s5 + $0x1c0] sm:$0xff]
      %v3579 = vld [vmem:[%s5 + $0x1c8] sm:$0xff]
      %v3580 = vld [vmem:[%s5 + $0x1d0] sm:$0xff]
      %v3581 = vld [vmem:[%s5 + $0x1d8] sm:$0xff]
      %v3582 = vld [vmem:[%s5 + $0x1e0] sm:$0xff]
      %v3583 = vld [vmem:[%s5 + $0x1e8] sm:$0xff]
      %v3584 = vld [vmem:[%s5 + $0x1f0] sm:$0xff]
      %v3585 = vld [vmem:[%s5 + $0x1f8] sm:$0xff]
      %v3586 = vld [vmem:[%s5 + $0x200] sm:$0xff]
      %v3587 = vld [vmem:[%s5 + $0x208] sm:$0xff]
      %v3588 = vld [vmem:[%s5 + $0x210] sm:$0xff]
      %v3589 = vld [vmem:[%s5 + $0x218] sm:$0xff]
      %v3590 = vld [vmem:[%s5 + $0x220] sm:$0xff]
      %v3591 = vld [vmem:[%s5 + $0x228] sm:$0xff]
      %v3592 = vld [vmem:[%s5 + $0x230] sm:$0xff]
      %v3593 = vld [vmem:[%s5 + $0x238] sm:$0xff]
      %v3594 = vld [vmem:[%s5 + $0x240] sm:$0xff]
      %v3595 = vld [vmem:[%s5 + $0x248] sm:$0xff]
      %v3596 = vld [vmem:[%s5 + $0x250] sm:$0xff]
      %v3597 = vld [vmem:[%s5 + $0x258] sm:$0xff]
      %v3598 = vld [vmem:[%s5 + $0x260] sm:$0xff]
      %v3599 = vld [vmem:[%s5 + $0x268] sm:$0xff]
      %v3600 = vld [vmem:[%s5 + $0x270] sm:$0xff]
      %v3601 = vld [vmem:[%s5 + $0x278] sm:$0xff]
      %v3602 = vld [vmem:[%s5 + $0x280] sm:$0xff]
      %v3603 = vld [vmem:[%s5 + $0x288] sm:$0xff]
      %v3604 = vld [vmem:[%s5 + $0x290] sm:$0xff]
      %v3605 = vld [vmem:[%s5 + $0x298] sm:$0xff]
      %v3606 = vld [vmem:[%s5 + $0x2a0] sm:$0xff]
      %v3607 = vld [vmem:[%s5 + $0x2a8] sm:$0xff]
      %v3608 = vld [vmem:[%s5 + $0x2b0] sm:$0xff]
      %v3609 = vld [vmem:[%s5 + $0x2b8] sm:$0xff]
      %v3610 = vld [vmem:[%s5 + $0x2c0] sm:$0xff]
      %v3611 = vld [vmem:[%s5 + $0x2c8] sm:$0xff]
      %v3612 = vld [vmem:[%s5 + $0x2d0] sm:$0xff]
      %v3613 = vld [vmem:[%s5 + $0x2d8] sm:$0xff]
      %v3614 = vld [vmem:[%s5 + $0x2e0] sm:$0xff]
      %v3615 = vld [vmem:[%s5 + $0x2e8] sm:$0xff]
      %v3616 = vld [vmem:[%s5 + $0x2f0] sm:$0xff]
      %v3617 = vld [vmem:[%s5 + $0x2f8] sm:$0xff]
      %3618 = vmatprep.subr.mxu0 0.0
      %3619 = vmatpush1.msra.mxu0 %v3537
      %3620 = vmatprep.subr.mxu0 0.0
      %3621 = vmatpush1.msra.mxu0 %v3536
      %3622 = vmatprep.subr.mxu0 0.0
      %3623 = vmatpush1.msra.mxu0 %v3535
      %3624 = vmatprep.subr.mxu0 0.0
      %3625 = vmatpush1.msra.mxu0 %v3534
      %3626 = vmatprep.subr.mxu0 0.0
      %3627 = vmatpush1.msra.mxu0 %v3533
      %3628 = vmatprep.subr.mxu0 0.0
      %3629 = vmatpush1.msra.mxu0 %v3532
      %3630 = vmatprep.subr.mxu0 0.0
      %3631 = vmatpush1.msra.mxu0 %v3531
      %3632 = vmatprep.subr.mxu0 0.0
      %3633 = vmatpush1.msra.mxu0 %v3530
      %3634 = vmatprep.subr.mxu0 0.0
      %3635 = vmatpush1.msra.mxu0 %v3529
      %3636 = vmatprep.subr.mxu0 0.0
      %3637 = vmatpush1.msra.mxu0 %v3528
      %3638 = vmatprep.subr.mxu0 0.0
      %3639 = vmatpush1.msra.mxu0 %v3527
      %3640 = vmatprep.subr.mxu0 0.0
      %3641 = vmatpush1.msra.mxu0 %v3526
      %3642 = vmatprep.subr.mxu0 0.0
      %3643 = vmatpush1.msra.mxu0 %v3525
      %3644 = vmatprep.subr.mxu0 0.0
      %3645 = vmatpush1.msra.mxu0 %v3524
      %3646 = vmatprep.subr.mxu0 0.0
      %3647 = vmatpush1.msra.mxu0 %v3523
      %3648 = vmatprep.subr.mxu0 0.0
      %3649 = vmatpush1.msra.mxu0 %v3522
      %3650 = vmatprep.subr.mxu0 0.0
      %3651 = vmatpush2.msra.mxu0 %v3553
      %3652 = vmatprep.subr.mxu0 0.0
      %3653 = vmatpush2.msra.mxu0 %v3552
      %3654 = vmatprep.subr.mxu0 0.0
      %3655 = vmatpush2.msra.mxu0 %v3551
      %3656 = vmatprep.subr.mxu0 0.0
      %3657 = vmatpush2.msra.mxu0 %v3550
      %3658 = vmatprep.subr.mxu0 0.0
      %3659 = vmatpush2.msra.mxu0 %v3549
      %3660 = vmatprep.subr.mxu0 0.0
      %3661 = vmatpush2.msra.mxu0 %v3548
      %3662 = vmatprep.subr.mxu0 0.0
      %3663 = vmatpush2.msra.mxu0 %v3547
      %3664 = vmatprep.subr.mxu0 0.0
      %3665 = vmatpush2.msra.mxu0 %v3546
      %3666 = vmatprep.subr.mxu0 0.0
      %3667 = vmatpush2.msra.mxu0 %v3545
      %3668 = vmatprep.subr.mxu0 0.0
      %3669 = vmatpush2.msra.mxu0 %v3544
      %3670 = vmatprep.subr.mxu0 0.0
      %3671 = vmatpush2.msra.mxu0 %v3543
      %3672 = vmatprep.subr.mxu0 0.0
      %3673 = vmatpush2.msra.mxu0 %v3542
      %3674 = vmatprep.subr.mxu0 0.0
      %3675 = vmatpush2.msra.mxu0 %v3541
      %3676 = vmatprep.subr.mxu0 0.0
      %3677 = vmatpush2.msra.mxu0 %v3540
      %3678 = vmatprep.subr.mxu0 0.0
      %3679 = vmatpush2.msra.mxu0 %v3539
      %3680 = vmatprep.subr.mxu0 0.0
      %3681 = vmatpush2.msra.mxu0 %v3538
      %3682 = vmatprep.mubr.f32.mxu0 %v3489
      %3683 = vmatmul.mubr.f32.gmra.mxu0 %v3483
      %v3684 = vpop.f32.mrf.mxu0
      %v3685 = vadd.f32 0.0, %v3684
      %v3686 = vpop.f32.mrf.mxu0
      %3687 = vmatprep.mubr.f32.mxu0 %v3491
      %3688 = vmatmul.mubr.f32.gmra.mxu0 %v3479
      %v3689 = vpop.f32.mrf.mxu0
      %v3690 = vadd.f32 0.0, %v3689
      %v3691 = vpop.f32.mrf.mxu0
      %3692 = vdwg.mxu0
      %3693 = vmatprep.subr.mxu0 0.0
      %3694 = vmatpush1.msra.mxu0 %v3569
      %3695 = vmatprep.subr.mxu0 0.0
      %3696 = vmatpush1.msra.mxu0 %v3568
      %3697 = vmatprep.subr.mxu0 0.0
      %3698 = vmatpush1.msra.mxu0 %v3567
      %3699 = vmatprep.subr.mxu0 0.0
      %3700 = vmatpush1.msra.mxu0 %v3566
      %3701 = vmatprep.subr.mxu0 0.0
      %3702 = vmatpush1.msra.mxu0 %v3565
      %3703 = vmatprep.subr.mxu0 0.0
      %3704 = vmatpush1.msra.mxu0 %v3564
      %3705 = vmatprep.subr.mxu0 0.0
      %3706 = vmatpush1.msra.mxu0 %v3563
      %3707 = vmatprep.subr.mxu0 0.0
      %3708 = vmatpush1.msra.mxu0 %v3562
      %3709 = vmatprep.subr.mxu0 0.0
      %3710 = vmatpush1.msra.mxu0 %v3561
      %3711 = vmatprep.subr.mxu0 0.0
      %3712 = vmatpush1.msra.mxu0 %v3560
      %3713 = vmatprep.subr.mxu0 0.0
      %3714 = vmatpush1.msra.mxu0 %v3559
      %3715 = vmatprep.subr.mxu0 0.0
      %3716 = vmatpush1.msra.mxu0 %v3558
      %3717 = vmatprep.subr.mxu0 0.0
      %3718 = vmatpush1.msra.mxu0 %v3557
      %3719 = vmatprep.subr.mxu0 0.0
      %3720 = vmatpush1.msra.mxu0 %v3556
      %3721 = vmatprep.subr.mxu0 0.0
      %3722 = vmatpush1.msra.mxu0 %v3555
      %3723 = vmatprep.subr.mxu0 0.0
      %3724 = vmatpush1.msra.mxu0 %v3554
      %3725 = vmatprep.subr.mxu0 0.0
      %3726 = vmatpush2.msra.mxu0 %v3585
      %3727 = vmatprep.subr.mxu0 0.0
      %3728 = vmatpush2.msra.mxu0 %v3584
      %3729 = vmatprep.subr.mxu0 0.0
      %3730 = vmatpush2.msra.mxu0 %v3583
      %3731 = vmatprep.subr.mxu0 0.0
      %3732 = vmatpush2.msra.mxu0 %v3582
      %3733 = vmatprep.subr.mxu0 0.0
      %3734 = vmatpush2.msra.mxu0 %v3581
      %3735 = vmatprep.subr.mxu0 0.0
      %3736 = vmatpush2.msra.mxu0 %v3580
      %3737 = vmatprep.subr.mxu0 0.0
      %3738 = vmatpush2.msra.mxu0 %v3579
      %3739 = vmatprep.subr.mxu0 0.0
      %3740 = vmatpush2.msra.mxu0 %v3578
      %3741 = vmatprep.subr.mxu0 0.0
      %3742 = vmatpush2.msra.mxu0 %v3577
      %3743 = vmatprep.subr.mxu0 0.0
      %3744 = vmatpush2.msra.mxu0 %v3576
      %3745 = vmatprep.subr.mxu0 0.0
      %3746 = vmatpush2.msra.mxu0 %v3575
      %3747 = vmatprep.subr.mxu0 0.0
      %3748 = vmatpush2.msra.mxu0 %v3574
      %3749 = vmatprep.subr.mxu0 0.0
      %3750 = vmatpush2.msra.mxu0 %v3573
      %3751 = vmatprep.subr.mxu0 0.0
      %3752 = vmatpush2.msra.mxu0 %v3572
      %3753 = vmatprep.subr.mxu0 0.0
      %3754 = vmatpush2.msra.mxu0 %v3571
      %3755 = vmatprep.subr.mxu0 0.0
      %3756 = vmatpush2.msra.mxu0 %v3570
      %3757 = vmatprep.mubr.f32.mxu0 %v3503
      %3758 = vmatmul.mubr.f32.gmra.mxu0 %v3496
      %v3759 = vpop.f32.mrf.mxu0
      %v3760 = vadd.f32 %v3685, %v3759
      %v3761 = vpop.f32.mrf.mxu0
      %3762 = vmatprep.mubr.f32.mxu0 %v3505
      %3763 = vmatmul.mubr.f32.gmra.mxu0 %v3498
      %v3764 = vpop.f32.mrf.mxu0
      %v3765 = vadd.f32 %v3690, %v3764
      %v3766 = vpop.f32.mrf.mxu0
      %3767 = vdwg.mxu0
      %3768 = vmatprep.subr.mxu0 0.0
      %3769 = vmatpush1.msra.mxu0 %v3601
      %3770 = vmatprep.subr.mxu0 0.0
      %3771 = vmatpush1.msra.mxu0 %v3600
      %3772 = vmatprep.subr.mxu0 0.0
      %3773 = vmatpush1.msra.mxu0 %v3599
      %3774 = vmatprep.subr.mxu0 0.0
      %3775 = vmatpush1.msra.mxu0 %v3598
      %3776 = vmatprep.subr.mxu0 0.0
      %3777 = vmatpush1.msra.mxu0 %v3597
      %3778 = vmatprep.subr.mxu0 0.0
      %3779 = vmatpush1.msra.mxu0 %v3596
      %3780 = vmatprep.subr.mxu0 0.0
      %3781 = vmatpush1.msra.mxu0 %v3595
      %3782 = vmatprep.subr.mxu0 0.0
      %3783 = vmatpush1.msra.mxu0 %v3594
      %3784 = vmatprep.subr.mxu0 0.0
      %3785 = vmatpush1.msra.mxu0 %v3593
      %3786 = vmatprep.subr.mxu0 0.0
      %3787 = vmatpush1.msra.mxu0 %v3592
      %3788 = vmatprep.subr.mxu0 0.0
      %3789 = vmatpush1.msra.mxu0 %v3591
      %3790 = vmatprep.subr.mxu0 0.0
      %3791 = vmatpush1.msra.mxu0 %v3590
      %3792 = vmatprep.subr.mxu0 0.0
      %3793 = vmatpush1.msra.mxu0 %v3589
      %3794 = vmatprep.subr.mxu0 0.0
      %3795 = vmatpush1.msra.mxu0 %v3588
      %3796 = vmatprep.subr.mxu0 0.0
      %3797 = vmatpush1.msra.mxu0 %v3587
      %3798 = vmatprep.subr.mxu0 0.0
      %3799 = vmatpush1.msra.mxu0 %v3586
      %3800 = vmatprep.subr.mxu0 0.0
      %3801 = vmatpush2.msra.mxu0 %v3617
      %3802 = vmatprep.subr.mxu0 0.0
      %3803 = vmatpush2.msra.mxu0 %v3616
      %3804 = vmatprep.subr.mxu0 0.0
      %3805 = vmatpush2.msra.mxu0 %v3615
      %3806 = vmatprep.subr.mxu0 0.0
      %3807 = vmatpush2.msra.mxu0 %v3614
      %3808 = vmatprep.subr.mxu0 0.0
      %3809 = vmatpush2.msra.mxu0 %v3613
      %3810 = vmatprep.subr.mxu0 0.0
      %3811 = vmatpush2.msra.mxu0 %v3612
      %3812 = vmatprep.subr.mxu0 0.0
      %3813 = vmatpush2.msra.mxu0 %v3611
      %3814 = vmatprep.subr.mxu0 0.0
      %3815 = vmatpush2.msra.mxu0 %v3610
      %3816 = vmatprep.subr.mxu0 0.0
      %3817 = vmatpush2.msra.mxu0 %v3609
      %3818 = vmatprep.subr.mxu0 0.0
      %3819 = vmatpush2.msra.mxu0 %v3608
      %3820 = vmatprep.subr.mxu0 0.0
      %3821 = vmatpush2.msra.mxu0 %v3607
      %3822 = vmatprep.subr.mxu0 0.0
      %3823 = vmatpush2.msra.mxu0 %v3606
      %3824 = vmatprep.subr.mxu0 0.0
      %3825 = vmatpush2.msra.mxu0 %v3605
      %3826 = vmatprep.subr.mxu0 0.0
      %3827 = vmatpush2.msra.mxu0 %v3604
      %3828 = vmatprep.subr.mxu0 0.0
      %3829 = vmatpush2.msra.mxu0 %v3603
      %3830 = vmatprep.subr.mxu0 0.0
      %3831 = vmatpush2.msra.mxu0 %v3602
      %3832 = vmatprep.mubr.f32.mxu0 %v3517
      %3833 = vmatmul.mubr.f32.gmra.mxu0 %v3510
      %v3834 = vpop.f32.mrf.mxu0
      %v3835 = vadd.f32 %v3760, %v3834
      %v3836 = vpop.f32.mrf.mxu0
      %3837 = vmatprep.mubr.f32.mxu0 %v3519
      %3838 = vmatmul.mubr.f32.gmra.mxu0 %v3512
      %v3839 = vpop.f32.mrf.mxu0
      %v3840 = vadd.f32 %v3765, %v3839
      %v3841 = vpop.f32.mrf.mxu0
      %3842 = vdwg.mxu0
      %v3843 = vlaneseq
      %v3844 = vshrl.u32 %v3843, 7
      %v3845 = vsub.s32 5, %v3844
      %v3846 = vrot.slane %v299, %v3845
      %v3847 = vmul.f32 %v3835, %v3846
      %v3848 = vmul.f32 %v3840, %v3846
      %v3849 = vlaneseq
      %v3850 = vshrl.u32 %v3849, 7
      %v3851 = vsub.s32 5, %v3850
      %v3852 = vrot.slane %v300, %v3851
      %v3853 = vadd.f32 %v3847, %v3852
      %v3854 = vadd.f32 %v3848, %v3852
      %v3855 = vmax.f32 %v3853, 0.0
      %v3856 = vmax.f32 %v3854, 0.0
      %vm3857 = vcmp.lt.s32.totalorder %v3469, 12
      %vm3858 = vcmp.lt.s32.totalorder %v3470, 12
      %v3859 = vsel %vm3857, %v3855, 0.0
      %v3860 = vsel %vm3858, %v3856, 0.0
      %v3863 = vrot.slane %v3859, 6
      %v3864 = vrot.slane %v3860, 6
      %v3865 = vsel %vm1273, %v3863, %v3864
      %v3869 = vsel %vm1273, 0.0, %v3863
      %v3870 = vsel %vm1273, %v3864, 0.0
      %v3873 = vrot.slane %v3869, 1
      %v3874 = vrot.slane %v3865, 1
      %v3875 = vsel %vm1158, %v3873, %v3874
      %v3876 = vrot.slane %v3870, 1
      %v3877 = vsel %vm1158, %v3874, %v3876
      %v3880 = vrot.slane %v3869, 2
      %v3881 = vrot.slane %v3865, 2
      %v3882 = vsel %vm1181, %v3880, %v3881
      %v3883 = vrot.slane %v3870, 2
      %v3884 = vsel %vm1181, %v3881, %v3883
      %v3887 = vrot.slane %v3869, 3
      %v3888 = vrot.slane %v3865, 3
      %v3889 = vsel %vm1204, %v3887, %v3888
      %v3890 = vrot.slane %v3870, 3
      %v3891 = vsel %vm1204, %v3888, %v3890
      %v3894 = vrot.slane %v3869, 4
      %v3895 = vrot.slane %v3865, 4
      %v3896 = vsel %vm1227, %v3894, %v3895
      %v3897 = vrot.slane %v3870, 4
      %v3898 = vsel %vm1227, %v3895, %v3897
      %v3901 = vrot.slane %v3869, 5
      %v3902 = vrot.slane %v3865, 5
      %v3903 = vsel %vm1250, %v3901, %v3902
      %v3904 = vrot.slane %v3870, 5
      %v3905 = vsel %vm1250, %v3902, %v3904
      %s3908 = scalar_lea.vmem %s5, 768
      %v3909 = vld [vmem:[%s3908] sm:$0xff]
      %v3910 = vld [vmem:[%s3908 + $0x8] sm:$0xff]
      %v3911 = vld [vmem:[%s3908 + $0x10] sm:$0xff]
      %v3912 = vld [vmem:[%s3908 + $0x18] sm:$0xff]
      %v3913 = vld [vmem:[%s3908 + $0x20] sm:$0xff]
      %v3914 = vld [vmem:[%s3908 + $0x28] sm:$0xff]
      %v3915 = vld [vmem:[%s3908 + $0x30] sm:$0xff]
      %v3916 = vld [vmem:[%s3908 + $0x38] sm:$0xff]
      %v3917 = vld [vmem:[%s3908 + $0x40] sm:$0xff]
      %v3918 = vld [vmem:[%s3908 + $0x48] sm:$0xff]
      %v3919 = vld [vmem:[%s3908 + $0x50] sm:$0xff]
      %v3920 = vld [vmem:[%s3908 + $0x58] sm:$0xff]
      %v3921 = vld [vmem:[%s3908 + $0x60] sm:$0xff]
      %v3922 = vld [vmem:[%s3908 + $0x68] sm:$0xff]
      %v3923 = vld [vmem:[%s3908 + $0x70] sm:$0xff]
      %v3924 = vld [vmem:[%s3908 + $0x78] sm:$0xff]
      %v3925 = vld [vmem:[%s3908 + $0x80] sm:$0xff]
      %v3926 = vld [vmem:[%s3908 + $0x88] sm:$0xff]
      %v3927 = vld [vmem:[%s3908 + $0x90] sm:$0xff]
      %v3928 = vld [vmem:[%s3908 + $0x98] sm:$0xff]
      %v3929 = vld [vmem:[%s3908 + $0xa0] sm:$0xff]
      %v3930 = vld [vmem:[%s3908 + $0xa8] sm:$0xff]
      %v3931 = vld [vmem:[%s3908 + $0xb0] sm:$0xff]
      %v3932 = vld [vmem:[%s3908 + $0xb8] sm:$0xff]
      %v3933 = vld [vmem:[%s3908 + $0xc0] sm:$0xff]
      %v3934 = vld [vmem:[%s3908 + $0xc8] sm:$0xff]
      %v3935 = vld [vmem:[%s3908 + $0xd0] sm:$0xff]
      %v3936 = vld [vmem:[%s3908 + $0xd8] sm:$0xff]
      %v3937 = vld [vmem:[%s3908 + $0xe0] sm:$0xff]
      %v3938 = vld [vmem:[%s3908 + $0xe8] sm:$0xff]
      %v3939 = vld [vmem:[%s3908 + $0xf0] sm:$0xff]
      %v3940 = vld [vmem:[%s3908 + $0xf8] sm:$0xff]
      %v3941 = vld [vmem:[%s3908 + $0x100] sm:$0xff]
      %v3942 = vld [vmem:[%s3908 + $0x108] sm:$0xff]
      %v3943 = vld [vmem:[%s3908 + $0x110] sm:$0xff]
      %v3944 = vld [vmem:[%s3908 + $0x118] sm:$0xff]
      %v3945 = vld [vmem:[%s3908 + $0x120] sm:$0xff]
      %v3946 = vld [vmem:[%s3908 + $0x128] sm:$0xff]
      %v3947 = vld [vmem:[%s3908 + $0x130] sm:$0xff]
      %v3948 = vld [vmem:[%s3908 + $0x138] sm:$0xff]
      %v3949 = vld [vmem:[%s3908 + $0x140] sm:$0xff]
      %v3950 = vld [vmem:[%s3908 + $0x148] sm:$0xff]
      %v3951 = vld [vmem:[%s3908 + $0x150] sm:$0xff]
      %v3952 = vld [vmem:[%s3908 + $0x158] sm:$0xff]
      %v3953 = vld [vmem:[%s3908 + $0x160] sm:$0xff]
      %v3954 = vld [vmem:[%s3908 + $0x168] sm:$0xff]
      %v3955 = vld [vmem:[%s3908 + $0x170] sm:$0xff]
      %v3956 = vld [vmem:[%s3908 + $0x178] sm:$0xff]
      %v3957 = vld [vmem:[%s3908 + $0x180] sm:$0xff]
      %v3958 = vld [vmem:[%s3908 + $0x188] sm:$0xff]
      %v3959 = vld [vmem:[%s3908 + $0x190] sm:$0xff]
      %v3960 = vld [vmem:[%s3908 + $0x198] sm:$0xff]
      %v3961 = vld [vmem:[%s3908 + $0x1a0] sm:$0xff]
      %v3962 = vld [vmem:[%s3908 + $0x1a8] sm:$0xff]
      %v3963 = vld [vmem:[%s3908 + $0x1b0] sm:$0xff]
      %v3964 = vld [vmem:[%s3908 + $0x1b8] sm:$0xff]
      %v3965 = vld [vmem:[%s3908 + $0x1c0] sm:$0xff]
      %v3966 = vld [vmem:[%s3908 + $0x1c8] sm:$0xff]
      %v3967 = vld [vmem:[%s3908 + $0x1d0] sm:$0xff]
      %v3968 = vld [vmem:[%s3908 + $0x1d8] sm:$0xff]
      %v3969 = vld [vmem:[%s3908 + $0x1e0] sm:$0xff]
      %v3970 = vld [vmem:[%s3908 + $0x1e8] sm:$0xff]
      %v3971 = vld [vmem:[%s3908 + $0x1f0] sm:$0xff]
      %v3972 = vld [vmem:[%s3908 + $0x1f8] sm:$0xff]
      %v3973 = vld [vmem:[%s3908 + $0x200] sm:$0xff]
      %v3974 = vld [vmem:[%s3908 + $0x208] sm:$0xff]
      %v3975 = vld [vmem:[%s3908 + $0x210] sm:$0xff]
      %v3976 = vld [vmem:[%s3908 + $0x218] sm:$0xff]
      %v3977 = vld [vmem:[%s3908 + $0x220] sm:$0xff]
      %v3978 = vld [vmem:[%s3908 + $0x228] sm:$0xff]
      %v3979 = vld [vmem:[%s3908 + $0x230] sm:$0xff]
      %v3980 = vld [vmem:[%s3908 + $0x238] sm:$0xff]
      %v3981 = vld [vmem:[%s3908 + $0x240] sm:$0xff]
      %v3982 = vld [vmem:[%s3908 + $0x248] sm:$0xff]
      %v3983 = vld [vmem:[%s3908 + $0x250] sm:$0xff]
      %v3984 = vld [vmem:[%s3908 + $0x258] sm:$0xff]
      %v3985 = vld [vmem:[%s3908 + $0x260] sm:$0xff]
      %v3986 = vld [vmem:[%s3908 + $0x268] sm:$0xff]
      %v3987 = vld [vmem:[%s3908 + $0x270] sm:$0xff]
      %v3988 = vld [vmem:[%s3908 + $0x278] sm:$0xff]
      %v3989 = vld [vmem:[%s3908 + $0x280] sm:$0xff]
      %v3990 = vld [vmem:[%s3908 + $0x288] sm:$0xff]
      %v3991 = vld [vmem:[%s3908 + $0x290] sm:$0xff]
      %v3992 = vld [vmem:[%s3908 + $0x298] sm:$0xff]
      %v3993 = vld [vmem:[%s3908 + $0x2a0] sm:$0xff]
      %v3994 = vld [vmem:[%s3908 + $0x2a8] sm:$0xff]
      %v3995 = vld [vmem:[%s3908 + $0x2b0] sm:$0xff]
      %v3996 = vld [vmem:[%s3908 + $0x2b8] sm:$0xff]
      %v3997 = vld [vmem:[%s3908 + $0x2c0] sm:$0xff]
      %v3998 = vld [vmem:[%s3908 + $0x2c8] sm:$0xff]
      %v3999 = vld [vmem:[%s3908 + $0x2d0] sm:$0xff]
      %v4000 = vld [vmem:[%s3908 + $0x2d8] sm:$0xff]
      %v4001 = vld [vmem:[%s3908 + $0x2e0] sm:$0xff]
      %v4002 = vld [vmem:[%s3908 + $0x2e8] sm:$0xff]
      %v4003 = vld [vmem:[%s3908 + $0x2f0] sm:$0xff]
      %v4004 = vld [vmem:[%s3908 + $0x2f8] sm:$0xff]
      %4005 = vmatprep.subr.mxu0 0.0
      %4006 = vmatpush1.msra.mxu0 %v3924
      %4007 = vmatprep.subr.mxu0 0.0
      %4008 = vmatpush1.msra.mxu0 %v3923
      %4009 = vmatprep.subr.mxu0 0.0
      %4010 = vmatpush1.msra.mxu0 %v3922
      %4011 = vmatprep.subr.mxu0 0.0
      %4012 = vmatpush1.msra.mxu0 %v3921
      %4013 = vmatprep.subr.mxu0 0.0
      %4014 = vmatpush1.msra.mxu0 %v3920
      %4015 = vmatprep.subr.mxu0 0.0
      %4016 = vmatpush1.msra.mxu0 %v3919
      %4017 = vmatprep.subr.mxu0 0.0
      %4018 = vmatpush1.msra.mxu0 %v3918
      %4019 = vmatprep.subr.mxu0 0.0
      %4020 = vmatpush1.msra.mxu0 %v3917
      %4021 = vmatprep.subr.mxu0 0.0
      %4022 = vmatpush1.msra.mxu0 %v3916
      %4023 = vmatprep.subr.mxu0 0.0
      %4024 = vmatpush1.msra.mxu0 %v3915
      %4025 = vmatprep.subr.mxu0 0.0
      %4026 = vmatpush1.msra.mxu0 %v3914
      %4027 = vmatprep.subr.mxu0 0.0
      %4028 = vmatpush1.msra.mxu0 %v3913
      %4029 = vmatprep.subr.mxu0 0.0
      %4030 = vmatpush1.msra.mxu0 %v3912
      %4031 = vmatprep.subr.mxu0 0.0
      %4032 = vmatpush1.msra.mxu0 %v3911
      %4033 = vmatprep.subr.mxu0 0.0
      %4034 = vmatpush1.msra.mxu0 %v3910
      %4035 = vmatprep.subr.mxu0 0.0
      %4036 = vmatpush1.msra.mxu0 %v3909
      %4037 = vmatprep.subr.mxu0 0.0
      %4038 = vmatpush2.msra.mxu0 %v3940
      %4039 = vmatprep.subr.mxu0 0.0
      %4040 = vmatpush2.msra.mxu0 %v3939
      %4041 = vmatprep.subr.mxu0 0.0
      %4042 = vmatpush2.msra.mxu0 %v3938
      %4043 = vmatprep.subr.mxu0 0.0
      %4044 = vmatpush2.msra.mxu0 %v3937
      %4045 = vmatprep.subr.mxu0 0.0
      %4046 = vmatpush2.msra.mxu0 %v3936
      %4047 = vmatprep.subr.mxu0 0.0
      %4048 = vmatpush2.msra.mxu0 %v3935
      %4049 = vmatprep.subr.mxu0 0.0
      %4050 = vmatpush2.msra.mxu0 %v3934
      %4051 = vmatprep.subr.mxu0 0.0
      %4052 = vmatpush2.msra.mxu0 %v3933
      %4053 = vmatprep.subr.mxu0 0.0
      %4054 = vmatpush2.msra.mxu0 %v3932
      %4055 = vmatprep.subr.mxu0 0.0
      %4056 = vmatpush2.msra.mxu0 %v3931
      %4057 = vmatprep.subr.mxu0 0.0
      %4058 = vmatpush2.msra.mxu0 %v3930
      %4059 = vmatprep.subr.mxu0 0.0
      %4060 = vmatpush2.msra.mxu0 %v3929
      %4061 = vmatprep.subr.mxu0 0.0
      %4062 = vmatpush2.msra.mxu0 %v3928
      %4063 = vmatprep.subr.mxu0 0.0
      %4064 = vmatpush2.msra.mxu0 %v3927
      %4065 = vmatprep.subr.mxu0 0.0
      %4066 = vmatpush2.msra.mxu0 %v3926
      %4067 = vmatprep.subr.mxu0 0.0
      %4068 = vmatpush2.msra.mxu0 %v3925
      %4069 = vmatprep.mubr.f32.mxu0 %v3875
      %4070 = vmatmul.mubr.f32.gmra.mxu0 %v3869
      %v4071 = vpop.f32.mrf.mxu0
      %v4072 = vadd.f32 0.0, %v4071
      %v4073 = vpop.f32.mrf.mxu0
      %4074 = vmatprep.mubr.f32.mxu0 %v3877
      %4075 = vmatmul.mubr.f32.gmra.mxu0 %v3865
      %v4076 = vpop.f32.mrf.mxu0
      %v4077 = vadd.f32 0.0, %v4076
      %v4078 = vpop.f32.mrf.mxu0
      %4079 = vdwg.mxu0
      %4080 = vmatprep.subr.mxu0 0.0
      %4081 = vmatpush1.msra.mxu0 %v3956
      %4082 = vmatprep.subr.mxu0 0.0
      %4083 = vmatpush1.msra.mxu0 %v3955
      %4084 = vmatprep.subr.mxu0 0.0
      %4085 = vmatpush1.msra.mxu0 %v3954
      %4086 = vmatprep.subr.mxu0 0.0
      %4087 = vmatpush1.msra.mxu0 %v3953
      %4088 = vmatprep.subr.mxu0 0.0
      %4089 = vmatpush1.msra.mxu0 %v3952
      %4090 = vmatprep.subr.mxu0 0.0
      %4091 = vmatpush1.msra.mxu0 %v3951
      %4092 = vmatprep.subr.mxu0 0.0
      %4093 = vmatpush1.msra.mxu0 %v3950
      %4094 = vmatprep.subr.mxu0 0.0
      %4095 = vmatpush1.msra.mxu0 %v3949
      %4096 = vmatprep.subr.mxu0 0.0
      %4097 = vmatpush1.msra.mxu0 %v3948
      %4098 = vmatprep.subr.mxu0 0.0
      %4099 = vmatpush1.msra.mxu0 %v3947
      %4100 = vmatprep.subr.mxu0 0.0
      %4101 = vmatpush1.msra.mxu0 %v3946
      %4102 = vmatprep.subr.mxu0 0.0
      %4103 = vmatpush1.msra.mxu0 %v3945
      %4104 = vmatprep.subr.mxu0 0.0
      %4105 = vmatpush1.msra.mxu0 %v3944
      %4106 = vmatprep.subr.mxu0 0.0
      %4107 = vmatpush1.msra.mxu0 %v3943
      %4108 = vmatprep.subr.mxu0 0.0
      %4109 = vmatpush1.msra.mxu0 %v3942
      %4110 = vmatprep.subr.mxu0 0.0
      %4111 = vmatpush1.msra.mxu0 %v3941
      %4112 = vmatprep.subr.mxu0 0.0
      %4113 = vmatpush2.msra.mxu0 %v3972
      %4114 = vmatprep.subr.mxu0 0.0
      %4115 = vmatpush2.msra.mxu0 %v3971
      %4116 = vmatprep.subr.mxu0 0.0
      %4117 = vmatpush2.msra.mxu0 %v3970
      %4118 = vmatprep.subr.mxu0 0.0
      %4119 = vmatpush2.msra.mxu0 %v3969
      %4120 = vmatprep.subr.mxu0 0.0
      %4121 = vmatpush2.msra.mxu0 %v3968
      %4122 = vmatprep.subr.mxu0 0.0
      %4123 = vmatpush2.msra.mxu0 %v3967
      %4124 = vmatprep.subr.mxu0 0.0
      %4125 = vmatpush2.msra.mxu0 %v3966
      %4126 = vmatprep.subr.mxu0 0.0
      %4127 = vmatpush2.msra.mxu0 %v3965
      %4128 = vmatprep.subr.mxu0 0.0
      %4129 = vmatpush2.msra.mxu0 %v3964
      %4130 = vmatprep.subr.mxu0 0.0
      %4131 = vmatpush2.msra.mxu0 %v3963
      %4132 = vmatprep.subr.mxu0 0.0
      %4133 = vmatpush2.msra.mxu0 %v3962
      %4134 = vmatprep.subr.mxu0 0.0
      %4135 = vmatpush2.msra.mxu0 %v3961
      %4136 = vmatprep.subr.mxu0 0.0
      %4137 = vmatpush2.msra.mxu0 %v3960
      %4138 = vmatprep.subr.mxu0 0.0
      %4139 = vmatpush2.msra.mxu0 %v3959
      %4140 = vmatprep.subr.mxu0 0.0
      %4141 = vmatpush2.msra.mxu0 %v3958
      %4142 = vmatprep.subr.mxu0 0.0
      %4143 = vmatpush2.msra.mxu0 %v3957
      %4144 = vmatprep.mubr.f32.mxu0 %v3889
      %4145 = vmatmul.mubr.f32.gmra.mxu0 %v3882
      %v4146 = vpop.f32.mrf.mxu0
      %v4147 = vadd.f32 %v4072, %v4146
      %v4148 = vpop.f32.mrf.mxu0
      %4149 = vmatprep.mubr.f32.mxu0 %v3891
      %4150 = vmatmul.mubr.f32.gmra.mxu0 %v3884
      %v4151 = vpop.f32.mrf.mxu0
      %v4152 = vadd.f32 %v4077, %v4151
      %v4153 = vpop.f32.mrf.mxu0
      %4154 = vdwg.mxu0
      %4155 = vmatprep.subr.mxu0 0.0
      %4156 = vmatpush1.msra.mxu0 %v3988
      %4157 = vmatprep.subr.mxu0 0.0
      %4158 = vmatpush1.msra.mxu0 %v3987
      %4159 = vmatprep.subr.mxu0 0.0
      %4160 = vmatpush1.msra.mxu0 %v3986
      %4161 = vmatprep.subr.mxu0 0.0
      %4162 = vmatpush1.msra.mxu0 %v3985
      %4163 = vmatprep.subr.mxu0 0.0
      %4164 = vmatpush1.msra.mxu0 %v3984
      %4165 = vmatprep.subr.mxu0 0.0
      %4166 = vmatpush1.msra.mxu0 %v3983
      %4167 = vmatprep.subr.mxu0 0.0
      %4168 = vmatpush1.msra.mxu0 %v3982
      %4169 = vmatprep.subr.mxu0 0.0
      %4170 = vmatpush1.msra.mxu0 %v3981
      %4171 = vmatprep.subr.mxu0 0.0
      %4172 = vmatpush1.msra.mxu0 %v3980
      %4173 = vmatprep.subr.mxu0 0.0
      %4174 = vmatpush1.msra.mxu0 %v3979
      %4175 = vmatprep.subr.mxu0 0.0
      %4176 = vmatpush1.msra.mxu0 %v3978
      %4177 = vmatprep.subr.mxu0 0.0
      %4178 = vmatpush1.msra.mxu0 %v3977
      %4179 = vmatprep.subr.mxu0 0.0
      %4180 = vmatpush1.msra.mxu0 %v3976
      %4181 = vmatprep.subr.mxu0 0.0
      %4182 = vmatpush1.msra.mxu0 %v3975
      %4183 = vmatprep.subr.mxu0 0.0
      %4184 = vmatpush1.msra.mxu0 %v3974
      %4185 = vmatprep.subr.mxu0 0.0
      %4186 = vmatpush1.msra.mxu0 %v3973
      %4187 = vmatprep.subr.mxu0 0.0
      %4188 = vmatpush2.msra.mxu0 %v4004
      %4189 = vmatprep.subr.mxu0 0.0
      %4190 = vmatpush2.msra.mxu0 %v4003
      %4191 = vmatprep.subr.mxu0 0.0
      %4192 = vmatpush2.msra.mxu0 %v4002
      %4193 = vmatprep.subr.mxu0 0.0
      %4194 = vmatpush2.msra.mxu0 %v4001
      %4195 = vmatprep.subr.mxu0 0.0
      %4196 = vmatpush2.msra.mxu0 %v4000
      %4197 = vmatprep.subr.mxu0 0.0
      %4198 = vmatpush2.msra.mxu0 %v3999
      %4199 = vmatprep.subr.mxu0 0.0
      %4200 = vmatpush2.msra.mxu0 %v3998
      %4201 = vmatprep.subr.mxu0 0.0
      %4202 = vmatpush2.msra.mxu0 %v3997
      %4203 = vmatprep.subr.mxu0 0.0
      %4204 = vmatpush2.msra.mxu0 %v3996
      %4205 = vmatprep.subr.mxu0 0.0
      %4206 = vmatpush2.msra.mxu0 %v3995
      %4207 = vmatprep.subr.mxu0 0.0
      %4208 = vmatpush2.msra.mxu0 %v3994
      %4209 = vmatprep.subr.mxu0 0.0
      %4210 = vmatpush2.msra.mxu0 %v3993
      %4211 = vmatprep.subr.mxu0 0.0
      %4212 = vmatpush2.msra.mxu0 %v3992
      %4213 = vmatprep.subr.mxu0 0.0
      %4214 = vmatpush2.msra.mxu0 %v3991
      %4215 = vmatprep.subr.mxu0 0.0
      %4216 = vmatpush2.msra.mxu0 %v3990
      %4217 = vmatprep.subr.mxu0 0.0
      %4218 = vmatpush2.msra.mxu0 %v3989
      %4219 = vmatprep.mubr.f32.mxu0 %v3903
      %4220 = vmatmul.mubr.f32.gmra.mxu0 %v3896
      %v4221 = vpop.f32.mrf.mxu0
      %v4222 = vadd.f32 %v4147, %v4221
      %v4223 = vpop.f32.mrf.mxu0
      %4224 = vmatprep.mubr.f32.mxu0 %v3905
      %4225 = vmatmul.mubr.f32.gmra.mxu0 %v3898
      %v4226 = vpop.f32.mrf.mxu0
      %v4227 = vadd.f32 %v4152, %v4226
      %v4228 = vpop.f32.mrf.mxu0
      %4229 = vdwg.mxu0
      %v4230 = vlaneseq
      %v4231 = vshrl.u32 %v4230, 7
      %v4232 = vsub.s32 6, %v4231
      %v4233 = vrot.slane %v299, %v4232
      %v4234 = vmul.f32 %v4222, %v4233
      %v4235 = vmul.f32 %v4227, %v4233
      %v4236 = vlaneseq
      %v4237 = vshrl.u32 %v4236, 7
      %v4238 = vsub.s32 6, %v4237
      %v4239 = vrot.slane %v300, %v4238
      %v4240 = vadd.f32 %v4234, %v4239
      %v4241 = vadd.f32 %v4235, %v4239
      %v4242 = vmax.f32 %v4240, 0.0
      %v4243 = vmax.f32 %v4241, 0.0
      %vm4244 = vcmp.lt.s32.totalorder %v3469, 11
      %vm4245 = vcmp.lt.s32.totalorder %v3470, 11
      %v4246 = vsel %vm4244, %v4242, 0.0
      %v4247 = vsel %vm4245, %v4243, 0.0
      %v4250 = vrot.slane %v4246, 6
      %v4251 = vrot.slane %v4247, 6
      %v4252 = vsel %vm1273, %v4250, %v4251
      %v4256 = vsel %vm1273, 0.0, %v4250
      %v4257 = vsel %vm1273, %v4251, 0.0
      %v4260 = vrot.slane %v4256, 1
      %v4261 = vrot.slane %v4252, 1
      %v4262 = vsel %vm1158, %v4260, %v4261
      %v4263 = vrot.slane %v4257, 1
      %v4264 = vsel %vm1158, %v4261, %v4263
      %v4267 = vrot.slane %v4256, 2
      %v4268 = vrot.slane %v4252, 2
      %v4269 = vsel %vm1181, %v4267, %v4268
      %v4270 = vrot.slane %v4257, 2
      %v4271 = vsel %vm1181, %v4268, %v4270
      %v4274 = vrot.slane %v4256, 3
      %v4275 = vrot.slane %v4252, 3
      %v4276 = vsel %vm1204, %v4274, %v4275
      %v4277 = vrot.slane %v4257, 3
      %v4278 = vsel %vm1204, %v4275, %v4277
      %v4281 = vrot.slane %v4256, 4
      %v4282 = vrot.slane %v4252, 4
      %v4283 = vsel %vm1227, %v4281, %v4282
      %v4284 = vrot.slane %v4257, 4
      %v4285 = vsel %vm1227, %v4282, %v4284
      %v4288 = vrot.slane %v4256, 5
      %v4289 = vrot.slane %v4252, 5
      %v4290 = vsel %vm1250, %v4288, %v4289
      %v4291 = vrot.slane %v4257, 5
      %v4292 = vsel %vm1250, %v4289, %v4291
      %s4295 = scalar_lea.vmem %s5, 1536
      %v4296 = vld [vmem:[%s4295] sm:$0xff]
      %v4297 = vld [vmem:[%s4295 + $0x8] sm:$0xff]
      %v4298 = vld [vmem:[%s4295 + $0x10] sm:$0xff]
      %v4299 = vld [vmem:[%s4295 + $0x18] sm:$0xff]
      %v4300 = vld [vmem:[%s4295 + $0x20] sm:$0xff]
      %v4301 = vld [vmem:[%s4295 + $0x28] sm:$0xff]
      %v4302 = vld [vmem:[%s4295 + $0x30] sm:$0xff]
      %v4303 = vld [vmem:[%s4295 + $0x38] sm:$0xff]
      %v4304 = vld [vmem:[%s4295 + $0x40] sm:$0xff]
      %v4305 = vld [vmem:[%s4295 + $0x48] sm:$0xff]
      %v4306 = vld [vmem:[%s4295 + $0x50] sm:$0xff]
      %v4307 = vld [vmem:[%s4295 + $0x58] sm:$0xff]
      %v4308 = vld [vmem:[%s4295 + $0x60] sm:$0xff]
      %v4309 = vld [vmem:[%s4295 + $0x68] sm:$0xff]
      %v4310 = vld [vmem:[%s4295 + $0x70] sm:$0xff]
      %v4311 = vld [vmem:[%s4295 + $0x78] sm:$0xff]
      %v4312 = vld [vmem:[%s4295 + $0x80] sm:$0xff]
      %v4313 = vld [vmem:[%s4295 + $0x88] sm:$0xff]
      %v4314 = vld [vmem:[%s4295 + $0x90] sm:$0xff]
      %v4315 = vld [vmem:[%s4295 + $0x98] sm:$0xff]
      %v4316 = vld [vmem:[%s4295 + $0xa0] sm:$0xff]
      %v4317 = vld [vmem:[%s4295 + $0xa8] sm:$0xff]
      %v4318 = vld [vmem:[%s4295 + $0xb0] sm:$0xff]
      %v4319 = vld [vmem:[%s4295 + $0xb8] sm:$0xff]
      %v4320 = vld [vmem:[%s4295 + $0xc0] sm:$0xff]
      %v4321 = vld [vmem:[%s4295 + $0xc8] sm:$0xff]
      %v4322 = vld [vmem:[%s4295 + $0xd0] sm:$0xff]
      %v4323 = vld [vmem:[%s4295 + $0xd8] sm:$0xff]
      %v4324 = vld [vmem:[%s4295 + $0xe0] sm:$0xff]
      %v4325 = vld [vmem:[%s4295 + $0xe8] sm:$0xff]
      %v4326 = vld [vmem:[%s4295 + $0xf0] sm:$0xff]
      %v4327 = vld [vmem:[%s4295 + $0xf8] sm:$0xff]
      %v4328 = vld [vmem:[%s4295 + $0x100] sm:$0xff]
      %v4329 = vld [vmem:[%s4295 + $0x108] sm:$0xff]
      %v4330 = vld [vmem:[%s4295 + $0x110] sm:$0xff]
      %v4331 = vld [vmem:[%s4295 + $0x118] sm:$0xff]
      %v4332 = vld [vmem:[%s4295 + $0x120] sm:$0xff]
      %v4333 = vld [vmem:[%s4295 + $0x128] sm:$0xff]
      %v4334 = vld [vmem:[%s4295 + $0x130] sm:$0xff]
      %v4335 = vld [vmem:[%s4295 + $0x138] sm:$0xff]
      %v4336 = vld [vmem:[%s4295 + $0x140] sm:$0xff]
      %v4337 = vld [vmem:[%s4295 + $0x148] sm:$0xff]
      %v4338 = vld [vmem:[%s4295 + $0x150] sm:$0xff]
      %v4339 = vld [vmem:[%s4295 + $0x158] sm:$0xff]
      %v4340 = vld [vmem:[%s4295 + $0x160] sm:$0xff]
      %v4341 = vld [vmem:[%s4295 + $0x168] sm:$0xff]
      %v4342 = vld [vmem:[%s4295 + $0x170] sm:$0xff]
      %v4343 = vld [vmem:[%s4295 + $0x178] sm:$0xff]
      %v4344 = vld [vmem:[%s4295 + $0x180] sm:$0xff]
      %v4345 = vld [vmem:[%s4295 + $0x188] sm:$0xff]
      %v4346 = vld [vmem:[%s4295 + $0x190] sm:$0xff]
      %v4347 = vld [vmem:[%s4295 + $0x198] sm:$0xff]
      %v4348 = vld [vmem:[%s4295 + $0x1a0] sm:$0xff]
      %v4349 = vld [vmem:[%s4295 + $0x1a8] sm:$0xff]
      %v4350 = vld [vmem:[%s4295 + $0x1b0] sm:$0xff]
      %v4351 = vld [vmem:[%s4295 + $0x1b8] sm:$0xff]
      %v4352 = vld [vmem:[%s4295 + $0x1c0] sm:$0xff]
      %v4353 = vld [vmem:[%s4295 + $0x1c8] sm:$0xff]
      %v4354 = vld [vmem:[%s4295 + $0x1d0] sm:$0xff]
      %v4355 = vld [vmem:[%s4295 + $0x1d8] sm:$0xff]
      %v4356 = vld [vmem:[%s4295 + $0x1e0] sm:$0xff]
      %v4357 = vld [vmem:[%s4295 + $0x1e8] sm:$0xff]
      %v4358 = vld [vmem:[%s4295 + $0x1f0] sm:$0xff]
      %v4359 = vld [vmem:[%s4295 + $0x1f8] sm:$0xff]
      %v4360 = vld [vmem:[%s4295 + $0x200] sm:$0xff]
      %v4361 = vld [vmem:[%s4295 + $0x208] sm:$0xff]
      %v4362 = vld [vmem:[%s4295 + $0x210] sm:$0xff]
      %v4363 = vld [vmem:[%s4295 + $0x218] sm:$0xff]
      %v4364 = vld [vmem:[%s4295 + $0x220] sm:$0xff]
      %v4365 = vld [vmem:[%s4295 + $0x228] sm:$0xff]
      %v4366 = vld [vmem:[%s4295 + $0x230] sm:$0xff]
      %v4367 = vld [vmem:[%s4295 + $0x238] sm:$0xff]
      %v4368 = vld [vmem:[%s4295 + $0x240] sm:$0xff]
      %v4369 = vld [vmem:[%s4295 + $0x248] sm:$0xff]
      %v4370 = vld [vmem:[%s4295 + $0x250] sm:$0xff]
      %v4371 = vld [vmem:[%s4295 + $0x258] sm:$0xff]
      %v4372 = vld [vmem:[%s4295 + $0x260] sm:$0xff]
      %v4373 = vld [vmem:[%s4295 + $0x268] sm:$0xff]
      %v4374 = vld [vmem:[%s4295 + $0x270] sm:$0xff]
      %v4375 = vld [vmem:[%s4295 + $0x278] sm:$0xff]
      %v4376 = vld [vmem:[%s4295 + $0x280] sm:$0xff]
      %v4377 = vld [vmem:[%s4295 + $0x288] sm:$0xff]
      %v4378 = vld [vmem:[%s4295 + $0x290] sm:$0xff]
      %v4379 = vld [vmem:[%s4295 + $0x298] sm:$0xff]
      %v4380 = vld [vmem:[%s4295 + $0x2a0] sm:$0xff]
      %v4381 = vld [vmem:[%s4295 + $0x2a8] sm:$0xff]
      %v4382 = vld [vmem:[%s4295 + $0x2b0] sm:$0xff]
      %v4383 = vld [vmem:[%s4295 + $0x2b8] sm:$0xff]
      %v4384 = vld [vmem:[%s4295 + $0x2c0] sm:$0xff]
      %v4385 = vld [vmem:[%s4295 + $0x2c8] sm:$0xff]
      %v4386 = vld [vmem:[%s4295 + $0x2d0] sm:$0xff]
      %v4387 = vld [vmem:[%s4295 + $0x2d8] sm:$0xff]
      %v4388 = vld [vmem:[%s4295 + $0x2e0] sm:$0xff]
      %v4389 = vld [vmem:[%s4295 + $0x2e8] sm:$0xff]
      %v4390 = vld [vmem:[%s4295 + $0x2f0] sm:$0xff]
      %v4391 = vld [vmem:[%s4295 + $0x2f8] sm:$0xff]
      %4392 = vmatprep.subr.mxu0 0.0
      %4393 = vmatpush1.msra.mxu0 %v4311
      %4394 = vmatprep.subr.mxu0 0.0
      %4395 = vmatpush1.msra.mxu0 %v4310
      %4396 = vmatprep.subr.mxu0 0.0
      %4397 = vmatpush1.msra.mxu0 %v4309
      %4398 = vmatprep.subr.mxu0 0.0
      %4399 = vmatpush1.msra.mxu0 %v4308
      %4400 = vmatprep.subr.mxu0 0.0
      %4401 = vmatpush1.msra.mxu0 %v4307
      %4402 = vmatprep.subr.mxu0 0.0
      %4403 = vmatpush1.msra.mxu0 %v4306
      %4404 = vmatprep.subr.mxu0 0.0
      %4405 = vmatpush1.msra.mxu0 %v4305
      %4406 = vmatprep.subr.mxu0 0.0
      %4407 = vmatpush1.msra.mxu0 %v4304
      %4408 = vmatprep.subr.mxu0 0.0
      %4409 = vmatpush1.msra.mxu0 %v4303
      %4410 = vmatprep.subr.mxu0 0.0
      %4411 = vmatpush1.msra.mxu0 %v4302
      %4412 = vmatprep.subr.mxu0 0.0
      %4413 = vmatpush1.msra.mxu0 %v4301
      %4414 = vmatprep.subr.mxu0 0.0
      %4415 = vmatpush1.msra.mxu0 %v4300
      %4416 = vmatprep.subr.mxu0 0.0
      %4417 = vmatpush1.msra.mxu0 %v4299
      %4418 = vmatprep.subr.mxu0 0.0
      %4419 = vmatpush1.msra.mxu0 %v4298
      %4420 = vmatprep.subr.mxu0 0.0
      %4421 = vmatpush1.msra.mxu0 %v4297
      %4422 = vmatprep.subr.mxu0 0.0
      %4423 = vmatpush1.msra.mxu0 %v4296
      %4424 = vmatprep.subr.mxu0 0.0
      %4425 = vmatpush2.msra.mxu0 %v4327
      %4426 = vmatprep.subr.mxu0 0.0
      %4427 = vmatpush2.msra.mxu0 %v4326
      %4428 = vmatprep.subr.mxu0 0.0
      %4429 = vmatpush2.msra.mxu0 %v4325
      %4430 = vmatprep.subr.mxu0 0.0
      %4431 = vmatpush2.msra.mxu0 %v4324
      %4432 = vmatprep.subr.mxu0 0.0
      %4433 = vmatpush2.msra.mxu0 %v4323
      %4434 = vmatprep.subr.mxu0 0.0
      %4435 = vmatpush2.msra.mxu0 %v4322
      %4436 = vmatprep.subr.mxu0 0.0
      %4437 = vmatpush2.msra.mxu0 %v4321
      %4438 = vmatprep.subr.mxu0 0.0
      %4439 = vmatpush2.msra.mxu0 %v4320
      %4440 = vmatprep.subr.mxu0 0.0
      %4441 = vmatpush2.msra.mxu0 %v4319
      %4442 = vmatprep.subr.mxu0 0.0
      %4443 = vmatpush2.msra.mxu0 %v4318
      %4444 = vmatprep.subr.mxu0 0.0
      %4445 = vmatpush2.msra.mxu0 %v4317
      %4446 = vmatprep.subr.mxu0 0.0
      %4447 = vmatpush2.msra.mxu0 %v4316
      %4448 = vmatprep.subr.mxu0 0.0
      %4449 = vmatpush2.msra.mxu0 %v4315
      %4450 = vmatprep.subr.mxu0 0.0
      %4451 = vmatpush2.msra.mxu0 %v4314
      %4452 = vmatprep.subr.mxu0 0.0
      %4453 = vmatpush2.msra.mxu0 %v4313
      %4454 = vmatprep.subr.mxu0 0.0
      %4455 = vmatpush2.msra.mxu0 %v4312
      %4456 = vmatprep.mubr.f32.mxu0 %v4262
      %4457 = vmatmul.mubr.f32.gmra.mxu0 %v4256
      %v4458 = vpop.f32.mrf.mxu0
      %v4459 = vadd.f32 0.0, %v4458
      %v4460 = vpop.f32.mrf.mxu0
      %4461 = vmatprep.mubr.f32.mxu0 %v4264
      %4462 = vmatmul.mubr.f32.gmra.mxu0 %v4252
      %v4463 = vpop.f32.mrf.mxu0
      %v4464 = vadd.f32 0.0, %v4463
      %v4465 = vpop.f32.mrf.mxu0
      %4466 = vdwg.mxu0
      %4467 = vmatprep.subr.mxu0 0.0
      %4468 = vmatpush1.msra.mxu0 %v4343
      %4469 = vmatprep.subr.mxu0 0.0
      %4470 = vmatpush1.msra.mxu0 %v4342
      %4471 = vmatprep.subr.mxu0 0.0
      %4472 = vmatpush1.msra.mxu0 %v4341
      %4473 = vmatprep.subr.mxu0 0.0
      %4474 = vmatpush1.msra.mxu0 %v4340
      %4475 = vmatprep.subr.mxu0 0.0
      %4476 = vmatpush1.msra.mxu0 %v4339
      %4477 = vmatprep.subr.mxu0 0.0
      %4478 = vmatpush1.msra.mxu0 %v4338
      %4479 = vmatprep.subr.mxu0 0.0
      %4480 = vmatpush1.msra.mxu0 %v4337
      %4481 = vmatprep.subr.mxu0 0.0
      %4482 = vmatpush1.msra.mxu0 %v4336
      %4483 = vmatprep.subr.mxu0 0.0
      %4484 = vmatpush1.msra.mxu0 %v4335
      %4485 = vmatprep.subr.mxu0 0.0
      %4486 = vmatpush1.msra.mxu0 %v4334
      %4487 = vmatprep.subr.mxu0 0.0
      %4488 = vmatpush1.msra.mxu0 %v4333
      %4489 = vmatprep.subr.mxu0 0.0
      %4490 = vmatpush1.msra.mxu0 %v4332
      %4491 = vmatprep.subr.mxu0 0.0
      %4492 = vmatpush1.msra.mxu0 %v4331
      %4493 = vmatprep.subr.mxu0 0.0
      %4494 = vmatpush1.msra.mxu0 %v4330
      %4495 = vmatprep.subr.mxu0 0.0
      %4496 = vmatpush1.msra.mxu0 %v4329
      %4497 = vmatprep.subr.mxu0 0.0
      %4498 = vmatpush1.msra.mxu0 %v4328
      %4499 = vmatprep.subr.mxu0 0.0
      %4500 = vmatpush2.msra.mxu0 %v4359
      %4501 = vmatprep.subr.mxu0 0.0
      %4502 = vmatpush2.msra.mxu0 %v4358
      %4503 = vmatprep.subr.mxu0 0.0
      %4504 = vmatpush2.msra.mxu0 %v4357
      %4505 = vmatprep.subr.mxu0 0.0
      %4506 = vmatpush2.msra.mxu0 %v4356
      %4507 = vmatprep.subr.mxu0 0.0
      %4508 = vmatpush2.msra.mxu0 %v4355
      %4509 = vmatprep.subr.mxu0 0.0
      %4510 = vmatpush2.msra.mxu0 %v4354
      %4511 = vmatprep.subr.mxu0 0.0
      %4512 = vmatpush2.msra.mxu0 %v4353
      %4513 = vmatprep.subr.mxu0 0.0
      %4514 = vmatpush2.msra.mxu0 %v4352
      %4515 = vmatprep.subr.mxu0 0.0
      %4516 = vmatpush2.msra.mxu0 %v4351
      %4517 = vmatprep.subr.mxu0 0.0
      %4518 = vmatpush2.msra.mxu0 %v4350
      %4519 = vmatprep.subr.mxu0 0.0
      %4520 = vmatpush2.msra.mxu0 %v4349
      %4521 = vmatprep.subr.mxu0 0.0
      %4522 = vmatpush2.msra.mxu0 %v4348
      %4523 = vmatprep.subr.mxu0 0.0
      %4524 = vmatpush2.msra.mxu0 %v4347
      %4525 = vmatprep.subr.mxu0 0.0
      %4526 = vmatpush2.msra.mxu0 %v4346
      %4527 = vmatprep.subr.mxu0 0.0
      %4528 = vmatpush2.msra.mxu0 %v4345
      %4529 = vmatprep.subr.mxu0 0.0
      %4530 = vmatpush2.msra.mxu0 %v4344
      %4531 = vmatprep.mubr.f32.mxu0 %v4276
      %4532 = vmatmul.mubr.f32.gmra.mxu0 %v4269
      %v4533 = vpop.f32.mrf.mxu0
      %v4534 = vadd.f32 %v4459, %v4533
      %v4535 = vpop.f32.mrf.mxu0
      %4536 = vmatprep.mubr.f32.mxu0 %v4278
      %4537 = vmatmul.mubr.f32.gmra.mxu0 %v4271
      %v4538 = vpop.f32.mrf.mxu0
      %v4539 = vadd.f32 %v4464, %v4538
      %v4540 = vpop.f32.mrf.mxu0
      %4541 = vdwg.mxu0
      %4542 = vmatprep.subr.mxu0 0.0
      %4543 = vmatpush1.msra.mxu0 %v4375
      %4544 = vmatprep.subr.mxu0 0.0
      %4545 = vmatpush1.msra.mxu0 %v4374
      %4546 = vmatprep.subr.mxu0 0.0
      %4547 = vmatpush1.msra.mxu0 %v4373
      %4548 = vmatprep.subr.mxu0 0.0
      %4549 = vmatpush1.msra.mxu0 %v4372
      %4550 = vmatprep.subr.mxu0 0.0
      %4551 = vmatpush1.msra.mxu0 %v4371
      %4552 = vmatprep.subr.mxu0 0.0
      %4553 = vmatpush1.msra.mxu0 %v4370
      %4554 = vmatprep.subr.mxu0 0.0
      %4555 = vmatpush1.msra.mxu0 %v4369
      %4556 = vmatprep.subr.mxu0 0.0
      %4557 = vmatpush1.msra.mxu0 %v4368
      %4558 = vmatprep.subr.mxu0 0.0
      %4559 = vmatpush1.msra.mxu0 %v4367
      %4560 = vmatprep.subr.mxu0 0.0
      %4561 = vmatpush1.msra.mxu0 %v4366
      %4562 = vmatprep.subr.mxu0 0.0
      %4563 = vmatpush1.msra.mxu0 %v4365
      %4564 = vmatprep.subr.mxu0 0.0
      %4565 = vmatpush1.msra.mxu0 %v4364
      %4566 = vmatprep.subr.mxu0 0.0
      %4567 = vmatpush1.msra.mxu0 %v4363
      %4568 = vmatprep.subr.mxu0 0.0
      %4569 = vmatpush1.msra.mxu0 %v4362
      %4570 = vmatprep.subr.mxu0 0.0
      %4571 = vmatpush1.msra.mxu0 %v4361
      %4572 = vmatprep.subr.mxu0 0.0
      %4573 = vmatpush1.msra.mxu0 %v4360
      %4574 = vmatprep.subr.mxu0 0.0
      %4575 = vmatpush2.msra.mxu0 %v4391
      %4576 = vmatprep.subr.mxu0 0.0
      %4577 = vmatpush2.msra.mxu0 %v4390
      %4578 = vmatprep.subr.mxu0 0.0
      %4579 = vmatpush2.msra.mxu0 %v4389
      %4580 = vmatprep.subr.mxu0 0.0
      %4581 = vmatpush2.msra.mxu0 %v4388
      %4582 = vmatprep.subr.mxu0 0.0
      %4583 = vmatpush2.msra.mxu0 %v4387
      %4584 = vmatprep.subr.mxu0 0.0
      %4585 = vmatpush2.msra.mxu0 %v4386
      %4586 = vmatprep.subr.mxu0 0.0
      %4587 = vmatpush2.msra.mxu0 %v4385
      %4588 = vmatprep.subr.mxu0 0.0
      %4589 = vmatpush2.msra.mxu0 %v4384
      %4590 = vmatprep.subr.mxu0 0.0
      %4591 = vmatpush2.msra.mxu0 %v4383
      %4592 = vmatprep.subr.mxu0 0.0
      %4593 = vmatpush2.msra.mxu0 %v4382
      %4594 = vmatprep.subr.mxu0 0.0
      %4595 = vmatpush2.msra.mxu0 %v4381
      %4596 = vmatprep.subr.mxu0 0.0
      %4597 = vmatpush2.msra.mxu0 %v4380
      %4598 = vmatprep.subr.mxu0 0.0
      %4599 = vmatpush2.msra.mxu0 %v4379
      %4600 = vmatprep.subr.mxu0 0.0
      %4601 = vmatpush2.msra.mxu0 %v4378
      %4602 = vmatprep.subr.mxu0 0.0
      %4603 = vmatpush2.msra.mxu0 %v4377
      %4604 = vmatprep.subr.mxu0 0.0
      %4605 = vmatpush2.msra.mxu0 %v4376
      %4606 = vmatprep.mubr.f32.mxu0 %v4290
      %4607 = vmatmul.mubr.f32.gmra.mxu0 %v4283
      %v4608 = vpop.f32.mrf.mxu0
      %v4609 = vadd.f32 %v4534, %v4608
      %v4610 = vpop.f32.mrf.mxu0
      %4611 = vmatprep.mubr.f32.mxu0 %v4292
      %4612 = vmatmul.mubr.f32.gmra.mxu0 %v4285
      %v4613 = vpop.f32.mrf.mxu0
      %v4614 = vadd.f32 %v4539, %v4613
      %v4615 = vpop.f32.mrf.mxu0
      %4616 = vdwg.mxu0
      %v4617 = vlaneseq
      %v4618 = vshrl.u32 %v4617, 7
      %v4619 = vsub.s32 7, %v4618
      %v4620 = vrot.slane %v299, %v4619
      %v4621 = vmul.f32 %v4609, %v4620
      %v4622 = vmul.f32 %v4614, %v4620
      %v4623 = vlaneseq
      %v4624 = vshrl.u32 %v4623, 7
      %v4625 = vsub.s32 7, %v4624
      %v4626 = vrot.slane %v300, %v4625
      %v4627 = vadd.f32 %v4621, %v4626
      %v4628 = vadd.f32 %v4622, %v4626
      %v4629 = vmax.f32 %v4627, 0.0
      %v4630 = vmax.f32 %v4628, 0.0
      %v4631 = vsel %vm1273, %v4629, -inf
      %v4632 = vrot.slane %v4631, 4
      %v4633 = vmax.f32 %v4631, %v4632
      %v4634 = vrot.slane %v4633, 2
      %v4635 = vmax.f32 %v4633, %v4634
      %v4636 = vrot.slane %v4635, 1
      %v4637 = vmax.f32 %v4635, %v4636
      %vm4638 = vcmask 1043458
      %v4639 = vsel %vm4638, %v4629, -inf
      %v4640 = vrot.slane %v4639, 4
      %v4641 = vmax.f32 %v4639, %v4640
      %v4642 = vrot.slane %v4641, 2
      %v4643 = vmax.f32 %v4641, %v4642
      %v4644 = vrot.slane %v4643, 1
      %v4645 = vmax.f32 %v4643, %v4644
      %vm4646 = vcmask 1045508
      %v4647 = vsel %vm4646, %v4629, -inf
      %v4648 = vrot.slane %v4647, 4
      %v4649 = vmax.f32 %v4647, %v4648
      %v4650 = vrot.slane %v4649, 2
      %v4651 = vmax.f32 %v4649, %v4650
      %v4652 = vrot.slane %v4651, 1
      %v4653 = vmax.f32 %v4651, %v4652
      %vm4654 = vcmask 1047558
      %v4655 = vsel %vm4654, %v4629, -inf
      %v4656 = vrot.slane %v4655, 4
      %v4657 = vmax.f32 %v4655, %v4656
      %v4658 = vrot.slane %v4657, 2
      %v4659 = vmax.f32 %v4657, %v4658
      %v4660 = vrot.slane %v4659, 1
      %v4661 = vmax.f32 %v4659, %v4660
      %v4662 = vsel %vm1273, %v4630, -inf
      %v4663 = vrot.slane %v4662, 4
      %v4664 = vmax.f32 %v4662, %v4663
      %v4665 = vrot.slane %v4664, 2
      %v4666 = vmax.f32 %v4664, %v4665
      %v4667 = vrot.slane %v4666, 1
      %v4668 = vmax.f32 %v4666, %v4667
      %v4669 = vsel %vm1296, %v3059, %v3067
      %v4670 = vsel %vm1273, %v4669, %v3074
      %v4671 = vsel %vm1250, %v4670, %v3081
      %v4672 = vsel %vm1227, %v4671, %v3088
      %v4673 = vsel %vm1204, %v4672, %v3095
      %v4674 = vsel %vm1181, %v4673, %v3102
      %v4675 = vsel %vm1158, %v4674, %v3109
      %v4676 = vsel %vm1296, %v3116, %v3123
      %v4677 = vsel %vm1273, %v4676, %v4637
      %v4678 = vsel %vm1250, %v4677, %v4645
      %v4679 = vsel %vm1227, %v4678, %v4653
      %v4680 = vsel %vm1204, %v4679, %v4661
      %v4681 = vsel %vm1181, %v4680, %v4668
      %v4682 = vsel %vm1158, %v4681, 0.0
      %4683 = vst [vmem:[%s298] sm:$0xff] %v4675
      %4684 = vst [vmem:[%s298 + $0x8] sm:$0xff] %v4682
      %p4685 = scmp.lt.s32.totalorder %s18, 1
      %s4686 = scalar_select %p4685, %s18, 1
      %s4687 = smul.addr %s4686, 2
      %s4688 = smul.addr %s4687, 8
      %s4689 = scalar_lea.vmem %s7, %s4688
      // Predicated region
      $region49: #{encoder_forward.1} parent=47 // pred_check
        %p4690 = pneg %p193
      $region50: #{encoder_forward.1} parent=47 // pred_check_branch
        %4692 = sbr.rel (%p4690) target = $region52
      $region51: #{encoder_forward.1} parent=47 // pred_region
        _
      $region52: #{encoder_forward.1} parent=47 // pred_fallthru
        _
    $region48: #{encoder_forward.1} parent=5 // pred_fallthru
      _
    %p4693 = scmp.le.s32.totalorder 2, %s13
    // Predicated region
    $region53: #{encoder_forward.1} parent=5 // pred_check
      %p4694 = pneg %p4693
    $region54: #{encoder_forward.1} parent=5 // pred_check_branch
      %4696 = sbr.rel (%p4694) target = $region56
    $region55: #{encoder_forward.1} parent=5 // pred_region
      %s4697 = ssub.s32 %s13, 2
      // Predicated region
      $region57: #{encoder_forward.1} parent=55 // pred_check
        %p4698 = pneg %p199
      $region58: #{encoder_forward.1} parent=55 // pred_check_branch
        %4700 = sbr.rel (%p4698) target = $region60
      $region59: #{encoder_forward.1} parent=55 // pred_region
        %p4701 = scmp.lt.s32.totalorder %s19, 1
        %s4702 = scalar_select %p4701, %s19, 1
        %s4703 = smul.addr %s4702, 2
        %s4704 = smul.addr %s4703, 8
        %s4705 = scalar_lea.vmem %s7, %s4704
      $region60: #{encoder_forward.1} parent=55 // pred_fallthru
        _
    $region56: #{encoder_forward.1} parent=5 // pred_fallthru
      _
  $region6: #{encoder_forward.1} parent=0 // loop_footer
    %s17 = sadd.s32 1, %s13
  $region7: #{encoder_forward.1} parent=0 // loop_footer_branch
    %12 = sbr.rel target = $region3
  $region8: #{encoder_forward.1} parent=0 // loop_exit
    _

</llo_original>
